<compile_context>
chip_gen: v7x
topology: tpu7x:2x2x1
jax: 0.10.0
libtpu: 0.0.40
codegen_flags: <defaults>
</compile_context>

<pallas_src>
import math

import jax
import jax.numpy as jnp
from jax.experimental import pallas as pl
from jax.experimental.pallas import tpu as pltpu

HIDDEN = 32            # d_model (divisible by nhead=8)
HEADS = 8
HEAD_DIM = HIDDEN // HEADS
FFN = 2048             # nn.TransformerDecoderLayer default dim_feedforward
NUM_LAYERS = 6
LN_EPS = 1e-5
NEG_INF = -1e30
QKV_PAD = max(128, ((3 * HIDDEN + 127) // 128) * 128)   # lane-dense qkv width

# ---- packed bf16 weight slab layout (per layer, D sublanes) -----------------
WPACK_SA_W_OFF = 0                       # (D, QKV_PAD)  self-attn in_proj
WPACK_SA_WO_OFF = QKV_PAD                # (D, D)        self-attn out_proj
WPACK_W1_OFF = QKV_PAD + 128             # (D, F)        linear1
WPACK_WIDTH = WPACK_W1_OFF + FFN

# ---- packed f32 per-layer vector layout (1 sublane, 128-aligned segments) ---
OFF_SA_B = 0                             # (1, QKV_PAD)  qkv bias (q pre-scaled)
OFF_SA_BO = OFF_SA_B + QKV_PAD           # (1, D)        self-attn out bias
OFF_CA_ADD = OFF_SA_BO + 128             # (1, D)        cross-attn collapsed add
OFF_B2 = OFF_CA_ADD + 128                # (1, D)        linear2 bias
OFF_G1 = OFF_B2 + 128                    # (1, D)        norm1 gamma
OFF_BT1 = OFF_G1 + 128                   # (1, D)        norm1 beta
OFF_G2 = OFF_BT1 + 128
OFF_BT2 = OFF_G2 + 128
OFF_G3 = OFF_BT2 + 128
OFF_BT3 = OFF_G3 + 128
OFF_B1 = OFF_BT3 + 128                   # (1, F)        linear1 bias
VEC_WIDTH = OFF_B1 + FFN


def _layer_norm(x, gamma, beta):
    m = jnp.mean(x, axis=-1, keepdims=True)
    c = x - m
    v = jnp.mean(c * c, axis=-1, keepdims=True)
    return c * jax.lax.rsqrt(v + LN_EPS) * gamma + beta


def _idiv(x, d):
    # power-of-two fast path keeps the in-kernel mask math on plain VPU bit ops
    if d & (d - 1) == 0:
        return x >> (d.bit_length() - 1)
    return x // d


def _imod(x, d):
    if d & (d - 1) == 0:
        return x & (d - 1)
    return x % d


# ----------------------------------------------------------------------------
# Fused kernel: all 6 decoder layers + output projection, grid over layers.
# ----------------------------------------------------------------------------
def _make_kernel(batch, seq):
    N = batch * seq
    HC = HEADS * N
    D = HIDDEN

    def kernel(x_ref, wpack_ref, w2_ref, vec_ref, w_out_ref, b_out_ref,
               logits_ref, act_ref):
        layer = pl.program_id(0)

        @pl.when(layer == 0)
        def _():
            act_ref[...] = x_ref[...]

        x = act_ref[...]                                   # (N, D) f32, resident
        xb = x.astype(jnp.bfloat16)

        def vseg(off, width=D):
            return vec_ref[0, :, off:off + width]          # (1, width) f32

        # ---- masks regenerated from iota each step (cheap VPU filler) -------
        row = jax.lax.broadcasted_iota(jnp.int32, (N, HC), 0)
        col = jax.lax.broadcasted_iota(jnp.int32, (N, HC), 1)
        col_tok = _imod(col, N)
        valid = (_idiv(col_tok, seq) == _idiv(row, seq)) & \
                (_imod(col_tok, seq) <= _imod(row, seq))   # causal + same-batch

        hcol = _idiv(jax.lax.broadcasted_iota(jnp.int32, (HC, D), 0), N)
        hdim = _idiv(jax.lax.broadcasted_iota(jnp.int32, (HC, D), 1), HEAD_DIM)
        hm = (hcol == hdim).astype(jnp.float32)            # (HC, D) head-block mask

        # ---- causal multi-head self-attention (all batches & heads at once) -
        sa_w = wpack_ref[0, :, WPACK_SA_W_OFF:WPACK_SA_W_OFF + QKV_PAD]
        qkv = jnp.dot(xb, sa_w,
                      preferred_element_type=jnp.float32) + vseg(OFF_SA_B, QKV_PAD)
        q = qkv[:, 0:D]              # 1/sqrt(head_dim) already folded into weights
        k = qkv[:, D:2 * D]
        v = qkv[:, 2 * D:3 * D]

        k_big = jnp.tile(k, (HEADS, 1)) * hm               # (HC, D)
        v_big = jnp.tile(v, (HEADS, 1)) * hm               # (HC, D)

        # s[i, h*N + j] = q_h[i] . k_h[j]   -> lane-dense (N, HC) score slab
        s = jnp.einsum('nd,md->nm', q, k_big,
                       preferred_element_type=jnp.float32)
        s = jnp.where(valid, s, NEG_INF)
        # Global row max >= per-head max; per-head softmax stays exact as long
        # as exp(head_max - row_max) does not underflow (scores are O(1) here).
        s = s - jnp.max(s, axis=-1, keepdims=True)
        p = jnp.exp(s)
        ctx = jnp.dot(p, v_big, preferred_element_type=jnp.float32)   # (N, D)
        denom = jnp.dot(p, hm, preferred_element_type=jnp.float32)    # per-head sums
        ctx = ctx * pl.reciprocal(denom, approx=True)

        sa_wo = wpack_ref[0, :, WPACK_SA_WO_OFF:WPACK_SA_WO_OFF + D]
        sa_out = jnp.dot(ctx.astype(jnp.bfloat16), sa_wo,
                         preferred_element_type=jnp.float32) + vseg(OFF_SA_BO)
        x = _layer_norm(x + sa_out, vseg(OFF_G1), vseg(OFF_BT1))

        # ---- cross-attention with memory == zeros: context == b_v for every
        #      query, so the whole block is one precomputed (1, D) add (exact).
        x = _layer_norm(x + vseg(OFF_CA_ADD), vseg(OFF_G2), vseg(OFF_BT2))

        # ---- feed forward (ReLU); w2 stored (F, D) so no wide transpose -----
        w1 = wpack_ref[0, :, WPACK_W1_OFF:WPACK_W1_OFF + FFN]
        h1 = jnp.dot(x.astype(jnp.bfloat16), w1,
                     preferred_element_type=jnp.float32) + vseg(OFF_B1, FFN)
        h1 = jnp.maximum(h1, 0.0)
        ff = jnp.dot(h1.astype(jnp.bfloat16), w2_ref[0],
                     preferred_element_type=jnp.float32) + vseg(OFF_B2)
        x = _layer_norm(x + ff, vseg(OFF_G3), vseg(OFF_BT3))

        act_ref[...] = x

        @pl.when(layer == pl.num_programs(0) - 1)
        def _():
            logits_ref[...] = jnp.dot(x.astype(jnp.bfloat16), w_out_ref[...],
                                      preferred_element_type=jnp.float32) + b_out_ref[...]

    return kernel


def _run_fused(x2d, prep, batch, seq):
    N = batch * seq
    HC = HEADS * N
    D, F = HIDDEN, FFN
    vpad = prep["w_out"].shape[1]
    wpack_w = prep["wpack"].shape[2]
    vec_w = prep["vec"].shape[2]

    operands = (x2d, prep["wpack"], prep["w2"], prep["vec"],
                prep["w_out"], prep["b_out"])

    in_specs = [
        pl.BlockSpec((N, D), lambda l: (0, 0)),              # x0 (DMA'd once)
        pl.BlockSpec((1, D, wpack_w), lambda l: (l, 0, 0)),  # packed bf16 weights
        pl.BlockSpec((1, F, D), lambda l: (l, 0, 0)),        # linear2 (F, D) bf16
        pl.BlockSpec((1, 1, vec_w), lambda l: (l, 0, 0)),    # packed f32 vectors
        pl.BlockSpec((D, vpad), lambda l: (0, 0)),           # w_out (bf16)
        pl.BlockSpec((1, vpad), lambda l: (0, 0)),           # b_out
    ]

    flops = NUM_LAYERS * 2 * N * (D * QKV_PAD + D * HC + 2 * HC * D
                                  + D * D + 2 * D * F) + 2 * N * D * vpad
    bytes_accessed = sum(int(op.size) * op.dtype.itemsize for op in operands) \
        + N * vpad * 4
    cost = pl.CostEstimate(flops=int(flops),
                           transcendentals=int(NUM_LAYERS * N * (HC + 3)),
                           bytes_accessed=int(bytes_accessed))

    # TODO(synk): on v7x, collapsing the layer grid into one step (fori_loop over
    # resident stacked weights) saves ~5 grid-step overheads; kept pipelined here
    # since it is the better/neutral choice on v5e/v6e and correct everywhere.
    return pl.pallas_call(
        _make_kernel(batch, seq),
        out_shape=jax.ShapeDtypeStruct((N, vpad), jnp.float32),
        grid=(NUM_LAYERS,),
        in_specs=in_specs,
        out_specs=pl.BlockSpec((N, vpad), lambda l: (0, 0)),
        scratch_shapes=[pltpu.VMEM((N, D), jnp.float32)],
        compiler_params=pltpu.CompilerParams(dimension_semantics=("arbitrary",)),
        cost_estimate=cost,
    )(*operands)


# ----------------------------------------------------------------------------
# Parameters
# ----------------------------------------------------------------------------
def _positional_encoding(max_len, d_model):
    position = jnp.arange(max_len, dtype=jnp.float32)[:, None]
    div_term = jnp.exp(jnp.arange(0, d_model, 2, dtype=jnp.float32)
                       * (-math.log(10000.0) / d_model))
    pe = jnp.zeros((max_len, d_model), dtype=jnp.float32)
    pe = pe.at[:, 0::2].set(jnp.sin(position * div_term))
    pe = pe.at[:, 1::2].set(jnp.cos(position * div_term))
    return pe


def init_params(key, vocab_size):
    D, F = HIDDEN, FFN
    k_emb, k_out, k_layers = jax.random.split(key, 3)

    def nrm(k, shape, scale=0.02):
        return scale * jax.random.normal(k, shape, dtype=jnp.float32)

    params = {
        "embedding": nrm(k_emb, (vocab_size, D), 1.0),
        "pe": _positional_encoding(5000, D),
    }
    kw, kb = jax.random.split(k_out)
    params["w_out"] = nrm(kw, (D, vocab_size))
    params["b_out"] = nrm(kb, (1, vocab_size))

    ones_d = jnp.ones((1, D), jnp.float32)
    zeros_d = jnp.zeros((1, D), jnp.float32)
    layers = []
    for lk in jax.random.split(k_layers, NUM_LAYERS):
        ks = jax.random.split(lk, 11)
        layers.append((
            nrm(ks[0], (D, 3 * D)),    # 0  self-attn in_proj weight (in, out)
            nrm(ks[1], (1, 3 * D)),    # 1  self-attn in_proj bias
            nrm(ks[2], (D, D)),        # 2  self-attn out_proj weight
            nrm(ks[3], (1, D)),        # 3  self-attn out_proj bias
            nrm(ks[4], (1, 3 * D)),    # 4  cross-attn in_proj bias (only b_v live)
            nrm(ks[5], (D, D)),        # 5  cross-attn out_proj weight
            nrm(ks[6], (1, D)),        # 6  cross-attn out_proj bias
            nrm(ks[7], (D, F)),        # 7  linear1 weight (in, out)
            nrm(ks[8], (1, F)),        # 8  linear1 bias
            nrm(ks[9], (F, D)),        # 9  linear2 weight (in, out)
            nrm(ks[10], (1, D)),       # 10 linear2 bias
            ones_d, zeros_d,           # 11,12 norm1 gamma / beta
            ones_d, zeros_d,           # 13,14 norm2 gamma / beta
            ones_d, zeros_d,           # 15,16 norm3 gamma / beta
        ))
    params["layers"] = layers
    return params


def prepare_params(params, vocab_size):
    """Stack per-layer params, fold scales, pack into 3 stacked operands."""
    D, F = HIDDEN, FFN
    layers = params["layers"]

    def stack(i):
        return jnp.stack([lp[i] for lp in layers], axis=0)

    sa_w, sa_b = stack(0), stack(1)
    sa_wo, sa_bo = stack(2), stack(3)
    ca_b, ca_wo, ca_bo = stack(4), stack(5), stack(6)
    w1, b1 = stack(7), stack(8)
    w2, b2 = stack(9), stack(10)                              # (L, F, D), (L, 1, D)
    g1, bt1, g2, bt2, g3, bt3 = (stack(i) for i in range(11, 17))

    # Fold 1/sqrt(head_dim) into the q projection, then pad qkv width to 128.
    scale = 1.0 / math.sqrt(HEAD_DIM)
    sa_w = sa_w.at[:, :, :D].multiply(scale)
    sa_b = sa_b.at[:, :, :D].multiply(scale)
    sa_w = jnp.pad(sa_w, ((0, 0), (0, 0), (0, QKV_PAD - 3 * D)))
    sa_b = jnp.pad(sa_b, ((0, 0), (0, 0), (0, QKV_PAD - 3 * D)))

    # Cross-attention with memory == zeros: context == b_v (exact, eval mode,
    # memory length >= 1)  =>  contribution is (b_v @ W_o + b_o), one (1, D) row.
    bv = ca_b[:, :, 2 * D:3 * D]
    ca_add = jnp.einsum('lij,ljk->lik', bv, ca_wo) + ca_bo     # (L, 1, D)

    # Packed bf16 weight slab: [sa_w | sa_wo(pad->128) | w1], all D sublanes.
    sa_wo_p = jnp.pad(sa_wo, ((0, 0), (0, 0), (0, 128 - D)))
    wpack = jnp.concatenate([sa_w, sa_wo_p, w1], axis=2).astype(jnp.bfloat16)
    assert wpack.shape[2] == WPACK_WIDTH

    # Packed f32 per-layer vector: every segment starts on a 128-lane boundary.
    def seg(a, width=128):
        return jnp.pad(a, ((0, 0), (0, 0), (0, width - a.shape[2])))
    vec = jnp.concatenate([
        seg(sa_b, QKV_PAD),
        seg(sa_bo), seg(ca_add), seg(b2),
        seg(g1), seg(bt1), seg(g2), seg(bt2), seg(g3), seg(bt3),
        b1,
    ], axis=2)
    assert vec.shape[2] == VEC_WIDTH

    vpad = ((vocab_size + 127) // 128) * 128
    w_out = jnp.pad(params["w_out"], ((0, 0), (0, vpad - vocab_size)))
    b_out = jnp.pad(params["b_out"], ((0, 0), (0, vpad - vocab_size)))

    return {
        "embedding": params["embedding"], "pe": params["pe"], "vocab": vocab_size,
        "wpack": wpack,                       # (L, D, 256+F) bf16
        "w2": w2.astype(jnp.bfloat16),        # (L, F, D)     bf16
        "vec": vec,                           # (L, 1, VEC_WIDTH) f32
        "w_out": w_out.astype(jnp.bfloat16),  # (D, vpad)     bf16
        "b_out": b_out,                       # (1, vpad)     f32
    }


# ----------------------------------------------------------------------------
# Forward pass
# ----------------------------------------------------------------------------
def midi_decoder_forward(tokens, prep, tgt_key_padding_mask=None):
    if tgt_key_padding_mask is not None:
        # TODO(synk): tgt_key_padding_mask not implemented (reference main passes None)
        raise NotImplementedError("tgt_key_padding_mask is not supported")
    B, S = tokens.shape
    N = B * S
    emb = jnp.take(prep["embedding"], tokens, axis=0)                    # (B, S, D)
    x2d = (emb + prep["pe"][:S][None]).reshape(N, HIDDEN).astype(jnp.float32)
    logits = _run_fused(x2d, prep, B, S)                                 # (N, vpad)
    vocab = prep["vocab"]
    return logits[:, :vocab].reshape(B, S, vocab)


# Pure-JAX reference with matched precision (bf16 weights / f32 accumulation),
# used only for the runtime self-check in __main__.
def _reference_forward(tokens, prep, batch, seq):
    D, F, H, Dh = HIDDEN, FFN, HEADS, HEAD_DIM
    hi = jax.lax.Precision.HIGHEST
    wpack, w2s, vec = prep["wpack"], prep["w2"], prep["vec"]

    def vseg(l, off, width=D):
        return vec[l, 0, off:off + width]

    emb = jnp.take(prep["embedding"], tokens, axis=0)
    x = (emb + prep["pe"][:seq][None]).astype(jnp.float32)
    causal = jnp.triu(jnp.ones((seq, seq), bool), k=1)
    for l in range(NUM_LAYERS):
        sa_w = wpack[l, :, WPACK_SA_W_OFF:WPACK_SA_W_OFF + 3 * D]
        sa_wo = wpack[l, :, WPACK_SA_WO_OFF:WPACK_SA_WO_OFF + D]
        w1 = wpack[l, :, WPACK_W1_OFF:WPACK_W1_OFF + F]
        xb = x.astype(jnp.bfloat16)
        qkv = jnp.einsum('bsd,de->bse', xb, sa_w,
                         preferred_element_type=jnp.float32) + vseg(l, OFF_SA_B, 3 * D)
        q = qkv[..., 0:D].reshape(batch, seq, H, Dh)
        k = qkv[..., D:2 * D].reshape(batch, seq, H, Dh)
        v = qkv[..., 2 * D:3 * D].reshape(batch, seq, H, Dh)
        s = jnp.einsum('bqhd,bkhd->bhqk', q, k, precision=hi,
                       preferred_element_type=jnp.float32)
        s = jnp.where(causal[None, None], NEG_INF, s)
        p = jax.nn.softmax(s, axis=-1)
        ctx = jnp.einsum('bhqk,bkhd->bqhd', p, v, precision=hi,
                         preferred_element_type=jnp.float32).reshape(batch, seq, D)
        sa = jnp.einsum('bsd,de->bse', ctx.astype(jnp.bfloat16), sa_wo,
                        preferred_element_type=jnp.float32) + vseg(l, OFF_SA_BO)
        x = _layer_norm(x + sa, vseg(l, OFF_G1), vseg(l, OFF_BT1))
        x = _layer_norm(x + vseg(l, OFF_CA_ADD), vseg(l, OFF_G2), vseg(l, OFF_BT2))
        h1 = jnp.maximum(
            jnp.einsum('bsd,df->bsf', x.astype(jnp.bfloat16), w1,
                       preferred_element_type=jnp.float32) + vseg(l, OFF_B1, F), 0.0)
        ff = jnp.einsum('bsf,fd->bsd', h1.astype(jnp.bfloat16), w2s[l],
                        preferred_element_type=jnp.float32) + vseg(l, OFF_B2)
        x = _layer_norm(x + ff, vseg(l, OFF_G3), vseg(l, OFF_BT3))
    logits = jnp.einsum('bsd,dv->bsv', x.astype(jnp.bfloat16), prep["w_out"],
                        preferred_element_type=jnp.float32) + prep["b_out"][0]
    return logits[..., :prep["vocab"]]


if __name__ == "__main__":
    VOCAB = 64
    B, S = 2, 8

    key = jax.random.PRNGKey(0)
    k_tok, k_par = jax.random.split(key)
    tokens = jax.random.randint(k_tok, (B, S), 0, VOCAB, dtype=jnp.int32)
    params = init_params(k_par, VOCAB)
    prep = prepare_params(params, VOCAB)

    logits = midi_decoder_forward(tokens, prep)
    logits = jax.block_until_ready(logits)

    assert logits.shape == (B, S, VOCAB), logits.shape
    assert logits.dtype == jnp.float32
    assert bool(jnp.all(jnp.isfinite(logits)))

    ref = _reference_forward(tokens, prep, B, S)
    err = float(jnp.max(jnp.abs(logits - ref)))
    assert err < 5e-3, f"kernel vs reference mismatch: max abs err = {err}"

    print("KERNEL_OK")
</pallas_src>

<mosaic_0001>
module attributes {stable_mosaic.version = 11 : i64} {
  func.func @kernel(%arg0: i32, %arg1: memref<16x32xf32, #tpu.memory_space<vmem>>, %arg2: memref<1x32x2304xbf16, #tpu.memory_space<vmem>>, %arg3: memref<1x2048x32xbf16, #tpu.memory_space<vmem>>, %arg4: memref<1x1x3328xf32, #tpu.memory_space<vmem>>, %arg5: memref<32x128xbf16, #tpu.memory_space<vmem>>, %arg6: memref<1x128xf32, #tpu.memory_space<vmem>>, %arg7: memref<16x128xf32, #tpu.memory_space<vmem>>, %arg8: memref<16x32xf32, #tpu.memory_space<vmem>>) attributes {dimension_semantics = [#tpu.dimension_semantics<arbitrary>], iteration_bounds = array<i64: 6>, scalar_prefetch = 0 : i64, scratch_operands = 1 : i64, tpu.core_type = #tpu.core_type<tc>, window_params = [{pipeline_mode = #tpu.pipeline_mode<synchronous>, transform_indices = @transform_0, window_bounds = array<i64: 16, 32>}, {transform_indices = @transform_1, window_bounds = array<i64: 1, 32, 2304>}, {transform_indices = @transform_2, window_bounds = array<i64: 1, 2048, 32>}, {transform_indices = @transform_3, window_bounds = array<i64: 1, 1, 3328>}, {pipeline_mode = #tpu.pipeline_mode<synchronous>, transform_indices = @transform_4, window_bounds = array<i64: 32, 128>}, {pipeline_mode = #tpu.pipeline_mode<synchronous>, transform_indices = @transform_5, window_bounds = array<i64: 1, 128>}, {pipeline_mode = #tpu.pipeline_mode<synchronous>, transform_indices = @transform_6, window_bounds = array<i64: 16, 128>}]} {
    %c0_i32 = arith.constant 0 : i32
    %0 = arith.cmpi eq, %arg0, %c0_i32 : i32
    %1 = arith.extui %0 : i1 to i32
    %c0_i32_0 = arith.constant 0 : i32
    %2 = arith.cmpi ne, %1, %c0_i32_0 : i32
    scf.if %2 {
      %c0_66 = arith.constant 0 : index
      %c0_67 = arith.constant 0 : index
      %163 = vector.load %arg1[%c0_66, %c0_67] : memref<16x32xf32, #tpu.memory_space<vmem>>, vector<16x32xf32>
      %c0_68 = arith.constant 0 : index
      %c0_69 = arith.constant 0 : index
      %164 = vector.load %arg8[%c0_68, %c0_69] : memref<16x32xf32, #tpu.memory_space<vmem>>, vector<16x32xf32>
      tpu.vector_store %arg8[%c0_68, %c0_69], %163 {strides = array<i32>} : memref<16x32xf32, #tpu.memory_space<vmem>>, vector<16x32xf32>,
    } else {
    }
    %c0 = arith.constant 0 : index
    %c0_1 = arith.constant 0 : index
    %3 = vector.load %arg8[%c0, %c0_1] : memref<16x32xf32, #tpu.memory_space<vmem>>, vector<16x32xf32>
    %4 = arith.truncf %3 : vector<16x32xf32> to vector<16x32xbf16>
    %5 = tpu.iota {dimensions = array<i32: 0>} : vector<16x128xi32>
    %6 = tpu.iota {dimensions = array<i32: 1>} : vector<16x128xi32>
    %c15_i32 = arith.constant 15 : i32
    %7 = vector.broadcast %c15_i32 : i32 to vector<16x128xi32>
    %8 = arith.andi %6, %7 : vector<16x128xi32>
    %c3_i32 = arith.constant 3 : i32
    %9 = vector.broadcast %c3_i32 : i32 to vector<16x128xi32>
    %10 = arith.shrsi %8, %9 : vector<16x128xi32>
    %c3_i32_2 = arith.constant 3 : i32
    %11 = vector.broadcast %c3_i32_2 : i32 to vector<16x128xi32>
    %12 = arith.shrsi %5, %11 : vector<16x128xi32>
    %13 = arith.cmpi eq, %10, %12 : vector<16x128xi32>
    %c7_i32 = arith.constant 7 : i32
    %14 = vector.broadcast %c7_i32 : i32 to vector<16x128xi32>
    %15 = arith.andi %8, %14 : vector<16x128xi32>
    %c7_i32_3 = arith.constant 7 : i32
    %16 = vector.broadcast %c7_i32_3 : i32 to vector<16x128xi32>
    %17 = arith.andi %5, %16 : vector<16x128xi32>
    %18 = arith.cmpi sle, %15, %17 : vector<16x128xi32>
    %19 = arith.andi %13, %18 : vector<16x128xi1>
    %20 = tpu.iota {dimensions = array<i32: 0>} : vector<128x32xi32>
    %c4_i32 = arith.constant 4 : i32
    %21 = vector.broadcast %c4_i32 : i32 to vector<128x32xi32>
    %22 = arith.shrsi %20, %21 : vector<128x32xi32>
    %23 = tpu.iota {dimensions = array<i32: 1>} : vector<128x32xi32>
    %c2_i32 = arith.constant 2 : i32
    %24 = vector.broadcast %c2_i32 : i32 to vector<128x32xi32>
    %25 = arith.shrsi %23, %24 : vector<128x32xi32>
    %26 = arith.cmpi eq, %22, %25 : vector<128x32xi32>
    %27 = arith.extui %26 : vector<128x32xi1> to vector<128x32xi32>
    %28 = arith.sitofp %27 : vector<128x32xi32> to vector<128x32xf32>
    %c0_4 = arith.constant 0 : index
    %c0_5 = arith.constant 0 : index
    %c0_6 = arith.constant 0 : index
    %29 = vector.load %arg2[%c0_4, %c0_5, %c0_6] : memref<1x32x2304xbf16, #tpu.memory_space<vmem>>, vector<1x32x128xbf16>
    %30 = vector.shape_cast %29 : vector<1x32x128xbf16> to vector<32x128xbf16>
    %cst = arith.constant dense<0.000000e+00> : vector<16x128xf32>
    %31 = tpu.matmul %4, %30, %cst {dimension_numbers = #tpu.dot_dimension_numbers<[1], [0], [0], [1], [0, 0, 1, 1], [], []>} : vector<16x32xbf16>, vector<32x128xbf16>, vector<16x128xf32> -> vector<16x128xf32>
    %c0_7 = arith.constant 0 : index
    %c0_8 = arith.constant 0 : index
    %c0_9 = arith.constant 0 : index
    %32 = vector.load %arg4[%c0_7, %c0_8, %c0_9] : memref<1x1x3328xf32, #tpu.memory_space<vmem>>, vector<1x1x128xf32>
    %33 = vector.shape_cast %32 : vector<1x1x128xf32> to vector<1x128xf32>
    %34 = vector.broadcast %33 : vector<1x128xf32> to vector<16x128xf32>
    %35 = arith.addf %31, %34 : vector<16x128xf32>
    %36 = vector.extract_strided_slice %35 {offsets = [0, 0], sizes = [16, 32], strides = [1, 1]} : vector<16x128xf32> to vector<16x32xf32>
    %37 = vector.extract_strided_slice %35 {offsets = [0, 32], sizes = [16, 32], strides = [1, 1]} : vector<16x128xf32> to vector<16x32xf32>
    %38 = vector.extract_strided_slice %35 {offsets = [0, 64], sizes = [16, 32], strides = [1, 1]} : vector<16x128xf32> to vector<16x32xf32>
    %39 = tpu.concatenate %37, %37, %37, %37, %37, %37, %37, %37 in 0 : vector<16x32xf32>, vector<16x32xf32>, vector<16x32xf32>, vector<16x32xf32>, vector<16x32xf32>, vector<16x32xf32>, vector<16x32xf32>, vector<16x32xf32> -> vector<128x32xf32>
    %40 = arith.mulf %39, %28 : vector<128x32xf32>
    %41 = tpu.concatenate %38, %38, %38, %38, %38, %38, %38, %38 in 0 : vector<16x32xf32>, vector<16x32xf32>, vector<16x32xf32>, vector<16x32xf32>, vector<16x32xf32>, vector<16x32xf32>, vector<16x32xf32>, vector<16x32xf32> -> vector<128x32xf32>
    %42 = arith.mulf %41, %28 : vector<128x32xf32>
    "tpu.trace_start"() <{level = 10 : i32, message = "nd,md->nm"}> : () -> ()
    %cst_10 = arith.constant dense<0.000000e+00> : vector<16x128xf32>
    %43 = tpu.matmul %36, %40, %cst_10 {dimension_numbers = #tpu.dot_dimension_numbers<[1], [1], [0], [0], [0, 0, 1, 0], [], []>} : vector<16x32xf32>, vector<128x32xf32>, vector<16x128xf32> -> vector<16x128xf32>
    %cst_11 = arith.constant -1.000000e+30 : f32
    "tpu.trace_stop"() : () -> ()
    %44 = vector.broadcast %cst_11 : f32 to vector<16x128xf32>
    %45 = arith.select %19, %43, %44 : vector<16x128xi1>, vector<16x128xf32>
    %cst_12 = arith.constant dense<0xFF800000> : vector<16xf32>
    %46 = vector.multi_reduction <maximumf>, %45, %cst_12 [1] : vector<16x128xf32> to vector<16xf32>
    %47 = vector.shape_cast %46 : vector<16xf32> to vector<16x1xf32>
    %48 = vector.broadcast %47 : vector<16x1xf32> to vector<16x128xf32>
    %49 = arith.subf %45, %48 : vector<16x128xf32>
    %50 = math.exp %49 : vector<16x128xf32>
    %cst_13 = arith.constant dense<0.000000e+00> : vector<16x32xf32>
    %51 = tpu.matmul %50, %42, %cst_13 {dimension_numbers = #tpu.dot_dimension_numbers<[1], [0], [0], [1], [0, 0, 1, 1], [], []>} : vector<16x128xf32>, vector<128x32xf32>, vector<16x32xf32> -> vector<16x32xf32>
    %cst_14 = arith.constant dense<0.000000e+00> : vector<16x32xf32>
    %52 = tpu.matmul %50, %28, %cst_14 {dimension_numbers = #tpu.dot_dimension_numbers<[1], [0], [0], [1], [0, 0, 1, 1], [], []>} : vector<16x128xf32>, vector<128x32xf32>, vector<16x32xf32> -> vector<16x32xf32>
    %53 = tpu.reciprocal %52 {approx = true} : vector<16x32xf32> -> vector<16x32xf32>
    %54 = arith.mulf %51, %53 : vector<16x32xf32>
    %c0_15 = arith.constant 0 : index
    %c0_16 = arith.constant 0 : index
    %c128 = arith.constant 128 : index
    %55 = vector.load %arg2[%c0_15, %c0_16, %c128] : memref<1x32x2304xbf16, #tpu.memory_space<vmem>>, vector<1x32x32xbf16>
    %56 = vector.shape_cast %55 : vector<1x32x32xbf16> to vector<32x32xbf16>
    %57 = arith.truncf %54 : vector<16x32xf32> to vector<16x32xbf16>
    %cst_17 = arith.constant dense<0.000000e+00> : vector<16x32xf32>
    %58 = tpu.matmul %57, %56, %cst_17 {dimension_numbers = #tpu.dot_dimension_numbers<[1], [0], [0], [1], [0, 0, 1, 1], [], []>} : vector<16x32xbf16>, vector<32x32xbf16>, vector<16x32xf32> -> vector<16x32xf32>
    %c0_18 = arith.constant 0 : index
    %c0_19 = arith.constant 0 : index
    %c128_20 = arith.constant 128 : index
    %59 = vector.load %arg4[%c0_18, %c0_19, %c128_20] : memref<1x1x3328xf32, #tpu.memory_space<vmem>>, vector<1x1x32xf32>
    %60 = vector.shape_cast %59 : vector<1x1x32xf32> to vector<1x32xf32>
    %61 = vector.broadcast %60 : vector<1x32xf32> to vector<16x32xf32>
    %62 = arith.addf %58, %61 : vector<16x32xf32>
    %63 = arith.addf %3, %62 : vector<16x32xf32>
    %c0_21 = arith.constant 0 : index
    %c0_22 = arith.constant 0 : index
    %c512 = arith.constant 512 : index
    %64 = vector.load %arg4[%c0_21, %c0_22, %c512] : memref<1x1x3328xf32, #tpu.memory_space<vmem>>, vector<1x1x32xf32>
    %65 = vector.shape_cast %64 : vector<1x1x32xf32> to vector<1x32xf32>
    %c0_23 = arith.constant 0 : index
    %c0_24 = arith.constant 0 : index
    %c640 = arith.constant 640 : index
    %66 = vector.load %arg4[%c0_23, %c0_24, %c640] : memref<1x1x3328xf32, #tpu.memory_space<vmem>>, vector<1x1x32xf32>
    %67 = vector.shape_cast %66 : vector<1x1x32xf32> to vector<1x32xf32>
    %cst_25 = arith.constant dense<0.000000e+00> : vector<16xf32>
    %68 = vector.multi_reduction <add>, %63, %cst_25 [1] : vector<16x32xf32> to vector<16xf32>
    %69 = vector.shape_cast %68 : vector<16xf32> to vector<16x1xf32>
    %cst_26 = arith.constant 3.200000e+01 : f32
    %70 = vector.broadcast %cst_26 : f32 to vector<16x1xf32>
    %71 = arith.divf %69, %70 : vector<16x1xf32>
    %72 = vector.broadcast %71 : vector<16x1xf32> to vector<16x32xf32>
    %73 = arith.subf %63, %72 : vector<16x32xf32>
    %74 = arith.mulf %73, %73 : vector<16x32xf32>
    %cst_27 = arith.constant dense<0.000000e+00> : vector<16xf32>
    %75 = vector.multi_reduction <add>, %74, %cst_27 [1] : vector<16x32xf32> to vector<16xf32>
    %76 = vector.shape_cast %75 : vector<16xf32> to vector<16x1xf32>
    %cst_28 = arith.constant 3.200000e+01 : f32
    %77 = vector.broadcast %cst_28 : f32 to vector<16x1xf32>
    %78 = arith.divf %76, %77 : vector<16x1xf32>
    %cst_29 = arith.constant 9.99999974E-6 : f32
    %79 = vector.broadcast %cst_29 : f32 to vector<16x1xf32>
    %80 = arith.addf %78, %79 : vector<16x1xf32>
    %81 = math.rsqrt %80 : vector<16x1xf32>
    %82 = vector.broadcast %81 : vector<16x1xf32> to vector<16x32xf32>
    %83 = arith.mulf %73, %82 : vector<16x32xf32>
    %84 = vector.broadcast %65 : vector<1x32xf32> to vector<16x32xf32>
    %85 = arith.mulf %83, %84 : vector<16x32xf32>
    %86 = vector.broadcast %67 : vector<1x32xf32> to vector<16x32xf32>
    %87 = arith.addf %85, %86 : vector<16x32xf32>
    %c0_30 = arith.constant 0 : index
    %c0_31 = arith.constant 0 : index
    %c256 = arith.constant 256 : index
    %88 = vector.load %arg4[%c0_30, %c0_31, %c256] : memref<1x1x3328xf32, #tpu.memory_space<vmem>>, vector<1x1x32xf32>
    %89 = vector.shape_cast %88 : vector<1x1x32xf32> to vector<1x32xf32>
    %90 = vector.broadcast %89 : vector<1x32xf32> to vector<16x32xf32>
    %91 = arith.addf %87, %90 : vector<16x32xf32>
    %c0_32 = arith.constant 0 : index
    %c0_33 = arith.constant 0 : index
    %c768 = arith.constant 768 : index
    %92 = vector.load %arg4[%c0_32, %c0_33, %c768] : memref<1x1x3328xf32, #tpu.memory_space<vmem>>, vector<1x1x32xf32>
    %93 = vector.shape_cast %92 : vector<1x1x32xf32> to vector<1x32xf32>
    %c0_34 = arith.constant 0 : index
    %c0_35 = arith.constant 0 : index
    %c896 = arith.constant 896 : index
    %94 = vector.load %arg4[%c0_34, %c0_35, %c896] : memref<1x1x3328xf32, #tpu.memory_space<vmem>>, vector<1x1x32xf32>
    %95 = vector.shape_cast %94 : vector<1x1x32xf32> to vector<1x32xf32>
    %cst_36 = arith.constant dense<0.000000e+00> : vector<16xf32>
    %96 = vector.multi_reduction <add>, %91, %cst_36 [1] : vector<16x32xf32> to vector<16xf32>
    %97 = vector.shape_cast %96 : vector<16xf32> to vector<16x1xf32>
    %cst_37 = arith.constant 3.200000e+01 : f32
    %98 = vector.broadcast %cst_37 : f32 to vector<16x1xf32>
    %99 = arith.divf %97, %98 : vector<16x1xf32>
    %100 = vector.broadcast %99 : vector<16x1xf32> to vector<16x32xf32>
    %101 = arith.subf %91, %100 : vector<16x32xf32>
    %102 = arith.mulf %101, %101 : vector<16x32xf32>
    %cst_38 = arith.constant dense<0.000000e+00> : vector<16xf32>
    %103 = vector.multi_reduction <add>, %102, %cst_38 [1] : vector<16x32xf32> to vector<16xf32>
    %104 = vector.shape_cast %103 : vector<16xf32> to vector<16x1xf32>
    %cst_39 = arith.constant 3.200000e+01 : f32
    %105 = vector.broadcast %cst_39 : f32 to vector<16x1xf32>
    %106 = arith.divf %104, %105 : vector<16x1xf32>
    %cst_40 = arith.constant 9.99999974E-6 : f32
    %107 = vector.broadcast %cst_40 : f32 to vector<16x1xf32>
    %108 = arith.addf %106, %107 : vector<16x1xf32>
    %109 = math.rsqrt %108 : vector<16x1xf32>
    %110 = vector.broadcast %109 : vector<16x1xf32> to vector<16x32xf32>
    %111 = arith.mulf %101, %110 : vector<16x32xf32>
    %112 = vector.broadcast %93 : vector<1x32xf32> to vector<16x32xf32>
    %113 = arith.mulf %111, %112 : vector<16x32xf32>
    %114 = vector.broadcast %95 : vector<1x32xf32> to vector<16x32xf32>
    %115 = arith.addf %113, %114 : vector<16x32xf32>
    %c0_41 = arith.constant 0 : index
    %c0_42 = arith.constant 0 : index
    %c256_43 = arith.constant 256 : index
    %116 = vector.load %arg2[%c0_41, %c0_42, %c256_43] : memref<1x32x2304xbf16, #tpu.memory_space<vmem>>, vector<1x32x2048xbf16>
    %117 = vector.shape_cast %116 : vector<1x32x2048xbf16> to vector<32x2048xbf16>
    %118 = arith.truncf %115 : vector<16x32xf32> to vector<16x32xbf16>
    %cst_44 = arith.constant dense<0.000000e+00> : vector<16x2048xf32>
    %119 = tpu.matmul %118, %117, %cst_44 {dimension_numbers = #tpu.dot_dimension_numbers<[1], [0], [0], [1], [0, 0, 1, 1], [], []>} : vector<16x32xbf16>, vector<32x2048xbf16>, vector<16x2048xf32> -> vector<16x2048xf32>
    %c0_45 = arith.constant 0 : index
    %c0_46 = arith.constant 0 : index
    %c1280 = arith.constant 1280 : index
    %120 = vector.load %arg4[%c0_45, %c0_46, %c1280] : memref<1x1x3328xf32, #tpu.memory_space<vmem>>, vector<1x1x2048xf32>
    %121 = vector.shape_cast %120 : vector<1x1x2048xf32> to vector<1x2048xf32>
    %122 = vector.broadcast %121 : vector<1x2048xf32> to vector<16x2048xf32>
    %123 = arith.addf %119, %122 : vector<16x2048xf32>
    %cst_47 = arith.constant 0.000000e+00 : f32
    %124 = vector.broadcast %cst_47 : f32 to vector<16x2048xf32>
    %125 = arith.maximumf %123, %124 : vector<16x2048xf32>
    %126 = arith.truncf %125 : vector<16x2048xf32> to vector<16x2048xbf16>
    %c0_48 = arith.constant 0 : index
    %c0_49 = arith.constant 0 : index
    %c0_50 = arith.constant 0 : index
    %127 = vector.load %arg3[%c0_48, %c0_49, %c0_50] : memref<1x2048x32xbf16, #tpu.memory_space<vmem>>, vector<1x2048x32xbf16>
    %128 = vector.shape_cast %127 : vector<1x2048x32xbf16> to vector<2048x32xbf16>
    %cst_51 = arith.constant dense<0.000000e+00> : vector<16x32xf32>
    %129 = tpu.matmul %126, %128, %cst_51 {dimension_numbers = #tpu.dot_dimension_numbers<[1], [0], [0], [1], [0, 0, 1, 1], [], []>} : vector<16x2048xbf16>, vector<2048x32xbf16>, vector<16x32xf32> -> vector<16x32xf32>
    %c0_52 = arith.constant 0 : index
    %c0_53 = arith.constant 0 : index
    %c384 = arith.constant 384 : index
    %130 = vector.load %arg4[%c0_52, %c0_53, %c384] : memref<1x1x3328xf32, #tpu.memory_space<vmem>>, vector<1x1x32xf32>
    %131 = vector.shape_cast %130 : vector<1x1x32xf32> to vector<1x32xf32>
    %132 = vector.broadcast %131 : vector<1x32xf32> to vector<16x32xf32>
    %133 = arith.addf %129, %132 : vector<16x32xf32>
    %134 = arith.addf %115, %133 : vector<16x32xf32>
    %c0_54 = arith.constant 0 : index
    %c0_55 = arith.constant 0 : index
    %c1024 = arith.constant 1024 : index
    %135 = vector.load %arg4[%c0_54, %c0_55, %c1024] : memref<1x1x3328xf32, #tpu.memory_space<vmem>>, vector<1x1x32xf32>
    %136 = vector.shape_cast %135 : vector<1x1x32xf32> to vector<1x32xf32>
    %c0_56 = arith.constant 0 : index
    %c0_57 = arith.constant 0 : index
    %c1152 = arith.constant 1152 : index
    %137 = vector.load %arg4[%c0_56, %c0_57, %c1152] : memref<1x1x3328xf32, #tpu.memory_space<vmem>>, vector<1x1x32xf32>
    %138 = vector.shape_cast %137 : vector<1x1x32xf32> to vector<1x32xf32>
    %cst_58 = arith.constant dense<0.000000e+00> : vector<16xf32>
    %139 = vector.multi_reduction <add>, %134, %cst_58 [1] : vector<16x32xf32> to vector<16xf32>
    %140 = vector.shape_cast %139 : vector<16xf32> to vector<16x1xf32>
    %cst_59 = arith.constant 3.200000e+01 : f32
    %141 = vector.broadcast %cst_59 : f32 to vector<16x1xf32>
    %142 = arith.divf %140, %141 : vector<16x1xf32>
    %143 = vector.broadcast %142 : vector<16x1xf32> to vector<16x32xf32>
    %144 = arith.subf %134, %143 : vector<16x32xf32>
    %145 = arith.mulf %144, %144 : vector<16x32xf32>
    %cst_60 = arith.constant dense<0.000000e+00> : vector<16xf32>
    %146 = vector.multi_reduction <add>, %145, %cst_60 [1] : vector<16x32xf32> to vector<16xf32>
    %147 = vector.shape_cast %146 : vector<16xf32> to vector<16x1xf32>
    %cst_61 = arith.constant 3.200000e+01 : f32
    %148 = vector.broadcast %cst_61 : f32 to vector<16x1xf32>
    %149 = arith.divf %147, %148 : vector<16x1xf32>
    %cst_62 = arith.constant 9.99999974E-6 : f32
    %150 = vector.broadcast %cst_62 : f32 to vector<16x1xf32>
    %151 = arith.addf %149, %150 : vector<16x1xf32>
    %152 = math.rsqrt %151 : vector<16x1xf32>
    %153 = vector.broadcast %152 : vector<16x1xf32> to vector<16x32xf32>
    %154 = arith.mulf %144, %153 : vector<16x32xf32>
    %155 = vector.broadcast %136 : vector<1x32xf32> to vector<16x32xf32>
    %156 = arith.mulf %154, %155 : vector<16x32xf32>
    %157 = vector.broadcast %138 : vector<1x32xf32> to vector<16x32xf32>
    %158 = arith.addf %156, %157 : vector<16x32xf32>
    %c0_63 = arith.constant 0 : index
    %c0_64 = arith.constant 0 : index
    %159 = vector.load %arg8[%c0_63, %c0_64] : memref<16x32xf32, #tpu.memory_space<vmem>>, vector<16x32xf32>
    tpu.vector_store %arg8[%c0_63, %c0_64], %158 {strides = array<i32>} : memref<16x32xf32, #tpu.memory_space<vmem>>, vector<16x32xf32>,
    %c5_i32 = arith.constant 5 : i32
    %160 = arith.cmpi eq, %arg0, %c5_i32 : i32
    %161 = arith.extui %160 : i1 to i32
    %c0_i32_65 = arith.constant 0 : i32
    %162 = arith.cmpi ne, %161, %c0_i32_65 : i32
    scf.if %162 {
      %163 = arith.truncf %158 : vector<16x32xf32> to vector<16x32xbf16>
      %c0_66 = arith.constant 0 : index
      %c0_67 = arith.constant 0 : index
      %164 = vector.load %arg5[%c0_66, %c0_67] : memref<32x128xbf16, #tpu.memory_space<vmem>>, vector<32x128xbf16>
      %cst_68 = arith.constant dense<0.000000e+00> : vector<16x128xf32>
      %165 = tpu.matmul %163, %164, %cst_68 {dimension_numbers = #tpu.dot_dimension_numbers<[1], [0], [0], [1], [0, 0, 1, 1], [], []>} : vector<16x32xbf16>, vector<32x128xbf16>, vector<16x128xf32> -> vector<16x128xf32>
      %c0_69 = arith.constant 0 : index
      %c0_70 = arith.constant 0 : index
      %166 = vector.load %arg6[%c0_69, %c0_70] : memref<1x128xf32, #tpu.memory_space<vmem>>, vector<1x128xf32>
      %167 = vector.broadcast %166 : vector<1x128xf32> to vector<16x128xf32>
      %168 = arith.addf %165, %167 : vector<16x128xf32>
      %c0_71 = arith.constant 0 : index
      %c0_72 = arith.constant 0 : index
      %169 = vector.load %arg7[%c0_71, %c0_72] : memref<16x128xf32, #tpu.memory_space<vmem>>, vector<16x128xf32>
      tpu.vector_store %arg7[%c0_71, %c0_72], %168 {strides = array<i32>} : memref<16x128xf32, #tpu.memory_space<vmem>>, vector<16x128xf32>,
    } else {
    }
    return
  }
  func.func @transform_0(%arg0: i32) -> (i32, i32) {
    %c0_i32 = arith.constant 0 : i32
    %c0_i32_0 = arith.constant 0 : i32
    %c0_i32_1 = arith.constant 0 : i32
    return %c0_i32, %c0_i32_0 : i32, i32
  }
  func.func @transform_1(%arg0: i32) -> (i32, i32, i32) {
    %c0_i32 = arith.constant 0 : i32
    %c0_i32_0 = arith.constant 0 : i32
    %c0_i32_1 = arith.constant 0 : i32
    return %arg0, %c0_i32, %c0_i32_0 : i32, i32, i32
  }
  func.func @transform_2(%arg0: i32) -> (i32, i32, i32) {
    %c0_i32 = arith.constant 0 : i32
    %c0_i32_0 = arith.constant 0 : i32
    %c0_i32_1 = arith.constant 0 : i32
    return %arg0, %c0_i32, %c0_i32_0 : i32, i32, i32
  }
  func.func @transform_3(%arg0: i32) -> (i32, i32, i32) {
    %c0_i32 = arith.constant 0 : i32
    %c0_i32_0 = arith.constant 0 : i32
    %c0_i32_1 = arith.constant 0 : i32
    return %arg0, %c0_i32, %c0_i32_0 : i32, i32, i32
  }
  func.func @transform_4(%arg0: i32) -> (i32, i32) {
    %c0_i32 = arith.constant 0 : i32
    %c0_i32_0 = arith.constant 0 : i32
    %c0_i32_1 = arith.constant 0 : i32
    return %c0_i32, %c0_i32_0 : i32, i32
  }
  func.func @transform_5(%arg0: i32) -> (i32, i32) {
    %c0_i32 = arith.constant 0 : i32
    %c0_i32_0 = arith.constant 0 : i32
    %c0_i32_1 = arith.constant 0 : i32
    return %c0_i32, %c0_i32_0 : i32, i32
  }
  func.func @transform_6(%arg0: i32) -> (i32, i32) {
    %c0_i32 = arith.constant 0 : i32
    %c0_i32_0 = arith.constant 0 : i32
    %c0_i32_1 = arith.constant 0 : i32
    return %c0_i32, %c0_i32_0 : i32, i32
  }
}

</mosaic_0001>

<llo_original>
// kernel: tpu_custom_call.1
$region0: #{tpu_custom_call.1}
  #allocation0 [shape = 'u32[]', space=smem, size = 0x4, offset = 0x4, fixed_abs, tag = 'smem constant byte address 0x4 - core index']
  #allocation1 [shape = 'u32[144,128]{1,0:T(1,128)}', space=vmem, size = 0x12000, scoped, tag = 'internal scratch']
  #allocation2 [shape = 'f32[16,32]{1,0:T(8,128)}', space=vmem, size = 0x2000, scoped, tag = 'scratch operand']
  %s0 = inlined_call_operand.vmem [shape: f32[16,32], index: 0, kind: input, shape index: {}]
  %s1 = inlined_call_operand.vmem [shape: bf16[6,32,2304], index: 1, kind: input, shape index: {}]
  %s2 = inlined_call_operand.vmem [shape: bf16[6,2048,32], index: 2, kind: input, shape index: {}]
  %s3 = inlined_call_operand.vmem [shape: f32[6,1,3328], index: 3, kind: input, shape index: {}]
  %s4 = inlined_call_operand.vmem [shape: bf16[32,128], index: 4, kind: input, shape index: {}]
  %s5 = inlined_call_operand.vmem [shape: f32[1,128], index: 5, kind: input, shape index: {}]
  %s6 = inlined_call_operand.hbm [shape: f32[16,128], index: 6, kind: output, shape index: {}]
  %s7 = sld [smem:[#allocation0]]
  $region65: #{tpu_custom_call.1} parent=0
    _
  %s9 = ssub.s32 1, %s7
  %s10 = scalar_select 0, %s9, %s7
  $region1: #{tpu_custom_call.1} parent=0
    #allocation3 [shape = 'u8[8192]{0}', space=vmem, size = 0x2000, scoped, tag = 'output window, operand 0, single buffered']
    #allocation4 [shape = 's32[2]{0}', space=sflag, size = 0x8, scoped, tag = 'scoped memory for tpu_custom_call.1']
    %11 = vsyncpa [#allocation4], 0
    loop: start=0, step=1, limit=8
    $region2: #{tpu_custom_call.1} parent=1 // loop_pre_header
      _
    $region3: #{tpu_custom_call.1} parent=1 // loop_header
      %s13 = sphi 0, %s17
      %p14 = scmp.ge.s32.totalorder %s13, 8
      %s21 = sphi 0, %s21
      %s23 = sphi 0, %s21
      %s24 = sphi 0, %s23
      %s38 = sphi 0, %s24
      %s44 = sphi 0, %s46
      %s47 = sphi 0, %s44
      %s48 = sphi 0, %s47
      %s64 = sphi 0, %s48
      %s70 = sphi 0, %s72
      %s73 = sphi 0, %s70
      %s74 = sphi 0, %s73
      %s90 = sphi 0, %s74
      %s96 = sphi 0, %s98
      %s99 = sphi 0, %s96
      %s100 = sphi 0, %s99
      %s116 = sphi 0, %s100
      %s120 = sphi 0, %s120
      %s122 = sphi 0, %s120
      %s123 = sphi 0, %s122
      %s137 = sphi 0, %s123
      %s141 = sphi 0, %s141
      %s143 = sphi 0, %s141
      %s144 = sphi 0, %s143
      %s158 = sphi 0, %s144
      %s162 = sphi 0, %s162
      %s164 = sphi 0, %s162
      %s165 = sphi 0, %s164
      %s179 = sphi 0, %s165
    $region4: #{tpu_custom_call.1} parent=1 // loop_header_branch
      %16 = sbr.rel (%p14) target = $region8
    $region5: #{tpu_custom_call.1} parent=1 // loop_body
      %s18 = ssub.s32 %s13, 1
      %s19 = ssub.s32 %s13, 2
      %s20 = sadd.s32 %s13, 1
      %s22 = sadd.s32 %s21, 1
      %p25 = scmp.eq.s32.totalorder %s13, 5
      %p26 = scmp.ne.s32.totalorder %s21, %s23
      %p27 = scmp.eq.s32.totalorder %s13, 0
      %p28 = por %p26, %p27
      %p29 = scmp.ne.s32.totalorder %s21, %s23
      %p30 = scmp.eq.s32.totalorder %s18, 5
      %p31 = por %p29, %p30
      %p32 = scmp.ne.s32.totalorder %s23, %s24
      %p33 = scmp.eq.s32.totalorder %s18, 0
      %p34 = por %p32, %p33
      %p35 = scmp.ne.s32.totalorder %s23, %s24
      %p36 = scmp.eq.s32.totalorder %s19, 5
      %p37 = por %p35, %p36
      %p39 = scmp.ne.s32.totalorder %s24, %s38
      %p40 = scmp.eq.s32.totalorder %s19, 0
      %p41 = por %p39, %p40
      %s42 = ssub.s32 %s13, %s20
      %p43 = scmp.eq.s32.totalorder %s42, 0
      %s45 = sadd.s32 %s44, 1
      %s46 = scalar_select %p43, %s44, %s45
      %p49 = pneg %p43
      %p50 = scmp.eq.s32.totalorder %s13, 5
      %p51 = por %p49, %p50
      %p52 = scmp.ne.s32.totalorder %s44, %s47
      %p53 = scmp.eq.s32.totalorder %s13, 0
      %p54 = por %p52, %p53
      %p55 = scmp.ne.s32.totalorder %s44, %s47
      %p56 = scmp.eq.s32.totalorder %s18, 5
      %p57 = por %p55, %p56
      %p58 = scmp.ne.s32.totalorder %s47, %s48
      %p59 = scmp.eq.s32.totalorder %s18, 0
      %p60 = por %p58, %p59
      %p61 = scmp.ne.s32.totalorder %s47, %s48
      %p62 = scmp.eq.s32.totalorder %s19, 5
      %p63 = por %p61, %p62
      %p65 = scmp.ne.s32.totalorder %s48, %s64
      %p66 = scmp.eq.s32.totalorder %s19, 0
      %p67 = por %p65, %p66
      %s68 = ssub.s32 %s13, %s20
      %p69 = scmp.eq.s32.totalorder %s68, 0
      %s71 = sadd.s32 %s70, 1
      %s72 = scalar_select %p69, %s70, %s71
      %p75 = pneg %p69
      %p76 = scmp.eq.s32.totalorder %s13, 5
      %p77 = por %p75, %p76
      %p78 = scmp.ne.s32.totalorder %s70, %s73
      %p79 = scmp.eq.s32.totalorder %s13, 0
      %p80 = por %p78, %p79
      %p81 = scmp.ne.s32.totalorder %s70, %s73
      %p82 = scmp.eq.s32.totalorder %s18, 5
      %p83 = por %p81, %p82
      %p84 = scmp.ne.s32.totalorder %s73, %s74
      %p85 = scmp.eq.s32.totalorder %s18, 0
      %p86 = por %p84, %p85
      %p87 = scmp.ne.s32.totalorder %s73, %s74
      %p88 = scmp.eq.s32.totalorder %s19, 5
      %p89 = por %p87, %p88
      %p91 = scmp.ne.s32.totalorder %s74, %s90
      %p92 = scmp.eq.s32.totalorder %s19, 0
      %p93 = por %p91, %p92
      %s94 = ssub.s32 %s13, %s20
      %p95 = scmp.eq.s32.totalorder %s94, 0
      %s97 = sadd.s32 %s96, 1
      %s98 = scalar_select %p95, %s96, %s97
      %p101 = pneg %p95
      %p102 = scmp.eq.s32.totalorder %s13, 5
      %p103 = por %p101, %p102
      %p104 = scmp.ne.s32.totalorder %s96, %s99
      %p105 = scmp.eq.s32.totalorder %s13, 0
      %p106 = por %p104, %p105
      %p107 = scmp.ne.s32.totalorder %s96, %s99
      %p108 = scmp.eq.s32.totalorder %s18, 5
      %p109 = por %p107, %p108
      %p110 = scmp.ne.s32.totalorder %s99, %s100
      %p111 = scmp.eq.s32.totalorder %s18, 0
      %p112 = por %p110, %p111
      %p113 = scmp.ne.s32.totalorder %s99, %s100
      %p114 = scmp.eq.s32.totalorder %s19, 5
      %p115 = por %p113, %p114
      %p117 = scmp.ne.s32.totalorder %s100, %s116
      %p118 = scmp.eq.s32.totalorder %s19, 0
      %p119 = por %p117, %p118
      %s121 = sadd.s32 %s120, 1
      %p124 = scmp.eq.s32.totalorder %s13, 5
      %p125 = scmp.ne.s32.totalorder %s120, %s122
      %p126 = scmp.eq.s32.totalorder %s13, 0
      %p127 = por %p125, %p126
      %p128 = scmp.ne.s32.totalorder %s120, %s122
      %p129 = scmp.eq.s32.totalorder %s18, 5
      %p130 = por %p128, %p129
      %p131 = scmp.ne.s32.totalorder %s122, %s123
      %p132 = scmp.eq.s32.totalorder %s18, 0
      %p133 = por %p131, %p132
      %p134 = scmp.ne.s32.totalorder %s122, %s123
      %p135 = scmp.eq.s32.totalorder %s19, 5
      %p136 = por %p134, %p135
      %p138 = scmp.ne.s32.totalorder %s123, %s137
      %p139 = scmp.eq.s32.totalorder %s19, 0
      %p140 = por %p138, %p139
      %s142 = sadd.s32 %s141, 1
      %p145 = scmp.eq.s32.totalorder %s13, 5
      %p146 = scmp.ne.s32.totalorder %s141, %s143
      %p147 = scmp.eq.s32.totalorder %s13, 0
      %p148 = por %p146, %p147
      %p149 = scmp.ne.s32.totalorder %s141, %s143
      %p150 = scmp.eq.s32.totalorder %s18, 5
      %p151 = por %p149, %p150
      %p152 = scmp.ne.s32.totalorder %s143, %s144
      %p153 = scmp.eq.s32.totalorder %s18, 0
      %p154 = por %p152, %p153
      %p155 = scmp.ne.s32.totalorder %s143, %s144
      %p156 = scmp.eq.s32.totalorder %s19, 5
      %p157 = por %p155, %p156
      %p159 = scmp.ne.s32.totalorder %s144, %s158
      %p160 = scmp.eq.s32.totalorder %s19, 0
      %p161 = por %p159, %p160
      %s163 = sadd.s32 %s162, 1
      %p166 = scmp.eq.s32.totalorder %s13, 5
      %p167 = scmp.ne.s32.totalorder %s162, %s164
      %p168 = scmp.eq.s32.totalorder %s13, 0
      %p169 = por %p167, %p168
      %p170 = scmp.ne.s32.totalorder %s162, %s164
      %p171 = scmp.eq.s32.totalorder %s18, 5
      %p172 = por %p170, %p171
      %p173 = scmp.ne.s32.totalorder %s164, %s165
      %p174 = scmp.eq.s32.totalorder %s18, 0
      %p175 = por %p173, %p174
      %p176 = scmp.ne.s32.totalorder %s164, %s165
      %p177 = scmp.eq.s32.totalorder %s19, 5
      %p178 = por %p176, %p177
      %p180 = scmp.ne.s32.totalorder %s165, %s179
      %p181 = scmp.eq.s32.totalorder %s19, 0
      %p182 = por %p180, %p181
      %p183 = scmp.le.s32.totalorder 1, %s13
      %p184 = scmp.lt.s32.totalorder %s13, 7
      %p185 = pnand %p183, %p184
      %p186 = pneg %p185
      // Predicated region
      $region9: #{tpu_custom_call.1} parent=5 // pred_check
        _
      $region10: #{tpu_custom_call.1} parent=5 // pred_check_branch
        %188 = sbr.rel (%p185) target = $region12
      $region11: #{tpu_custom_call.1} parent=5 // pred_region
        %s189 = ssub.s32 %s13, 1
        // Predicated region
        $region13: #{tpu_custom_call.1} parent=11 // pred_check
          %p190 = pneg %p34
        $region14: #{tpu_custom_call.1} parent=11 // pred_check_branch
          %192 = sbr.rel (%p190) target = $region16
        $region15: #{tpu_custom_call.1} parent=11 // pred_region
          _
        $region16: #{tpu_custom_call.1} parent=11 // pred_fallthru
          _
        // Predicated region
        $region17: #{tpu_custom_call.1} parent=11 // pred_check
          %p193 = pneg %p133
        $region18: #{tpu_custom_call.1} parent=11 // pred_check_branch
          %195 = sbr.rel (%p193) target = $region20
        $region19: #{tpu_custom_call.1} parent=11 // pred_region
          _
        $region20: #{tpu_custom_call.1} parent=11 // pred_fallthru
          _
        // Predicated region
        $region21: #{tpu_custom_call.1} parent=11 // pred_check
          %p196 = pneg %p154
        $region22: #{tpu_custom_call.1} parent=11 // pred_check_branch
          %198 = sbr.rel (%p196) target = $region24
        $region23: #{tpu_custom_call.1} parent=11 // pred_region
          _
        $region24: #{tpu_custom_call.1} parent=11 // pred_fallthru
          _
      $region12: #{tpu_custom_call.1} parent=5 // pred_fallthru
        _
      %p199 = scmp.lt.s32.totalorder %s13, 6
      // Predicated region
      $region25: #{tpu_custom_call.1} parent=5 // pred_check
        %p200 = pneg %p199
      $region26: #{tpu_custom_call.1} parent=5 // pred_check_branch
        %202 = sbr.rel (%p200) target = $region28
      $region27: #{tpu_custom_call.1} parent=5 // pred_region
        // Predicated region
        $region29: #{tpu_custom_call.1} parent=27 // pred_check
          %p203 = pneg %p54
        $region30: #{tpu_custom_call.1} parent=27 // pred_check_branch
          %205 = sbr.rel (%p203) target = $region32
        $region31: #{tpu_custom_call.1} parent=27 // pred_region
          %p206 = scmp.lt.s32.totalorder %s13, 5
          %s207 = scalar_select %p206, %s13, 5
          %s208 = smul.addr %s207, 72
          %s209 = smul.addr %s208, 4
          %s210 = scalar_lea.vmem %s1, %s209
        $region32: #{tpu_custom_call.1} parent=27 // pred_fallthru
          _
        // Predicated region
        $region33: #{tpu_custom_call.1} parent=27 // pred_check
          %p211 = pneg %p80
        $region34: #{tpu_custom_call.1} parent=27 // pred_check_branch
          %213 = sbr.rel (%p211) target = $region36
        $region35: #{tpu_custom_call.1} parent=27 // pred_region
          %p214 = scmp.lt.s32.totalorder %s13, 5
          %s215 = scalar_select %p214, %s13, 5
          %s216 = smul.addr %s215, 256
          %s217 = smul.addr %s216, 4
          %s218 = scalar_lea.vmem %s2, %s217
        $region36: #{tpu_custom_call.1} parent=27 // pred_fallthru
          _
        // Predicated region
        $region37: #{tpu_custom_call.1} parent=27 // pred_check
          %p219 = pneg %p106
        $region38: #{tpu_custom_call.1} parent=27 // pred_check_branch
          %221 = sbr.rel (%p219) target = $region40
        $region39: #{tpu_custom_call.1} parent=27 // pred_region
          %p222 = scmp.lt.s32.totalorder %s13, 5
          %s223 = scalar_select %p222, %s13, 5
          %s224 = smul.addr %s223, 26
          %s225 = scalar_lea.vmem %s3, %s224
        $region40: #{tpu_custom_call.1} parent=27 // pred_fallthru
          _
      $region28: #{tpu_custom_call.1} parent=5 // pred_fallthru
        _
      %p226 = scmp.le.s32.totalorder 1, %s13
      %p227 = scmp.lt.s32.totalorder %s13, 7
      %p228 = pnand %p226, %p227
      %p229 = pneg %p228
      // Predicated region
      $region41: #{tpu_custom_call.1} parent=5 // pred_check
        _
      $region42: #{tpu_custom_call.1} parent=5 // pred_check_branch
        %231 = sbr.rel (%p228) target = $region44
      $region43: #{tpu_custom_call.1} parent=5 // pred_region
        %s232 = ssub.s32 %s13, 1
        %p233 = pneg %p34
        %p234 = pneg %p31
        %p235 = scmp.lt.s32.totalorder %s18, 5
        %s236 = scalar_select %p235, %s18, 5
        %s237 = smul.addr %s236, 72
        %s238 = smul.addr %s237, 4
        %s239 = scalar_lea.vmem %s1, %s238
        %p240 = pneg %p60
        %p241 = pneg %p57
        %p242 = scmp.lt.s32.totalorder %s18, 5
        %s243 = scalar_select %p242, %s18, 5
        %s244 = smul.addr %s243, 256
        %s245 = smul.addr %s244, 4
        %s246 = scalar_lea.vmem %s2, %s245
        %p247 = pneg %p86
        %p248 = pneg %p83
        %p249 = scmp.lt.s32.totalorder %s18, 5
        %s250 = scalar_select %p249, %s18, 5
        %s251 = smul.addr %s250, 26
        %s252 = scalar_lea.vmem %s3, %s251
        %p253 = pneg %p112
        %p254 = pneg %p109
        %p255 = pneg %p133
        %p256 = pneg %p130
        %p257 = pneg %p154
        %p258 = pneg %p151
        %p259 = pneg %p175
        %p260 = pneg %p172
        %p261 = scmp.lt.s32.totalorder %s18, 5
        %s262 = scalar_select %p261, %s18, 5
        %s263 = smul.addr %s262, 72
        %s264 = smul.addr %s263, 4
        %s265 = scalar_lea.vmem %s1, %s264
        %p266 = scmp.lt.s32.totalorder %s18, 5
        %s267 = scalar_select %p266, %s18, 5
        %s268 = smul.addr %s267, 256
        %s269 = smul.addr %s268, 4
        %s270 = scalar_lea.vmem %s2, %s269
        %p271 = scmp.lt.s32.totalorder %s18, 5
        %s272 = scalar_select %p271, %s18, 5
        %s273 = smul.addr %s272, 26
        %s274 = scalar_lea.vmem %s3, %s273
        %p276 = scmp.eq.s32.totalorder %s18, 0
        // Predicated region
        $region45: #{tpu_custom_call.1} parent=43 // pred_check
          %p277 = pneg %p276
        $region46: #{tpu_custom_call.1} parent=43 // pred_check_branch
          %279 = sbr.rel (%p277) target = $region48
        $region47: #{tpu_custom_call.1} parent=43 // pred_region
          %v280 = vld [vmem:[%s0] sm:$0xff]
          %v281 = vld [vmem:[%s0 + $0x8] sm:$0xff]
          %vm282 = vcmask 261120
          %283 = vst.msk [vmem:[#allocation2] sm:$0xff] %vm282, %v280
          %284 = vst.msk [vmem:[#allocation2 + $0x8] sm:$0xff] %vm282, %v281
        $region48: #{tpu_custom_call.1} parent=43 // pred_fallthru
          _
        %v285 = vld [vmem:[#allocation2] sm:$0xff]
        %v286 = vld [vmem:[#allocation2 + $0x8] sm:$0xff]
        %v287 = vpack.c.bf16 %v286, %v285
        %v288 = vlaneseq
        %v289 = vshrl.u32 %v288, 7
        %v290 = vadd.s32 %v289, 8
        %v291 = vlaneseq
        %v292 = vand.u32 %v291, 127
        %v293 = vand.u32 %v292, 15
        %v294 = vshra.s32 %v293, 3
        %v295 = vshra.s32 %v289, 3
        %v296 = vshra.s32 %v290, 3
        %vm297 = vcmp.eq.s32.totalorder %v294, %v295
        %vm298 = vcmp.eq.s32.totalorder %v294, %v296
        %v299 = vand.u32 %v293, 7
        %v300 = vand.u32 %v289, 7
        %v301 = vand.u32 %v290, 7
        %vm302 = vcmp.le.s32.totalorder %v299, %v300
        %vm303 = vcmp.le.s32.totalorder %v299, %v301
        %vm304 = vmand %vm297, %vm302
        %vm305 = vmand %vm298, %vm303
        %v306 = vadd.s32 %v289, 16
        %v307 = vadd.s32 %v289, 24
        %v308 = vadd.s32 %v289, 32
        %v309 = vadd.s32 %v289, 40
        %v310 = vadd.s32 %v289, 48
        %v311 = vadd.s32 %v289, 56
        %v312 = vadd.s32 %v289, 64
        %v313 = vadd.s32 %v289, 72
        %v314 = vadd.s32 %v289, 80
        %v315 = vadd.s32 %v289, 88
        %v316 = vadd.s32 %v289, 96
        %v317 = vadd.s32 %v289, 104
        %v318 = vadd.s32 %v289, 112
        %v319 = vadd.s32 %v289, 120
        %v320 = vshra.s32 %v289, 4
        %v321 = vshra.s32 %v290, 4
        %v322 = vshra.s32 %v306, 4
        %v323 = vshra.s32 %v307, 4
        %v324 = vshra.s32 %v308, 4
        %v325 = vshra.s32 %v309, 4
        %v326 = vshra.s32 %v310, 4
        %v327 = vshra.s32 %v311, 4
        %v328 = vshra.s32 %v312, 4
        %v329 = vshra.s32 %v313, 4
        %v330 = vshra.s32 %v314, 4
        %v331 = vshra.s32 %v315, 4
        %v332 = vshra.s32 %v316, 4
        %v333 = vshra.s32 %v317, 4
        %v334 = vshra.s32 %v318, 4
        %v335 = vshra.s32 %v319, 4
        %v336 = vshra.s32 %v292, 2
        %vm337 = vcmp.eq.s32.totalorder %v320, %v336
        %vm338 = vcmp.eq.s32.totalorder %v321, %v336
        %vm339 = vcmp.eq.s32.totalorder %v322, %v336
        %vm340 = vcmp.eq.s32.totalorder %v323, %v336
        %vm341 = vcmp.eq.s32.totalorder %v324, %v336
        %vm342 = vcmp.eq.s32.totalorder %v325, %v336
        %vm343 = vcmp.eq.s32.totalorder %v326, %v336
        %vm344 = vcmp.eq.s32.totalorder %v327, %v336
        %vm345 = vcmp.eq.s32.totalorder %v328, %v336
        %vm346 = vcmp.eq.s32.totalorder %v329, %v336
        %vm347 = vcmp.eq.s32.totalorder %v330, %v336
        %vm348 = vcmp.eq.s32.totalorder %v331, %v336
        %vm349 = vcmp.eq.s32.totalorder %v332, %v336
        %vm350 = vcmp.eq.s32.totalorder %v333, %v336
        %vm351 = vcmp.eq.s32.totalorder %v334, %v336
        %vm352 = vcmp.eq.s32.totalorder %v335, %v336
        %v353 = vsel %vm337, 1, 0
        %v354 = vsel %vm338, 1, 0
        %v355 = vsel %vm339, 1, 0
        %v356 = vsel %vm340, 1, 0
        %v357 = vsel %vm341, 1, 0
        %v358 = vsel %vm342, 1, 0
        %v359 = vsel %vm343, 1, 0
        %v360 = vsel %vm344, 1, 0
        %v361 = vsel %vm345, 1, 0
        %v362 = vsel %vm346, 1, 0
        %v363 = vsel %vm347, 1, 0
        %v364 = vsel %vm348, 1, 0
        %v365 = vsel %vm349, 1, 0
        %v366 = vsel %vm350, 1, 0
        %v367 = vsel %vm351, 1, 0
        %v368 = vsel %vm352, 1, 0
        %v369 = vcvt.s32.f32 %v353
        %v370 = vcvt.s32.f32 %v354
        %v371 = vcvt.s32.f32 %v355
        %v372 = vcvt.s32.f32 %v356
        %v373 = vcvt.s32.f32 %v357
        %v374 = vcvt.s32.f32 %v358
        %v375 = vcvt.s32.f32 %v359
        %v376 = vcvt.s32.f32 %v360
        %v377 = vcvt.s32.f32 %v361
        %v378 = vcvt.s32.f32 %v362
        %v379 = vcvt.s32.f32 %v363
        %v380 = vcvt.s32.f32 %v364
        %v381 = vcvt.s32.f32 %v365
        %v382 = vcvt.s32.f32 %v366
        %v383 = vcvt.s32.f32 %v367
        %v384 = vcvt.s32.f32 %v368
        %v385 = vld [vmem:[%s265] sm:$0xf]
        %v386 = vld [vmem:[%s265 + $0x48] sm:$0xf]
        %v387 = vld [vmem:[%s265 + $0x90] sm:$0xf]
        %v388 = vld [vmem:[%s265 + $0xd8] sm:$0xf]
        %v389 = vld [vmem:[%s274] sm:$0x1]
        %v391 = vlaneseq
        %v392 = vshrl.u32 %v391, 7
        %v393 = vsub.s32 0, %v392
        %v394 = vrot.slane %v389, %v393
        %v400 = vunpack.c.l.b16 %v385
        %v401 = vunpack.c.l.b16 %v386
        %v402 = vunpack.c.l.b16 %v387
        %v403 = vunpack.c.l.b16 %v388
        %v404 = vpack.c.b16 %v401, %v400
        %v405 = vpack.c.b16 %v403, %v402
        %vm408 = vcmask 261120
        %v410 = vsel %vm408, %v287, 0
        %412 = vmatprep.subr.bf16.mxu0 0
        %413 = vmatpush1.bf16.msra.mxu0 %v404
        %414 = vmatprep.subr.bf16.mxu0 0
        %415 = vmatpush1.bf16.msra.mxu0 %v405
        %416 = vmatprep.subr.bf16.mxu0 0
        %417 = vmatpush1.bf16.msra.mxu0 0
        %418 = vmatprep.subr.bf16.mxu0 0
        %419 = vmatpush1.bf16.msra.mxu0 0
        %420 = vmatprep.subr.bf16.mxu0 0
        %421 = vmatpush1.bf16.msra.mxu0 0
        %422 = vmatprep.subr.bf16.mxu0 0
        %423 = vmatpush1.bf16.msra.mxu0 0
        %424 = vmatprep.subr.bf16.mxu0 0
        %425 = vmatpush1.bf16.msra.mxu0 0
        %426 = vmatprep.subr.bf16.mxu0 0
        %427 = vmatpush1.bf16.msra.mxu0 0
        %428 = vmatprep.subr.bf16.mxu0 0
        %429 = vmatpush1.bf16.msra.mxu0 0
        %430 = vmatprep.subr.bf16.mxu0 0
        %431 = vmatpush1.bf16.msra.mxu0 0
        %432 = vmatprep.subr.bf16.mxu0 0
        %433 = vmatpush1.bf16.msra.mxu0 0
        %434 = vmatprep.subr.bf16.mxu0 0
        %435 = vmatpush1.bf16.msra.mxu0 0
        %436 = vmatprep.subr.bf16.mxu0 0
        %437 = vmatpush1.bf16.msra.mxu0 0
        %438 = vmatprep.subr.bf16.mxu0 0
        %439 = vmatpush1.bf16.msra.mxu0 0
        %440 = vmatprep.subr.bf16.mxu0 0
        %441 = vmatpush1.bf16.msra.mxu0 0
        %442 = vmatprep.subr.bf16.mxu0 0
        %443 = vmatpush1.bf16.msra.mxu0 0
        %444 = vmatprep.mubr.bf16.mxu0 0
        %445 = vmatmul.mubr.bf16.gmra.mrb[0].mxu0 %v410
        %v446 = vpop.f32.mrb[0].mxu0
        %v447 = vadd.f32 %v394, %v446
        %v448 = vpop.f32.mrb[0].mxu0
        %v449 = vpop.f32.mrb[0].mxu0
        %v450 = vadd.f32 %v394, %v449
        %v451 = vpop.f32.mrb[0].mxu0
        %452 = vdwg.mxu0
        %469 = vrot.lane.b32.xlu0 %v369, 32
        %v470 = vpop.permute.xlu0 %469
        %471 = vrot.lane.b32.xlu0 %v370, 32
        %v472 = vpop.permute.xlu0 %471
        %473 = vrot.lane.b32.xlu0 %v371, 32
        %v474 = vpop.permute.xlu0 %473
        %475 = vrot.lane.b32.xlu0 %v372, 32
        %v476 = vpop.permute.xlu0 %475
        %477 = vrot.lane.b32.xlu0 %v373, 32
        %v478 = vpop.permute.xlu0 %477
        %479 = vrot.lane.b32.xlu0 %v374, 32
        %v480 = vpop.permute.xlu0 %479
        %481 = vrot.lane.b32.xlu0 %v375, 32
        %v482 = vpop.permute.xlu0 %481
        %483 = vrot.lane.b32.xlu0 %v376, 32
        %v484 = vpop.permute.xlu0 %483
        %485 = vrot.lane.b32.xlu0 %v377, 32
        %v486 = vpop.permute.xlu0 %485
        %487 = vrot.lane.b32.xlu0 %v378, 32
        %v488 = vpop.permute.xlu0 %487
        %489 = vrot.lane.b32.xlu0 %v379, 32
        %v490 = vpop.permute.xlu0 %489
        %491 = vrot.lane.b32.xlu0 %v380, 32
        %v492 = vpop.permute.xlu0 %491
        %493 = vrot.lane.b32.xlu0 %v381, 32
        %v494 = vpop.permute.xlu0 %493
        %495 = vrot.lane.b32.xlu0 %v382, 32
        %v496 = vpop.permute.xlu0 %495
        %497 = vrot.lane.b32.xlu0 %v383, 32
        %v498 = vpop.permute.xlu0 %497
        %499 = vrot.lane.b32.xlu0 %v384, 32
        %v500 = vpop.permute.xlu0 %499
        %v517 = vmul.f32 %v447, %v470
        %v518 = vmul.f32 %v450, %v472
        %v519 = vmul.f32 %v447, %v474
        %v520 = vmul.f32 %v450, %v476
        %v521 = vmul.f32 %v447, %v478
        %v522 = vmul.f32 %v450, %v480
        %v523 = vmul.f32 %v447, %v482
        %v524 = vmul.f32 %v450, %v484
        %v525 = vmul.f32 %v447, %v486
        %v526 = vmul.f32 %v450, %v488
        %v527 = vmul.f32 %v447, %v490
        %v528 = vmul.f32 %v450, %v492
        %v529 = vmul.f32 %v447, %v494
        %v530 = vmul.f32 %v450, %v496
        %v531 = vmul.f32 %v447, %v498
        %v532 = vmul.f32 %v450, %v500
        %533 = vrot.lane.b32.xlu0 %v369, 64
        %v534 = vpop.permute.xlu0 %533
        %535 = vrot.lane.b32.xlu0 %v370, 64
        %v536 = vpop.permute.xlu0 %535
        %537 = vrot.lane.b32.xlu0 %v371, 64
        %v538 = vpop.permute.xlu0 %537
        %539 = vrot.lane.b32.xlu0 %v372, 64
        %v540 = vpop.permute.xlu0 %539
        %541 = vrot.lane.b32.xlu0 %v373, 64
        %v542 = vpop.permute.xlu0 %541
        %543 = vrot.lane.b32.xlu0 %v374, 64
        %v544 = vpop.permute.xlu0 %543
        %545 = vrot.lane.b32.xlu0 %v375, 64
        %v546 = vpop.permute.xlu0 %545
        %547 = vrot.lane.b32.xlu0 %v376, 64
        %v548 = vpop.permute.xlu0 %547
        %549 = vrot.lane.b32.xlu0 %v377, 64
        %v550 = vpop.permute.xlu0 %549
        %551 = vrot.lane.b32.xlu0 %v378, 64
        %v552 = vpop.permute.xlu0 %551
        %553 = vrot.lane.b32.xlu0 %v379, 64
        %v554 = vpop.permute.xlu0 %553
        %555 = vrot.lane.b32.xlu0 %v380, 64
        %v556 = vpop.permute.xlu0 %555
        %557 = vrot.lane.b32.xlu0 %v381, 64
        %v558 = vpop.permute.xlu0 %557
        %559 = vrot.lane.b32.xlu0 %v382, 64
        %v560 = vpop.permute.xlu0 %559
        %561 = vrot.lane.b32.xlu0 %v383, 64
        %v562 = vpop.permute.xlu0 %561
        %563 = vrot.lane.b32.xlu0 %v384, 64
        %v564 = vpop.permute.xlu0 %563
        %v581 = vmul.f32 %v447, %v534
        %v582 = vmul.f32 %v450, %v536
        %v583 = vmul.f32 %v447, %v538
        %v584 = vmul.f32 %v450, %v540
        %v585 = vmul.f32 %v447, %v542
        %v586 = vmul.f32 %v450, %v544
        %v587 = vmul.f32 %v447, %v546
        %v588 = vmul.f32 %v450, %v548
        %v589 = vmul.f32 %v447, %v550
        %v590 = vmul.f32 %v450, %v552
        %v591 = vmul.f32 %v447, %v554
        %v592 = vmul.f32 %v450, %v556
        %v593 = vmul.f32 %v447, %v558
        %v594 = vmul.f32 %v450, %v560
        %v595 = vmul.f32 %v447, %v562
        %v596 = vmul.f32 %v450, %v564
        %613 = vrot.lane.b32.xlu0 %v517, 96
        %v614 = vpop.permute.xlu0 %613
        %615 = vrot.lane.b32.xlu0 %v518, 96
        %v616 = vpop.permute.xlu0 %615
        %617 = vrot.lane.b32.xlu0 %v519, 96
        %v618 = vpop.permute.xlu0 %617
        %619 = vrot.lane.b32.xlu0 %v520, 96
        %v620 = vpop.permute.xlu0 %619
        %621 = vrot.lane.b32.xlu0 %v521, 96
        %v622 = vpop.permute.xlu0 %621
        %623 = vrot.lane.b32.xlu0 %v522, 96
        %v624 = vpop.permute.xlu0 %623
        %625 = vrot.lane.b32.xlu0 %v523, 96
        %v626 = vpop.permute.xlu0 %625
        %627 = vrot.lane.b32.xlu0 %v524, 96
        %v628 = vpop.permute.xlu0 %627
        %629 = vrot.lane.b32.xlu0 %v525, 96
        %v630 = vpop.permute.xlu0 %629
        %631 = vrot.lane.b32.xlu0 %v526, 96
        %v632 = vpop.permute.xlu0 %631
        %633 = vrot.lane.b32.xlu0 %v527, 96
        %v634 = vpop.permute.xlu0 %633
        %635 = vrot.lane.b32.xlu0 %v528, 96
        %v636 = vpop.permute.xlu0 %635
        %637 = vrot.lane.b32.xlu0 %v529, 96
        %v638 = vpop.permute.xlu0 %637
        %639 = vrot.lane.b32.xlu0 %v530, 96
        %v640 = vpop.permute.xlu0 %639
        %641 = vrot.lane.b32.xlu0 %v531, 96
        %v642 = vpop.permute.xlu0 %641
        %643 = vrot.lane.b32.xlu0 %v532, 96
        %v644 = vpop.permute.xlu0 %643
        %v646 = vsel %vm408, %v447, 0
        %v649 = vsel %vm408, %v450, 0
        %v651 = vsel %vm408, %v614, 0
        %v653 = vsel %vm408, %v616, 0
        %v655 = vsel %vm408, %v618, 0
        %v657 = vsel %vm408, %v620, 0
        %v659 = vsel %vm408, %v622, 0
        %v661 = vsel %vm408, %v624, 0
        %v663 = vsel %vm408, %v626, 0
        %v665 = vsel %vm408, %v628, 0
        %v667 = vsel %vm408, %v630, 0
        %v669 = vsel %vm408, %v632, 0
        %v671 = vsel %vm408, %v634, 0
        %v673 = vsel %vm408, %v636, 0
        %v675 = vsel %vm408, %v638, 0
        %v677 = vsel %vm408, %v640, 0
        %v679 = vsel %vm408, %v642, 0
        %v681 = vsel %vm408, %v644, 0
        %683 = vmatprep.subr.mxu0 0.0
        %684 = vmatpush1.xpose.msra.mxu0 %v651
        %685 = vmatprep.subr.mxu0 0.0
        %686 = vmatpush1.xpose.msra.mxu0 %v653
        %687 = vmatprep.subr.mxu0 0.0
        %688 = vmatpush1.xpose.msra.mxu0 %v655
        %689 = vmatprep.subr.mxu0 0.0
        %690 = vmatpush1.xpose.msra.mxu0 %v657
        %691 = vmatprep.subr.mxu0 0.0
        %692 = vmatpush1.xpose.msra.mxu0 %v659
        %693 = vmatprep.subr.mxu0 0.0
        %694 = vmatpush1.xpose.msra.mxu0 %v661
        %695 = vmatprep.subr.mxu0 0.0
        %696 = vmatpush1.xpose.msra.mxu0 %v663
        %697 = vmatprep.subr.mxu0 0.0
        %698 = vmatpush1.xpose.msra.mxu0 %v665
        %699 = vmatprep.subr.mxu0 0.0
        %700 = vmatpush1.xpose.msra.mxu0 %v667
        %701 = vmatprep.subr.mxu0 0.0
        %702 = vmatpush1.xpose.msra.mxu0 %v669
        %703 = vmatprep.subr.mxu0 0.0
        %704 = vmatpush1.xpose.msra.mxu0 %v671
        %705 = vmatprep.subr.mxu0 0.0
        %706 = vmatpush1.xpose.msra.mxu0 %v673
        %707 = vmatprep.subr.mxu0 0.0
        %708 = vmatpush1.xpose.msra.mxu0 %v675
        %709 = vmatprep.subr.mxu0 0.0
        %710 = vmatpush1.xpose.msra.mxu0 %v677
        %711 = vmatprep.subr.mxu0 0.0
        %712 = vmatpush1.xpose.msra.mxu0 %v679
        %713 = vmatprep.subr.mxu0 0.0
        %714 = vmatpush1.xpose.msra.mxu0 %v681
        %715 = vmatprep.subr.mxu0 0.0
        %716 = vmatpush1.xpose.msra.mxu0 0.0
        %717 = vmatprep.subr.mxu0 0.0
        %718 = vmatpush1.xpose.msra.mxu0 0.0
        %719 = vmatprep.subr.mxu0 0.0
        %720 = vmatpush1.xpose.msra.mxu0 0.0
        %721 = vmatprep.subr.mxu0 0.0
        %722 = vmatpush1.xpose.msra.mxu0 0.0
        %723 = vmatprep.subr.mxu0 0.0
        %724 = vmatpush1.xpose.msra.mxu0 0.0
        %725 = vmatprep.subr.mxu0 0.0
        %726 = vmatpush1.xpose.msra.mxu0 0.0
        %727 = vmatprep.subr.mxu0 0.0
        %728 = vmatpush1.xpose.msra.mxu0 0.0
        %729 = vmatprep.subr.mxu0 0.0
        %730 = vmatpush1.xpose.msra.mxu0 0.0
        %731 = vmatprep.subr.mxu0 0.0
        %732 = vmatpush1.xpose.msra.mxu0 0.0
        %733 = vmatprep.subr.mxu0 0.0
        %734 = vmatpush1.xpose.msra.mxu0 0.0
        %735 = vmatprep.subr.mxu0 0.0
        %736 = vmatpush1.xpose.msra.mxu0 0.0
        %737 = vmatprep.subr.mxu0 0.0
        %738 = vmatpush1.xpose.msra.mxu0 0.0
        %739 = vmatprep.subr.mxu0 0.0
        %740 = vmatpush1.xpose.msra.mxu0 0.0
        %741 = vmatprep.subr.mxu0 0.0
        %742 = vmatpush1.xpose.msra.mxu0 0.0
        %743 = vmatprep.subr.mxu0 0.0
        %744 = vmatpush1.xpose.msra.mxu0 0.0
        %745 = vmatprep.subr.mxu0 0.0
        %746 = vmatpush1.xpose.msra.mxu0 0.0
        %747 = vmatprep.mubr.f32.mxu0 0.0
        %748 = vmatmul.mubr.f32.gmra.mrb[0].mxu0 %v646
        %v749 = vpop.f32.mrb[0].mxu0
        %v750 = vadd.f32 0.0, %v749
        %v751 = vpop.f32.mrb[0].mxu0
        %752 = vmatprep.mubr.f32.mxu0 0.0
        %753 = vmatmul.mubr.f32.gmra.mrb[0].mxu0 %v649
        %v754 = vpop.f32.mrb[0].mxu0
        %v755 = vadd.f32 0.0, %v754
        %v756 = vpop.f32.mrb[0].mxu0
        %757 = vdwg.mxu0
        %v758 = vsel %vm304, %v750, -1e+30
        %v759 = vsel %vm305, %v755, -1e+30
        %760 = vmax.xlane.f32.xlu0 %v758
        %v761 = vpop.xlane.xlu0 %760
        %762 = vmax.xlane.f32.xlu0 %v759
        %v763 = vpop.xlane.xlu0 %762
        %v764 = vsub.f32 %v758, %v761
        %v765 = vsub.f32 %v759, %v763
        %v766 = vmul.f32 %v764, 1.442695
        %v767 = vpow.pop %v766
        %v768 = vmul.f32 %v765, 1.442695
        %v769 = vpow.pop %v768
        %786 = vrot.lane.b32.xlu0 %v581, 64
        %v787 = vpop.permute.xlu0 %786
        %788 = vrot.lane.b32.xlu0 %v582, 64
        %v789 = vpop.permute.xlu0 %788
        %790 = vrot.lane.b32.xlu0 %v583, 64
        %v791 = vpop.permute.xlu0 %790
        %792 = vrot.lane.b32.xlu0 %v584, 64
        %v793 = vpop.permute.xlu0 %792
        %794 = vrot.lane.b32.xlu0 %v585, 64
        %v795 = vpop.permute.xlu0 %794
        %796 = vrot.lane.b32.xlu0 %v586, 64
        %v797 = vpop.permute.xlu0 %796
        %798 = vrot.lane.b32.xlu0 %v587, 64
        %v799 = vpop.permute.xlu0 %798
        %800 = vrot.lane.b32.xlu0 %v588, 64
        %v801 = vpop.permute.xlu0 %800
        %802 = vrot.lane.b32.xlu0 %v589, 64
        %v803 = vpop.permute.xlu0 %802
        %804 = vrot.lane.b32.xlu0 %v590, 64
        %v805 = vpop.permute.xlu0 %804
        %806 = vrot.lane.b32.xlu0 %v591, 64
        %v807 = vpop.permute.xlu0 %806
        %808 = vrot.lane.b32.xlu0 %v592, 64
        %v809 = vpop.permute.xlu0 %808
        %810 = vrot.lane.b32.xlu0 %v593, 64
        %v811 = vpop.permute.xlu0 %810
        %812 = vrot.lane.b32.xlu0 %v594, 64
        %v813 = vpop.permute.xlu0 %812
        %814 = vrot.lane.b32.xlu0 %v595, 64
        %v815 = vpop.permute.xlu0 %814
        %816 = vrot.lane.b32.xlu0 %v596, 64
        %v817 = vpop.permute.xlu0 %816
        %834 = vmatprep.subr.mxu0 0.0
        %835 = vmatpush1.msra.mxu0 %v787
        %836 = vmatprep.subr.mxu0 0.0
        %837 = vmatpush1.msra.mxu0 %v789
        %838 = vmatprep.subr.mxu0 0.0
        %839 = vmatpush1.msra.mxu0 %v791
        %840 = vmatprep.subr.mxu0 0.0
        %841 = vmatpush1.msra.mxu0 %v793
        %842 = vmatprep.subr.mxu0 0.0
        %843 = vmatpush1.msra.mxu0 %v795
        %844 = vmatprep.subr.mxu0 0.0
        %845 = vmatpush1.msra.mxu0 %v797
        %846 = vmatprep.subr.mxu0 0.0
        %847 = vmatpush1.msra.mxu0 %v799
        %848 = vmatprep.subr.mxu0 0.0
        %849 = vmatpush1.msra.mxu0 %v801
        %850 = vmatprep.subr.mxu0 0.0
        %851 = vmatpush1.msra.mxu0 %v803
        %852 = vmatprep.subr.mxu0 0.0
        %853 = vmatpush1.msra.mxu0 %v805
        %854 = vmatprep.subr.mxu0 0.0
        %855 = vmatpush1.msra.mxu0 %v807
        %856 = vmatprep.subr.mxu0 0.0
        %857 = vmatpush1.msra.mxu0 %v809
        %858 = vmatprep.subr.mxu0 0.0
        %859 = vmatpush1.msra.mxu0 %v811
        %860 = vmatprep.subr.mxu0 0.0
        %861 = vmatpush1.msra.mxu0 %v813
        %862 = vmatprep.subr.mxu0 0.0
        %863 = vmatpush1.msra.mxu0 %v815
        %864 = vmatprep.subr.mxu0 0.0
        %865 = vmatpush1.msra.mxu0 %v817
        %866 = vmatprep.subr.mxu0 0.0
        %867 = vmatpush1.msra.mxu0 0.0
        %868 = vmatprep.subr.mxu0 0.0
        %869 = vmatpush1.msra.mxu0 0.0
        %870 = vmatprep.subr.mxu0 0.0
        %871 = vmatpush1.msra.mxu0 0.0
        %872 = vmatprep.subr.mxu0 0.0
        %873 = vmatpush1.msra.mxu0 0.0
        %874 = vmatprep.subr.mxu0 0.0
        %875 = vmatpush1.msra.mxu0 0.0
        %876 = vmatprep.subr.mxu0 0.0
        %877 = vmatpush1.msra.mxu0 0.0
        %878 = vmatprep.subr.mxu0 0.0
        %879 = vmatpush1.msra.mxu0 0.0
        %880 = vmatprep.subr.mxu0 0.0
        %881 = vmatpush1.msra.mxu0 0.0
        %882 = vmatprep.subr.mxu0 0.0
        %883 = vmatpush1.msra.mxu0 0.0
        %884 = vmatprep.subr.mxu0 0.0
        %885 = vmatpush1.msra.mxu0 0.0
        %886 = vmatprep.subr.mxu0 0.0
        %887 = vmatpush1.msra.mxu0 0.0
        %888 = vmatprep.subr.mxu0 0.0
        %889 = vmatpush1.msra.mxu0 0.0
        %890 = vmatprep.subr.mxu0 0.0
        %891 = vmatpush1.msra.mxu0 0.0
        %892 = vmatprep.subr.mxu0 0.0
        %893 = vmatpush1.msra.mxu0 0.0
        %894 = vmatprep.subr.mxu0 0.0
        %895 = vmatpush1.msra.mxu0 0.0
        %896 = vmatprep.subr.mxu0 0.0
        %897 = vmatpush1.msra.mxu0 0.0
        %898 = vmatprep.mubr.f32.mxu0 0.0
        %899 = vmatmul.mubr.f32.gmra.mrb[0].mxu0 %v767
        %v900 = vpop.f32.mrb[0].mxu0
        %v901 = vadd.f32 0.0, %v900
        %v902 = vpop.f32.mrb[0].mxu0
        %903 = vmatprep.mubr.f32.mxu0 0.0
        %904 = vmatmul.mubr.f32.gmra.mrb[0].mxu0 %v769
        %v905 = vpop.f32.mrb[0].mxu0
        %v906 = vadd.f32 0.0, %v905
        %v907 = vpop.f32.mrb[0].mxu0
        %908 = vdwg.mxu0
        %909 = vmatprep.subr.mxu0 0.0
        %910 = vmatpush1.msra.mxu0 %v369
        %911 = vmatprep.subr.mxu0 0.0
        %912 = vmatpush1.msra.mxu0 %v370
        %913 = vmatprep.subr.mxu0 0.0
        %914 = vmatpush1.msra.mxu0 %v371
        %915 = vmatprep.subr.mxu0 0.0
        %916 = vmatpush1.msra.mxu0 %v372
        %917 = vmatprep.subr.mxu0 0.0
        %918 = vmatpush1.msra.mxu0 %v373
        %919 = vmatprep.subr.mxu0 0.0
        %920 = vmatpush1.msra.mxu0 %v374
        %921 = vmatprep.subr.mxu0 0.0
        %922 = vmatpush1.msra.mxu0 %v375
        %923 = vmatprep.subr.mxu0 0.0
        %924 = vmatpush1.msra.mxu0 %v376
        %925 = vmatprep.subr.mxu0 0.0
        %926 = vmatpush1.msra.mxu0 %v377
        %927 = vmatprep.subr.mxu0 0.0
        %928 = vmatpush1.msra.mxu0 %v378
        %929 = vmatprep.subr.mxu0 0.0
        %930 = vmatpush1.msra.mxu0 %v379
        %931 = vmatprep.subr.mxu0 0.0
        %932 = vmatpush1.msra.mxu0 %v380
        %933 = vmatprep.subr.mxu0 0.0
        %934 = vmatpush1.msra.mxu0 %v381
        %935 = vmatprep.subr.mxu0 0.0
        %936 = vmatpush1.msra.mxu0 %v382
        %937 = vmatprep.subr.mxu0 0.0
        %938 = vmatpush1.msra.mxu0 %v383
        %939 = vmatprep.subr.mxu0 0.0
        %940 = vmatpush1.msra.mxu0 %v384
        %941 = vmatprep.subr.mxu0 0.0
        %942 = vmatpush1.msra.mxu0 0.0
        %943 = vmatprep.subr.mxu0 0.0
        %944 = vmatpush1.msra.mxu0 0.0
        %945 = vmatprep.subr.mxu0 0.0
        %946 = vmatpush1.msra.mxu0 0.0
        %947 = vmatprep.subr.mxu0 0.0
        %948 = vmatpush1.msra.mxu0 0.0
        %949 = vmatprep.subr.mxu0 0.0
        %950 = vmatpush1.msra.mxu0 0.0
        %951 = vmatprep.subr.mxu0 0.0
        %952 = vmatpush1.msra.mxu0 0.0
        %953 = vmatprep.subr.mxu0 0.0
        %954 = vmatpush1.msra.mxu0 0.0
        %955 = vmatprep.subr.mxu0 0.0
        %956 = vmatpush1.msra.mxu0 0.0
        %957 = vmatprep.subr.mxu0 0.0
        %958 = vmatpush1.msra.mxu0 0.0
        %959 = vmatprep.subr.mxu0 0.0
        %960 = vmatpush1.msra.mxu0 0.0
        %961 = vmatprep.subr.mxu0 0.0
        %962 = vmatpush1.msra.mxu0 0.0
        %963 = vmatprep.subr.mxu0 0.0
        %964 = vmatpush1.msra.mxu0 0.0
        %965 = vmatprep.subr.mxu0 0.0
        %966 = vmatpush1.msra.mxu0 0.0
        %967 = vmatprep.subr.mxu0 0.0
        %968 = vmatpush1.msra.mxu0 0.0
        %969 = vmatprep.subr.mxu0 0.0
        %970 = vmatpush1.msra.mxu0 0.0
        %971 = vmatprep.subr.mxu0 0.0
        %972 = vmatpush1.msra.mxu0 0.0
        %973 = vmatprep.mubr.f32.mxu0 0.0
        %974 = vmatmul.mubr.f32.gmra.mrb[0].mxu0 %v767
        %v975 = vpop.f32.mrb[0].mxu0
        %v976 = vadd.f32 0.0, %v975
        %v977 = vpop.f32.mrb[0].mxu0
        %978 = vmatprep.mubr.f32.mxu0 0.0
        %979 = vmatmul.mubr.f32.gmra.mrb[0].mxu0 %v769
        %v980 = vpop.f32.mrb[0].mxu0
        %v981 = vadd.f32 0.0, %v980
        %v982 = vpop.f32.mrb[0].mxu0
        %983 = vdwg.mxu0
        %v984 = vrcp.pop %v976
        %v985 = vrcp.pop %v981
        %v986 = vmul.f32 %v901, %v984
        %v987 = vmul.f32 %v906, %v985
        %v988 = vld [vmem:[%s265 + $0x4] sm:$0xf]
        %v989 = vld [vmem:[%s265 + $0x4c] sm:$0xf]
        %v990 = vld [vmem:[%s265 + $0x94] sm:$0xf]
        %v991 = vld [vmem:[%s265 + $0xdc] sm:$0xf]
        %v992 = vpack.c.bf16 %v987, %v986
        %v993 = vld [vmem:[%s274 + $0x1] sm:$0x1]
        %v995 = vlaneseq
        %v996 = vshrl.u32 %v995, 7
        %v997 = vsub.s32 0, %v996
        %v998 = vrot.slane %v993, %v997
        %v1004 = vunpack.c.l.b16 %v988
        %v1005 = vunpack.c.l.b16 %v989
        %v1006 = vunpack.c.l.b16 %v990
        %v1007 = vunpack.c.l.b16 %v991
        %v1008 = vpack.c.b16 %v1005, %v1004
        %v1009 = vpack.c.b16 %v1007, %v1006
        %v1013 = vsel %vm408, %v992, 0
        %1015 = vmatprep.subr.bf16.mxu0 0
        %1016 = vmatpush1.bf16.msra.mxu0 %v1008
        %1017 = vmatprep.subr.bf16.mxu0 0
        %1018 = vmatpush1.bf16.msra.mxu0 %v1009
        %1019 = vmatprep.subr.bf16.mxu0 0
        %1020 = vmatpush1.bf16.msra.mxu0 0
        %1021 = vmatprep.subr.bf16.mxu0 0
        %1022 = vmatpush1.bf16.msra.mxu0 0
        %1023 = vmatprep.subr.bf16.mxu0 0
        %1024 = vmatpush1.bf16.msra.mxu0 0
        %1025 = vmatprep.subr.bf16.mxu0 0
        %1026 = vmatpush1.bf16.msra.mxu0 0
        %1027 = vmatprep.subr.bf16.mxu0 0
        %1028 = vmatpush1.bf16.msra.mxu0 0
        %1029 = vmatprep.subr.bf16.mxu0 0
        %1030 = vmatpush1.bf16.msra.mxu0 0
        %1031 = vmatprep.subr.bf16.mxu0 0
        %1032 = vmatpush1.bf16.msra.mxu0 0
        %1033 = vmatprep.subr.bf16.mxu0 0
        %1034 = vmatpush1.bf16.msra.mxu0 0
        %1035 = vmatprep.subr.bf16.mxu0 0
        %1036 = vmatpush1.bf16.msra.mxu0 0
        %1037 = vmatprep.subr.bf16.mxu0 0
        %1038 = vmatpush1.bf16.msra.mxu0 0
        %1039 = vmatprep.subr.bf16.mxu0 0
        %1040 = vmatpush1.bf16.msra.mxu0 0
        %1041 = vmatprep.subr.bf16.mxu0 0
        %1042 = vmatpush1.bf16.msra.mxu0 0
        %1043 = vmatprep.subr.bf16.mxu0 0
        %1044 = vmatpush1.bf16.msra.mxu0 0
        %1045 = vmatprep.subr.bf16.mxu0 0
        %1046 = vmatpush1.bf16.msra.mxu0 0
        %1047 = vmatprep.mubr.bf16.mxu0 0
        %1048 = vmatmul.mubr.bf16.gmra.mrb[0].mxu0 %v1013
        %v1049 = vpop.f32.mrb[0].mxu0
        %v1050 = vadd.f32 %v998, %v1049
        %v1051 = vpop.f32.mrb[0].mxu0
        %v1052 = vpop.f32.mrb[0].mxu0
        %v1053 = vadd.f32 %v998, %v1052
        %v1054 = vpop.f32.mrb[0].mxu0
        %1055 = vdwg.mxu0
        %v1056 = vadd.f32 %v285, %v1050
        %v1057 = vadd.f32 %v286, %v1053
        %v1058 = vld [vmem:[%s274 + $0x4] sm:$0x1]
        %v1059 = vld [vmem:[%s274 + $0x5] sm:$0x1]
        %v1060 = vsel %vm408, %v1056, 0.0
        %1061 = vadd.xlane.f32.xlu0 %v1060
        %v1062 = vpop.xlane.xlu0 %1061
        %v1063 = vsel %vm408, %v1057, 0.0
        %1064 = vadd.xlane.f32.xlu0 %v1063
        %v1065 = vpop.xlane.xlu0 %1064
        %v1066 = vrcp.pop 32.0
        %v1067 = vmul.f32 %v1062, %v1066
        %v1068 = vmul.f32 %v1065, %v1066
        %v1069 = vsub.f32 %v1056, %v1067
        %v1070 = vsub.f32 %v1057, %v1068
        %v1071 = vmul.f32 %v1069, %v1069
        %v1072 = vmul.f32 %v1070, %v1070
        %v1073 = vsel %vm408, %v1071, 0.0
        %1074 = vadd.xlane.f32.xlu0 %v1073
        %v1075 = vpop.xlane.xlu0 %1074
        %v1076 = vsel %vm408, %v1072, 0.0
        %1077 = vadd.xlane.f32.xlu0 %v1076
        %v1078 = vpop.xlane.xlu0 %1077
        %v1079 = vmul.f32 %v1075, %v1066
        %v1080 = vmul.f32 %v1078, %v1066
        %v1081 = vadd.f32 %v1079, 1e-05
        %v1082 = vadd.f32 %v1080, 1e-05
        %v1083 = vrsqrt.pop %v1081
        %v1084 = vrsqrt.pop %v1082
        %v1085 = vmul.f32 %v1069, %v1083
        %v1086 = vmul.f32 %v1070, %v1084
        %v1088 = vlaneseq
        %v1089 = vshrl.u32 %v1088, 7
        %v1090 = vsub.s32 0, %v1089
        %v1091 = vrot.slane %v1058, %v1090
        %v1093 = vmul.f32 %v1085, %v1091
        %v1094 = vmul.f32 %v1086, %v1091
        %v1096 = vlaneseq
        %v1097 = vshrl.u32 %v1096, 7
        %v1098 = vsub.s32 0, %v1097
        %v1099 = vrot.slane %v1059, %v1098
        %v1101 = vadd.f32 %v1093, %v1099
        %v1102 = vadd.f32 %v1094, %v1099
        %v1103 = vld [vmem:[%s274 + $0x2] sm:$0x1]
        %v1105 = vlaneseq
        %v1106 = vshrl.u32 %v1105, 7
        %v1107 = vsub.s32 0, %v1106
        %v1108 = vrot.slane %v1103, %v1107
        %v1110 = vadd.f32 %v1101, %v1108
        %v1111 = vadd.f32 %v1102, %v1108
        %v1112 = vld [vmem:[%s274 + $0x6] sm:$0x1]
        %v1113 = vld [vmem:[%s274 + $0x7] sm:$0x1]
        %v1114 = vsel %vm408, %v1110, 0.0
        %1115 = vadd.xlane.f32.xlu0 %v1114
        %v1116 = vpop.xlane.xlu0 %1115
        %v1117 = vsel %vm408, %v1111, 0.0
        %1118 = vadd.xlane.f32.xlu0 %v1117
        %v1119 = vpop.xlane.xlu0 %1118
        %v1120 = vmul.f32 %v1116, %v1066
        %v1121 = vmul.f32 %v1119, %v1066
        %v1122 = vsub.f32 %v1110, %v1120
        %v1123 = vsub.f32 %v1111, %v1121
        %v1124 = vmul.f32 %v1122, %v1122
        %v1125 = vmul.f32 %v1123, %v1123
        %v1126 = vsel %vm408, %v1124, 0.0
        %1127 = vadd.xlane.f32.xlu0 %v1126
        %v1128 = vpop.xlane.xlu0 %1127
        %v1129 = vsel %vm408, %v1125, 0.0
        %1130 = vadd.xlane.f32.xlu0 %v1129
        %v1131 = vpop.xlane.xlu0 %1130
        %v1132 = vmul.f32 %v1128, %v1066
        %v1133 = vmul.f32 %v1131, %v1066
        %v1134 = vadd.f32 %v1132, 1e-05
        %v1135 = vadd.f32 %v1133, 1e-05
        %v1136 = vrsqrt.pop %v1134
        %v1137 = vrsqrt.pop %v1135
        %v1138 = vmul.f32 %v1122, %v1136
        %v1139 = vmul.f32 %v1123, %v1137
        %v1141 = vlaneseq
        %v1142 = vshrl.u32 %v1141, 7
        %v1143 = vsub.s32 0, %v1142
        %v1144 = vrot.slane %v1112, %v1143
        %v1146 = vmul.f32 %v1138, %v1144
        %v1147 = vmul.f32 %v1139, %v1144
        %v1149 = vlaneseq
        %v1150 = vshrl.u32 %v1149, 7
        %v1151 = vsub.s32 0, %v1150
        %v1152 = vrot.slane %v1113, %v1151
        %v1154 = vadd.f32 %v1146, %v1152
        %v1155 = vadd.f32 %v1147, %v1152
        %v1156 = vld [vmem:[%s265 + $0x8] sm:$0xff]
        %v1157 = vld [vmem:[%s265 + $0x10] sm:$0xff]
        %v1158 = vld [vmem:[%s265 + $0x18] sm:$0xff]
        %v1159 = vld [vmem:[%s265 + $0x20] sm:$0xff]
        %v1160 = vld [vmem:[%s265 + $0x28] sm:$0xff]
        %v1161 = vld [vmem:[%s265 + $0x30] sm:$0xff]
        %v1162 = vld [vmem:[%s265 + $0x38] sm:$0xff]
        %v1163 = vld [vmem:[%s265 + $0x40] sm:$0xff]
        %v1164 = vld [vmem:[%s265 + $0x50] sm:$0xff]
        %v1165 = vld [vmem:[%s265 + $0x58] sm:$0xff]
        %v1166 = vld [vmem:[%s265 + $0x60] sm:$0xff]
        %v1167 = vld [vmem:[%s265 + $0x68] sm:$0xff]
        %v1168 = vld [vmem:[%s265 + $0x70] sm:$0xff]
        %v1169 = vld [vmem:[%s265 + $0x78] sm:$0xff]
        %v1170 = vld [vmem:[%s265 + $0x80] sm:$0xff]
        %v1171 = vld [vmem:[%s265 + $0x88] sm:$0xff]
        %v1172 = vld [vmem:[%s265 + $0x98] sm:$0xff]
        %v1173 = vld [vmem:[%s265 + $0xa0] sm:$0xff]
        %v1174 = vld [vmem:[%s265 + $0xa8] sm:$0xff]
        %v1175 = vld [vmem:[%s265 + $0xb0] sm:$0xff]
        %v1176 = vld [vmem:[%s265 + $0xb8] sm:$0xff]
        %v1177 = vld [vmem:[%s265 + $0xc0] sm:$0xff]
        %v1178 = vld [vmem:[%s265 + $0xc8] sm:$0xff]
        %v1179 = vld [vmem:[%s265 + $0xd0] sm:$0xff]
        %v1180 = vld [vmem:[%s265 + $0xe0] sm:$0xff]
        %v1181 = vld [vmem:[%s265 + $0xe8] sm:$0xff]
        %v1182 = vld [vmem:[%s265 + $0xf0] sm:$0xff]
        %v1183 = vld [vmem:[%s265 + $0xf8] sm:$0xff]
        %v1184 = vld [vmem:[%s265 + $0x100] sm:$0xff]
        %v1185 = vld [vmem:[%s265 + $0x108] sm:$0xff]
        %v1186 = vld [vmem:[%s265 + $0x110] sm:$0xff]
        %v1187 = vld [vmem:[%s265 + $0x118] sm:$0xff]
        %v1188 = vpack.c.bf16 %v1155, %v1154
        %v1189 = vld [vmem:[%s274 + $0xa] sm:$0xff]
        %v1190 = vld [vmem:[%s274 + $0x12] sm:$0xff]
        %v1193 = vlaneseq
        %v1194 = vshrl.u32 %v1193, 7
        %v1195 = vsub.s32 0, %v1194
        %v1196 = vrot.slane %v1189, %v1195
        %v1197 = vlaneseq
        %v1198 = vshrl.u32 %v1197, 7
        %v1199 = vsub.s32 1, %v1198
        %v1200 = vrot.slane %v1189, %v1199
        %v1201 = vlaneseq
        %v1202 = vshrl.u32 %v1201, 7
        %v1203 = vsub.s32 2, %v1202
        %v1204 = vrot.slane %v1189, %v1203
        %v1205 = vlaneseq
        %v1206 = vshrl.u32 %v1205, 7
        %v1207 = vsub.s32 3, %v1206
        %v1208 = vrot.slane %v1189, %v1207
        %v1209 = vlaneseq
        %v1210 = vshrl.u32 %v1209, 7
        %v1211 = vsub.s32 4, %v1210
        %v1212 = vrot.slane %v1189, %v1211
        %v1213 = vlaneseq
        %v1214 = vshrl.u32 %v1213, 7
        %v1215 = vsub.s32 5, %v1214
        %v1216 = vrot.slane %v1189, %v1215
        %v1217 = vlaneseq
        %v1218 = vshrl.u32 %v1217, 7
        %v1219 = vsub.s32 6, %v1218
        %v1220 = vrot.slane %v1189, %v1219
        %v1221 = vlaneseq
        %v1222 = vshrl.u32 %v1221, 7
        %v1223 = vsub.s32 7, %v1222
        %v1224 = vrot.slane %v1189, %v1223
        %v1225 = vlaneseq
        %v1226 = vshrl.u32 %v1225, 7
        %v1227 = vsub.s32 0, %v1226
        %v1228 = vrot.slane %v1190, %v1227
        %v1229 = vlaneseq
        %v1230 = vshrl.u32 %v1229, 7
        %v1231 = vsub.s32 1, %v1230
        %v1232 = vrot.slane %v1190, %v1231
        %v1233 = vlaneseq
        %v1234 = vshrl.u32 %v1233, 7
        %v1235 = vsub.s32 2, %v1234
        %v1236 = vrot.slane %v1190, %v1235
        %v1237 = vlaneseq
        %v1238 = vshrl.u32 %v1237, 7
        %v1239 = vsub.s32 3, %v1238
        %v1240 = vrot.slane %v1190, %v1239
        %v1241 = vlaneseq
        %v1242 = vshrl.u32 %v1241, 7
        %v1243 = vsub.s32 4, %v1242
        %v1244 = vrot.slane %v1190, %v1243
        %v1245 = vlaneseq
        %v1246 = vshrl.u32 %v1245, 7
        %v1247 = vsub.s32 5, %v1246
        %v1248 = vrot.slane %v1190, %v1247
        %v1249 = vlaneseq
        %v1250 = vshrl.u32 %v1249, 7
        %v1251 = vsub.s32 6, %v1250
        %v1252 = vrot.slane %v1190, %v1251
        %v1253 = vlaneseq
        %v1254 = vshrl.u32 %v1253, 7
        %v1255 = vsub.s32 7, %v1254
        %v1256 = vrot.slane %v1190, %v1255
        %v1305 = vunpack.c.l.b16 %v1156
        %v1306 = vunpack.c.h.b16 %v1156
        %v1307 = vunpack.c.l.b16 %v1157
        %v1308 = vunpack.c.h.b16 %v1157
        %v1309 = vunpack.c.l.b16 %v1158
        %v1310 = vunpack.c.h.b16 %v1158
        %v1311 = vunpack.c.l.b16 %v1159
        %v1312 = vunpack.c.h.b16 %v1159
        %v1313 = vunpack.c.l.b16 %v1160
        %v1314 = vunpack.c.h.b16 %v1160
        %v1315 = vunpack.c.l.b16 %v1161
        %v1316 = vunpack.c.h.b16 %v1161
        %v1317 = vunpack.c.l.b16 %v1162
        %v1318 = vunpack.c.h.b16 %v1162
        %v1319 = vunpack.c.l.b16 %v1163
        %v1320 = vunpack.c.h.b16 %v1163
        %v1321 = vunpack.c.l.b16 %v1164
        %v1322 = vunpack.c.h.b16 %v1164
        %v1323 = vunpack.c.l.b16 %v1165
        %v1324 = vunpack.c.h.b16 %v1165
        %v1325 = vunpack.c.l.b16 %v1166
        %v1326 = vunpack.c.h.b16 %v1166
        %v1327 = vunpack.c.l.b16 %v1167
        %v1328 = vunpack.c.h.b16 %v1167
        %v1329 = vunpack.c.l.b16 %v1168
        %v1330 = vunpack.c.h.b16 %v1168
        %v1331 = vunpack.c.l.b16 %v1169
        %v1332 = vunpack.c.h.b16 %v1169
        %v1333 = vunpack.c.l.b16 %v1170
        %v1334 = vunpack.c.h.b16 %v1170
        %v1335 = vunpack.c.l.b16 %v1171
        %v1336 = vunpack.c.h.b16 %v1171
        %v1337 = vunpack.c.l.b16 %v1172
        %v1338 = vunpack.c.h.b16 %v1172
        %v1339 = vunpack.c.l.b16 %v1173
        %v1340 = vunpack.c.h.b16 %v1173
        %v1341 = vunpack.c.l.b16 %v1174
        %v1342 = vunpack.c.h.b16 %v1174
        %v1343 = vunpack.c.l.b16 %v1175
        %v1344 = vunpack.c.h.b16 %v1175
        %v1345 = vunpack.c.l.b16 %v1176
        %v1346 = vunpack.c.h.b16 %v1176
        %v1347 = vunpack.c.l.b16 %v1177
        %v1348 = vunpack.c.h.b16 %v1177
        %v1349 = vunpack.c.l.b16 %v1178
        %v1350 = vunpack.c.h.b16 %v1178
        %v1351 = vunpack.c.l.b16 %v1179
        %v1352 = vunpack.c.h.b16 %v1179
        %v1353 = vunpack.c.l.b16 %v1180
        %v1354 = vunpack.c.h.b16 %v1180
        %v1355 = vunpack.c.l.b16 %v1181
        %v1356 = vunpack.c.h.b16 %v1181
        %v1357 = vunpack.c.l.b16 %v1182
        %v1358 = vunpack.c.h.b16 %v1182
        %v1359 = vunpack.c.l.b16 %v1183
        %v1360 = vunpack.c.h.b16 %v1183
        %v1361 = vunpack.c.l.b16 %v1184
        %v1362 = vunpack.c.h.b16 %v1184
        %v1363 = vunpack.c.l.b16 %v1185
        %v1364 = vunpack.c.h.b16 %v1185
        %v1365 = vunpack.c.l.b16 %v1186
        %v1366 = vunpack.c.h.b16 %v1186
        %v1367 = vunpack.c.l.b16 %v1187
        %v1368 = vunpack.c.h.b16 %v1187
        %v1369 = vpack.c.b16 %v1321, %v1305
        %v1370 = vpack.c.b16 %v1322, %v1306
        %v1371 = vpack.c.b16 %v1323, %v1307
        %v1372 = vpack.c.b16 %v1324, %v1308
        %v1373 = vpack.c.b16 %v1325, %v1309
        %v1374 = vpack.c.b16 %v1326, %v1310
        %v1375 = vpack.c.b16 %v1327, %v1311
        %v1376 = vpack.c.b16 %v1328, %v1312
        %v1377 = vpack.c.b16 %v1329, %v1313
        %v1378 = vpack.c.b16 %v1330, %v1314
        %v1379 = vpack.c.b16 %v1331, %v1315
        %v1380 = vpack.c.b16 %v1332, %v1316
        %v1381 = vpack.c.b16 %v1333, %v1317
        %v1382 = vpack.c.b16 %v1334, %v1318
        %v1383 = vpack.c.b16 %v1335, %v1319
        %v1384 = vpack.c.b16 %v1336, %v1320
        %v1385 = vpack.c.b16 %v1353, %v1337
        %v1386 = vpack.c.b16 %v1354, %v1338
        %v1387 = vpack.c.b16 %v1355, %v1339
        %v1388 = vpack.c.b16 %v1356, %v1340
        %v1389 = vpack.c.b16 %v1357, %v1341
        %v1390 = vpack.c.b16 %v1358, %v1342
        %v1391 = vpack.c.b16 %v1359, %v1343
        %v1392 = vpack.c.b16 %v1360, %v1344
        %v1393 = vpack.c.b16 %v1361, %v1345
        %v1394 = vpack.c.b16 %v1362, %v1346
        %v1395 = vpack.c.b16 %v1363, %v1347
        %v1396 = vpack.c.b16 %v1364, %v1348
        %v1397 = vpack.c.b16 %v1365, %v1349
        %v1398 = vpack.c.b16 %v1366, %v1350
        %v1399 = vpack.c.b16 %v1367, %v1351
        %v1400 = vpack.c.b16 %v1368, %v1352
        %v1434 = vsel %vm408, %v1188, 0
        %1436 = vmatprep.subr.bf16.mxu0 %v1370
        %1437 = vmatpush1.bf16.msra.mxu0 %v1369
        %1438 = vmatprep.subr.bf16.mxu0 %v1386
        %1439 = vmatpush1.bf16.msra.mxu0 %v1385
        %1440 = vmatprep.subr.bf16.mxu0 0
        %1441 = vmatpush1.bf16.msra.mxu0 0
        %1442 = vmatprep.subr.bf16.mxu0 0
        %1443 = vmatpush1.bf16.msra.mxu0 0
        %1444 = vmatprep.subr.bf16.mxu0 0
        %1445 = vmatpush1.bf16.msra.mxu0 0
        %1446 = vmatprep.subr.bf16.mxu0 0
        %1447 = vmatpush1.bf16.msra.mxu0 0
        %1448 = vmatprep.subr.bf16.mxu0 0
        %1449 = vmatpush1.bf16.msra.mxu0 0
        %1450 = vmatprep.subr.bf16.mxu0 0
        %1451 = vmatpush1.bf16.msra.mxu0 0
        %1452 = vmatprep.subr.bf16.mxu0 0
        %1453 = vmatpush1.bf16.msra.mxu0 0
        %1454 = vmatprep.subr.bf16.mxu0 0
        %1455 = vmatpush1.bf16.msra.mxu0 0
        %1456 = vmatprep.subr.bf16.mxu0 0
        %1457 = vmatpush1.bf16.msra.mxu0 0
        %1458 = vmatprep.subr.bf16.mxu0 0
        %1459 = vmatpush1.bf16.msra.mxu0 0
        %1460 = vmatprep.subr.bf16.mxu0 0
        %1461 = vmatpush1.bf16.msra.mxu0 0
        %1462 = vmatprep.subr.bf16.mxu0 0
        %1463 = vmatpush1.bf16.msra.mxu0 0
        %1464 = vmatprep.subr.bf16.mxu0 0
        %1465 = vmatpush1.bf16.msra.mxu0 0
        %1466 = vmatprep.subr.bf16.mxu0 0
        %1467 = vmatpush1.bf16.msra.mxu0 0
        %1468 = vmatprep.mubr.bf16.mxu0 0
        %1469 = vmatmul.mubr.bf16.gmra.mrb[0].mxu0 %v1434
        %v1470 = vpop.f32.mrb[0].mxu0
        %v1471 = vadd.f32 %v1196, %v1470
        %v1472 = vpop.f32.mrb[0].mxu0
        %v1473 = vadd.f32 %v1200, %v1472
        %v1474 = vpop.f32.mrb[0].mxu0
        %v1475 = vadd.f32 %v1196, %v1474
        %v1476 = vpop.f32.mrb[0].mxu0
        %v1477 = vadd.f32 %v1200, %v1476
        %1478 = vdwg.mxu0
        %1479 = vmatprep.subr.bf16.mxu0 %v1372
        %1480 = vmatpush1.bf16.msra.mxu0 %v1371
        %1481 = vmatprep.subr.bf16.mxu0 %v1388
        %1482 = vmatpush1.bf16.msra.mxu0 %v1387
        %1483 = vmatprep.subr.bf16.mxu0 0
        %1484 = vmatpush1.bf16.msra.mxu0 0
        %1485 = vmatprep.subr.bf16.mxu0 0
        %1486 = vmatpush1.bf16.msra.mxu0 0
        %1487 = vmatprep.subr.bf16.mxu0 0
        %1488 = vmatpush1.bf16.msra.mxu0 0
        %1489 = vmatprep.subr.bf16.mxu0 0
        %1490 = vmatpush1.bf16.msra.mxu0 0
        %1491 = vmatprep.subr.bf16.mxu0 0
        %1492 = vmatpush1.bf16.msra.mxu0 0
        %1493 = vmatprep.subr.bf16.mxu0 0
        %1494 = vmatpush1.bf16.msra.mxu0 0
        %1495 = vmatprep.subr.bf16.mxu0 0
        %1496 = vmatpush1.bf16.msra.mxu0 0
        %1497 = vmatprep.subr.bf16.mxu0 0
        %1498 = vmatpush1.bf16.msra.mxu0 0
        %1499 = vmatprep.subr.bf16.mxu0 0
        %1500 = vmatpush1.bf16.msra.mxu0 0
        %1501 = vmatprep.subr.bf16.mxu0 0
        %1502 = vmatpush1.bf16.msra.mxu0 0
        %1503 = vmatprep.subr.bf16.mxu0 0
        %1504 = vmatpush1.bf16.msra.mxu0 0
        %1505 = vmatprep.subr.bf16.mxu0 0
        %1506 = vmatpush1.bf16.msra.mxu0 0
        %1507 = vmatprep.subr.bf16.mxu0 0
        %1508 = vmatpush1.bf16.msra.mxu0 0
        %1509 = vmatprep.subr.bf16.mxu0 0
        %1510 = vmatpush1.bf16.msra.mxu0 0
        %1511 = vmatprep.mubr.bf16.mxu0 0
        %1512 = vmatmul.mubr.bf16.gmra.mrb[0].mxu0 %v1434
        %v1513 = vpop.f32.mrb[0].mxu0
        %v1514 = vadd.f32 %v1204, %v1513
        %v1515 = vpop.f32.mrb[0].mxu0
        %v1516 = vadd.f32 %v1208, %v1515
        %v1517 = vpop.f32.mrb[0].mxu0
        %v1518 = vadd.f32 %v1204, %v1517
        %v1519 = vpop.f32.mrb[0].mxu0
        %v1520 = vadd.f32 %v1208, %v1519
        %1521 = vdwg.mxu0
        %1522 = vmatprep.subr.bf16.mxu0 %v1374
        %1523 = vmatpush1.bf16.msra.mxu0 %v1373
        %1524 = vmatprep.subr.bf16.mxu0 %v1390
        %1525 = vmatpush1.bf16.msra.mxu0 %v1389
        %1526 = vmatprep.subr.bf16.mxu0 0
        %1527 = vmatpush1.bf16.msra.mxu0 0
        %1528 = vmatprep.subr.bf16.mxu0 0
        %1529 = vmatpush1.bf16.msra.mxu0 0
        %1530 = vmatprep.subr.bf16.mxu0 0
        %1531 = vmatpush1.bf16.msra.mxu0 0
        %1532 = vmatprep.subr.bf16.mxu0 0
        %1533 = vmatpush1.bf16.msra.mxu0 0
        %1534 = vmatprep.subr.bf16.mxu0 0
        %1535 = vmatpush1.bf16.msra.mxu0 0
        %1536 = vmatprep.subr.bf16.mxu0 0
        %1537 = vmatpush1.bf16.msra.mxu0 0
        %1538 = vmatprep.subr.bf16.mxu0 0
        %1539 = vmatpush1.bf16.msra.mxu0 0
        %1540 = vmatprep.subr.bf16.mxu0 0
        %1541 = vmatpush1.bf16.msra.mxu0 0
        %1542 = vmatprep.subr.bf16.mxu0 0
        %1543 = vmatpush1.bf16.msra.mxu0 0
        %1544 = vmatprep.subr.bf16.mxu0 0
        %1545 = vmatpush1.bf16.msra.mxu0 0
        %1546 = vmatprep.subr.bf16.mxu0 0
        %1547 = vmatpush1.bf16.msra.mxu0 0
        %1548 = vmatprep.subr.bf16.mxu0 0
        %1549 = vmatpush1.bf16.msra.mxu0 0
        %1550 = vmatprep.subr.bf16.mxu0 0
        %1551 = vmatpush1.bf16.msra.mxu0 0
        %1552 = vmatprep.subr.bf16.mxu0 0
        %1553 = vmatpush1.bf16.msra.mxu0 0
        %1554 = vmatprep.mubr.bf16.mxu0 0
        %1555 = vmatmul.mubr.bf16.gmra.mrb[0].mxu0 %v1434
        %v1556 = vpop.f32.mrb[0].mxu0
        %v1557 = vadd.f32 %v1212, %v1556
        %v1558 = vpop.f32.mrb[0].mxu0
        %v1559 = vadd.f32 %v1216, %v1558
        %v1560 = vpop.f32.mrb[0].mxu0
        %v1561 = vadd.f32 %v1212, %v1560
        %v1562 = vpop.f32.mrb[0].mxu0
        %v1563 = vadd.f32 %v1216, %v1562
        %1564 = vdwg.mxu0
        %1565 = vmatprep.subr.bf16.mxu0 %v1376
        %1566 = vmatpush1.bf16.msra.mxu0 %v1375
        %1567 = vmatprep.subr.bf16.mxu0 %v1392
        %1568 = vmatpush1.bf16.msra.mxu0 %v1391
        %1569 = vmatprep.subr.bf16.mxu0 0
        %1570 = vmatpush1.bf16.msra.mxu0 0
        %1571 = vmatprep.subr.bf16.mxu0 0
        %1572 = vmatpush1.bf16.msra.mxu0 0
        %1573 = vmatprep.subr.bf16.mxu0 0
        %1574 = vmatpush1.bf16.msra.mxu0 0
        %1575 = vmatprep.subr.bf16.mxu0 0
        %1576 = vmatpush1.bf16.msra.mxu0 0
        %1577 = vmatprep.subr.bf16.mxu0 0
        %1578 = vmatpush1.bf16.msra.mxu0 0
        %1579 = vmatprep.subr.bf16.mxu0 0
        %1580 = vmatpush1.bf16.msra.mxu0 0
        %1581 = vmatprep.subr.bf16.mxu0 0
        %1582 = vmatpush1.bf16.msra.mxu0 0
        %1583 = vmatprep.subr.bf16.mxu0 0
        %1584 = vmatpush1.bf16.msra.mxu0 0
        %1585 = vmatprep.subr.bf16.mxu0 0
        %1586 = vmatpush1.bf16.msra.mxu0 0
        %1587 = vmatprep.subr.bf16.mxu0 0
        %1588 = vmatpush1.bf16.msra.mxu0 0
        %1589 = vmatprep.subr.bf16.mxu0 0
        %1590 = vmatpush1.bf16.msra.mxu0 0
        %1591 = vmatprep.subr.bf16.mxu0 0
        %1592 = vmatpush1.bf16.msra.mxu0 0
        %1593 = vmatprep.subr.bf16.mxu0 0
        %1594 = vmatpush1.bf16.msra.mxu0 0
        %1595 = vmatprep.subr.bf16.mxu0 0
        %1596 = vmatpush1.bf16.msra.mxu0 0
        %1597 = vmatprep.mubr.bf16.mxu0 0
        %1598 = vmatmul.mubr.bf16.gmra.mrb[0].mxu0 %v1434
        %v1599 = vpop.f32.mrb[0].mxu0
        %v1600 = vadd.f32 %v1220, %v1599
        %v1601 = vpop.f32.mrb[0].mxu0
        %v1602 = vadd.f32 %v1224, %v1601
        %v1603 = vpop.f32.mrb[0].mxu0
        %v1604 = vadd.f32 %v1220, %v1603
        %v1605 = vpop.f32.mrb[0].mxu0
        %v1606 = vadd.f32 %v1224, %v1605
        %1607 = vdwg.mxu0
        %1608 = vmatprep.subr.bf16.mxu0 %v1378
        %1609 = vmatpush1.bf16.msra.mxu0 %v1377
        %1610 = vmatprep.subr.bf16.mxu0 %v1394
        %1611 = vmatpush1.bf16.msra.mxu0 %v1393
        %1612 = vmatprep.subr.bf16.mxu0 0
        %1613 = vmatpush1.bf16.msra.mxu0 0
        %1614 = vmatprep.subr.bf16.mxu0 0
        %1615 = vmatpush1.bf16.msra.mxu0 0
        %1616 = vmatprep.subr.bf16.mxu0 0
        %1617 = vmatpush1.bf16.msra.mxu0 0
        %1618 = vmatprep.subr.bf16.mxu0 0
        %1619 = vmatpush1.bf16.msra.mxu0 0
        %1620 = vmatprep.subr.bf16.mxu0 0
        %1621 = vmatpush1.bf16.msra.mxu0 0
        %1622 = vmatprep.subr.bf16.mxu0 0
        %1623 = vmatpush1.bf16.msra.mxu0 0
        %1624 = vmatprep.subr.bf16.mxu0 0
        %1625 = vmatpush1.bf16.msra.mxu0 0
        %1626 = vmatprep.subr.bf16.mxu0 0
        %1627 = vmatpush1.bf16.msra.mxu0 0
        %1628 = vmatprep.subr.bf16.mxu0 0
        %1629 = vmatpush1.bf16.msra.mxu0 0
        %1630 = vmatprep.subr.bf16.mxu0 0
        %1631 = vmatpush1.bf16.msra.mxu0 0
        %1632 = vmatprep.subr.bf16.mxu0 0
        %1633 = vmatpush1.bf16.msra.mxu0 0
        %1634 = vmatprep.subr.bf16.mxu0 0
        %1635 = vmatpush1.bf16.msra.mxu0 0
        %1636 = vmatprep.subr.bf16.mxu0 0
        %1637 = vmatpush1.bf16.msra.mxu0 0
        %1638 = vmatprep.subr.bf16.mxu0 0
        %1639 = vmatpush1.bf16.msra.mxu0 0
        %1640 = vmatprep.mubr.bf16.mxu0 0
        %1641 = vmatmul.mubr.bf16.gmra.mrb[0].mxu0 %v1434
        %v1642 = vpop.f32.mrb[0].mxu0
        %v1643 = vadd.f32 %v1228, %v1642
        %v1644 = vpop.f32.mrb[0].mxu0
        %v1645 = vadd.f32 %v1232, %v1644
        %v1646 = vpop.f32.mrb[0].mxu0
        %v1647 = vadd.f32 %v1228, %v1646
        %v1648 = vpop.f32.mrb[0].mxu0
        %v1649 = vadd.f32 %v1232, %v1648
        %1650 = vdwg.mxu0
        %1651 = vmatprep.subr.bf16.mxu0 %v1380
        %1652 = vmatpush1.bf16.msra.mxu0 %v1379
        %1653 = vmatprep.subr.bf16.mxu0 %v1396
        %1654 = vmatpush1.bf16.msra.mxu0 %v1395
        %1655 = vmatprep.subr.bf16.mxu0 0
        %1656 = vmatpush1.bf16.msra.mxu0 0
        %1657 = vmatprep.subr.bf16.mxu0 0
        %1658 = vmatpush1.bf16.msra.mxu0 0
        %1659 = vmatprep.subr.bf16.mxu0 0
        %1660 = vmatpush1.bf16.msra.mxu0 0
        %1661 = vmatprep.subr.bf16.mxu0 0
        %1662 = vmatpush1.bf16.msra.mxu0 0
        %1663 = vmatprep.subr.bf16.mxu0 0
        %1664 = vmatpush1.bf16.msra.mxu0 0
        %1665 = vmatprep.subr.bf16.mxu0 0
        %1666 = vmatpush1.bf16.msra.mxu0 0
        %1667 = vmatprep.subr.bf16.mxu0 0
        %1668 = vmatpush1.bf16.msra.mxu0 0
        %1669 = vmatprep.subr.bf16.mxu0 0
        %1670 = vmatpush1.bf16.msra.mxu0 0
        %1671 = vmatprep.subr.bf16.mxu0 0
        %1672 = vmatpush1.bf16.msra.mxu0 0
        %1673 = vmatprep.subr.bf16.mxu0 0
        %1674 = vmatpush1.bf16.msra.mxu0 0
        %1675 = vmatprep.subr.bf16.mxu0 0
        %1676 = vmatpush1.bf16.msra.mxu0 0
        %1677 = vmatprep.subr.bf16.mxu0 0
        %1678 = vmatpush1.bf16.msra.mxu0 0
        %1679 = vmatprep.subr.bf16.mxu0 0
        %1680 = vmatpush1.bf16.msra.mxu0 0
        %1681 = vmatprep.subr.bf16.mxu0 0
        %1682 = vmatpush1.bf16.msra.mxu0 0
        %1683 = vmatprep.mubr.bf16.mxu0 0
        %1684 = vmatmul.mubr.bf16.gmra.mrb[0].mxu0 %v1434
        %v1685 = vpop.f32.mrb[0].mxu0
        %v1686 = vadd.f32 %v1236, %v1685
        %v1687 = vpop.f32.mrb[0].mxu0
        %v1688 = vadd.f32 %v1240, %v1687
        %v1689 = vpop.f32.mrb[0].mxu0
        %v1690 = vadd.f32 %v1236, %v1689
        %v1691 = vpop.f32.mrb[0].mxu0
        %v1692 = vadd.f32 %v1240, %v1691
        %1693 = vdwg.mxu0
        %1694 = vmatprep.subr.bf16.mxu0 %v1382
        %1695 = vmatpush1.bf16.msra.mxu0 %v1381
        %1696 = vmatprep.subr.bf16.mxu0 %v1398
        %1697 = vmatpush1.bf16.msra.mxu0 %v1397
        %1698 = vmatprep.subr.bf16.mxu0 0
        %1699 = vmatpush1.bf16.msra.mxu0 0
        %1700 = vmatprep.subr.bf16.mxu0 0
        %1701 = vmatpush1.bf16.msra.mxu0 0
        %1702 = vmatprep.subr.bf16.mxu0 0
        %1703 = vmatpush1.bf16.msra.mxu0 0
        %1704 = vmatprep.subr.bf16.mxu0 0
        %1705 = vmatpush1.bf16.msra.mxu0 0
        %1706 = vmatprep.subr.bf16.mxu0 0
        %1707 = vmatpush1.bf16.msra.mxu0 0
        %1708 = vmatprep.subr.bf16.mxu0 0
        %1709 = vmatpush1.bf16.msra.mxu0 0
        %1710 = vmatprep.subr.bf16.mxu0 0
        %1711 = vmatpush1.bf16.msra.mxu0 0
        %1712 = vmatprep.subr.bf16.mxu0 0
        %1713 = vmatpush1.bf16.msra.mxu0 0
        %1714 = vmatprep.subr.bf16.mxu0 0
        %1715 = vmatpush1.bf16.msra.mxu0 0
        %1716 = vmatprep.subr.bf16.mxu0 0
        %1717 = vmatpush1.bf16.msra.mxu0 0
        %1718 = vmatprep.subr.bf16.mxu0 0
        %1719 = vmatpush1.bf16.msra.mxu0 0
        %1720 = vmatprep.subr.bf16.mxu0 0
        %1721 = vmatpush1.bf16.msra.mxu0 0
        %1722 = vmatprep.subr.bf16.mxu0 0
        %1723 = vmatpush1.bf16.msra.mxu0 0
        %1724 = vmatprep.subr.bf16.mxu0 0
        %1725 = vmatpush1.bf16.msra.mxu0 0
        %1726 = vmatprep.mubr.bf16.mxu0 0
        %1727 = vmatmul.mubr.bf16.gmra.mrb[0].mxu0 %v1434
        %v1728 = vpop.f32.mrb[0].mxu0
        %v1729 = vadd.f32 %v1244, %v1728
        %v1730 = vpop.f32.mrb[0].mxu0
        %v1731 = vadd.f32 %v1248, %v1730
        %v1732 = vpop.f32.mrb[0].mxu0
        %v1733 = vadd.f32 %v1244, %v1732
        %v1734 = vpop.f32.mrb[0].mxu0
        %v1735 = vadd.f32 %v1248, %v1734
        %1736 = vdwg.mxu0
        %1737 = vmatprep.subr.bf16.mxu0 %v1384
        %1738 = vmatpush1.bf16.msra.mxu0 %v1383
        %1739 = vmatprep.subr.bf16.mxu0 %v1400
        %1740 = vmatpush1.bf16.msra.mxu0 %v1399
        %1741 = vmatprep.subr.bf16.mxu0 0
        %1742 = vmatpush1.bf16.msra.mxu0 0
        %1743 = vmatprep.subr.bf16.mxu0 0
        %1744 = vmatpush1.bf16.msra.mxu0 0
        %1745 = vmatprep.subr.bf16.mxu0 0
        %1746 = vmatpush1.bf16.msra.mxu0 0
        %1747 = vmatprep.subr.bf16.mxu0 0
        %1748 = vmatpush1.bf16.msra.mxu0 0
        %1749 = vmatprep.subr.bf16.mxu0 0
        %1750 = vmatpush1.bf16.msra.mxu0 0
        %1751 = vmatprep.subr.bf16.mxu0 0
        %1752 = vmatpush1.bf16.msra.mxu0 0
        %1753 = vmatprep.subr.bf16.mxu0 0
        %1754 = vmatpush1.bf16.msra.mxu0 0
        %1755 = vmatprep.subr.bf16.mxu0 0
        %1756 = vmatpush1.bf16.msra.mxu0 0
        %1757 = vmatprep.subr.bf16.mxu0 0
        %1758 = vmatpush1.bf16.msra.mxu0 0
        %1759 = vmatprep.subr.bf16.mxu0 0
        %1760 = vmatpush1.bf16.msra.mxu0 0
        %1761 = vmatprep.subr.bf16.mxu0 0
        %1762 = vmatpush1.bf16.msra.mxu0 0
        %1763 = vmatprep.subr.bf16.mxu0 0
        %1764 = vmatpush1.bf16.msra.mxu0 0
        %1765 = vmatprep.subr.bf16.mxu0 0
        %1766 = vmatpush1.bf16.msra.mxu0 0
        %1767 = vmatprep.subr.bf16.mxu0 0
        %1768 = vmatpush1.bf16.msra.mxu0 0
        %1769 = vmatprep.mubr.bf16.mxu0 0
        %1770 = vmatmul.mubr.bf16.gmra.mrb[0].mxu0 %v1434
        %v1771 = vpop.f32.mrb[0].mxu0
        %v1772 = vadd.f32 %v1252, %v1771
        %v1773 = vpop.f32.mrb[0].mxu0
        %v1774 = vadd.f32 %v1256, %v1773
        %v1775 = vpop.f32.mrb[0].mxu0
        %v1776 = vadd.f32 %v1252, %v1775
        %v1777 = vpop.f32.mrb[0].mxu0
        %v1778 = vadd.f32 %v1256, %v1777
        %1779 = vdwg.mxu0
        %v1780 = vmax.f32 %v1471, 0.0
        %v1781 = vmax.f32 %v1473, 0.0
        %v1782 = vmax.f32 %v1514, 0.0
        %v1783 = vmax.f32 %v1516, 0.0
        %v1784 = vmax.f32 %v1557, 0.0
        %v1785 = vmax.f32 %v1559, 0.0
        %v1786 = vmax.f32 %v1600, 0.0
        %v1787 = vmax.f32 %v1602, 0.0
        %v1788 = vmax.f32 %v1643, 0.0
        %v1789 = vmax.f32 %v1645, 0.0
        %v1790 = vmax.f32 %v1686, 0.0
        %v1791 = vmax.f32 %v1688, 0.0
        %v1792 = vmax.f32 %v1729, 0.0
        %v1793 = vmax.f32 %v1731, 0.0
        %v1794 = vmax.f32 %v1772, 0.0
        %v1795 = vmax.f32 %v1774, 0.0
        %v1796 = vmax.f32 %v1475, 0.0
        %v1797 = vmax.f32 %v1477, 0.0
        %v1798 = vmax.f32 %v1518, 0.0
        %v1799 = vmax.f32 %v1520, 0.0
        %v1800 = vmax.f32 %v1561, 0.0
        %v1801 = vmax.f32 %v1563, 0.0
        %v1802 = vmax.f32 %v1604, 0.0
        %v1803 = vmax.f32 %v1606, 0.0
        %v1804 = vmax.f32 %v1647, 0.0
        %v1805 = vmax.f32 %v1649, 0.0
        %v1806 = vmax.f32 %v1690, 0.0
        %v1807 = vmax.f32 %v1692, 0.0
        %v1808 = vmax.f32 %v1733, 0.0
        %v1809 = vmax.f32 %v1735, 0.0
        %v1810 = vmax.f32 %v1776, 0.0
        %v1811 = vmax.f32 %v1778, 0.0
        %v1812 = vpack.c.bf16 %v1796, %v1780
        %v1813 = vpack.c.bf16 %v1797, %v1781
        %v1814 = vpack.c.bf16 %v1798, %v1782
        %v1815 = vpack.c.bf16 %v1799, %v1783
        %v1816 = vpack.c.bf16 %v1800, %v1784
        %v1817 = vpack.c.bf16 %v1801, %v1785
        %v1818 = vpack.c.bf16 %v1802, %v1786
        %v1819 = vpack.c.bf16 %v1803, %v1787
        %v1820 = vpack.c.bf16 %v1804, %v1788
        %v1821 = vpack.c.bf16 %v1805, %v1789
        %v1822 = vpack.c.bf16 %v1806, %v1790
        %v1823 = vpack.c.bf16 %v1807, %v1791
        %v1824 = vpack.c.bf16 %v1808, %v1792
        %v1825 = vpack.c.bf16 %v1809, %v1793
        %v1826 = vpack.c.bf16 %v1810, %v1794
        %v1827 = vpack.c.bf16 %v1811, %v1795
        %v1828 = vld [vmem:[%s270] sm:$0xf]
        %v1829 = vld [vmem:[%s270 + $0x4] sm:$0xf]
        %v1830 = vld [vmem:[%s270 + $0x8] sm:$0xf]
        %v1831 = vld [vmem:[%s270 + $0xc] sm:$0xf]
        %v1832 = vld [vmem:[%s270 + $0x10] sm:$0xf]
        %v1833 = vld [vmem:[%s270 + $0x14] sm:$0xf]
        %v1834 = vld [vmem:[%s270 + $0x18] sm:$0xf]
        %v1835 = vld [vmem:[%s270 + $0x1c] sm:$0xf]
        %v1836 = vld [vmem:[%s270 + $0x20] sm:$0xf]
        %v1837 = vld [vmem:[%s270 + $0x24] sm:$0xf]
        %v1838 = vld [vmem:[%s270 + $0x28] sm:$0xf]
        %v1839 = vld [vmem:[%s270 + $0x2c] sm:$0xf]
        %v1840 = vld [vmem:[%s270 + $0x30] sm:$0xf]
        %v1841 = vld [vmem:[%s270 + $0x34] sm:$0xf]
        %v1842 = vld [vmem:[%s270 + $0x38] sm:$0xf]
        %v1843 = vld [vmem:[%s270 + $0x3c] sm:$0xf]
        %v1844 = vld [vmem:[%s270 + $0x40] sm:$0xf]
        %v1845 = vld [vmem:[%s270 + $0x44] sm:$0xf]
        %v1846 = vld [vmem:[%s270 + $0x48] sm:$0xf]
        %v1847 = vld [vmem:[%s270 + $0x4c] sm:$0xf]
        %v1848 = vld [vmem:[%s270 + $0x50] sm:$0xf]
        %v1849 = vld [vmem:[%s270 + $0x54] sm:$0xf]
        %v1850 = vld [vmem:[%s270 + $0x58] sm:$0xf]
        %v1851 = vld [vmem:[%s270 + $0x5c] sm:$0xf]
        %v1852 = vld [vmem:[%s270 + $0x60] sm:$0xf]
        %v1853 = vld [vmem:[%s270 + $0x64] sm:$0xf]
        %v1854 = vld [vmem:[%s270 + $0x68] sm:$0xf]
        %v1855 = vld [vmem:[%s270 + $0x6c] sm:$0xf]
        %v1856 = vld [vmem:[%s270 + $0x70] sm:$0xf]
        %v1857 = vld [vmem:[%s270 + $0x74] sm:$0xf]
        %v1858 = vld [vmem:[%s270 + $0x78] sm:$0xf]
        %v1859 = vld [vmem:[%s270 + $0x7c] sm:$0xf]
        %v1860 = vld [vmem:[%s270 + $0x80] sm:$0xf]
        %v1861 = vld [vmem:[%s270 + $0x84] sm:$0xf]
        %v1862 = vld [vmem:[%s270 + $0x88] sm:$0xf]
        %v1863 = vld [vmem:[%s270 + $0x8c] sm:$0xf]
        %v1864 = vld [vmem:[%s270 + $0x90] sm:$0xf]
        %v1865 = vld [vmem:[%s270 + $0x94] sm:$0xf]
        %v1866 = vld [vmem:[%s270 + $0x98] sm:$0xf]
        %v1867 = vld [vmem:[%s270 + $0x9c] sm:$0xf]
        %v1868 = vld [vmem:[%s270 + $0xa0] sm:$0xf]
        %v1869 = vld [vmem:[%s270 + $0xa4] sm:$0xf]
        %v1870 = vld [vmem:[%s270 + $0xa8] sm:$0xf]
        %v1871 = vld [vmem:[%s270 + $0xac] sm:$0xf]
        %v1872 = vld [vmem:[%s270 + $0xb0] sm:$0xf]
        %v1873 = vld [vmem:[%s270 + $0xb4] sm:$0xf]
        %v1874 = vld [vmem:[%s270 + $0xb8] sm:$0xf]
        %v1875 = vld [vmem:[%s270 + $0xbc] sm:$0xf]
        %v1876 = vld [vmem:[%s270 + $0xc0] sm:$0xf]
        %v1877 = vld [vmem:[%s270 + $0xc4] sm:$0xf]
        %v1878 = vld [vmem:[%s270 + $0xc8] sm:$0xf]
        %v1879 = vld [vmem:[%s270 + $0xcc] sm:$0xf]
        %v1880 = vld [vmem:[%s270 + $0xd0] sm:$0xf]
        %v1881 = vld [vmem:[%s270 + $0xd4] sm:$0xf]
        %v1882 = vld [vmem:[%s270 + $0xd8] sm:$0xf]
        %v1883 = vld [vmem:[%s270 + $0xdc] sm:$0xf]
        %v1884 = vld [vmem:[%s270 + $0xe0] sm:$0xf]
        %v1885 = vld [vmem:[%s270 + $0xe4] sm:$0xf]
        %v1886 = vld [vmem:[%s270 + $0xe8] sm:$0xf]
        %v1887 = vld [vmem:[%s270 + $0xec] sm:$0xf]
        %v1888 = vld [vmem:[%s270 + $0xf0] sm:$0xf]
        %v1889 = vld [vmem:[%s270 + $0xf4] sm:$0xf]
        %v1890 = vld [vmem:[%s270 + $0xf8] sm:$0xf]
        %v1891 = vld [vmem:[%s270 + $0xfc] sm:$0xf]
        %v1892 = vld [vmem:[%s270 + $0x100] sm:$0xf]
        %v1893 = vld [vmem:[%s270 + $0x104] sm:$0xf]
        %v1894 = vld [vmem:[%s270 + $0x108] sm:$0xf]
        %v1895 = vld [vmem:[%s270 + $0x10c] sm:$0xf]
        %v1896 = vld [vmem:[%s270 + $0x110] sm:$0xf]
        %v1897 = vld [vmem:[%s270 + $0x114] sm:$0xf]
        %v1898 = vld [vmem:[%s270 + $0x118] sm:$0xf]
        %v1899 = vld [vmem:[%s270 + $0x11c] sm:$0xf]
        %v1900 = vld [vmem:[%s270 + $0x120] sm:$0xf]
        %v1901 = vld [vmem:[%s270 + $0x124] sm:$0xf]
        %v1902 = vld [vmem:[%s270 + $0x128] sm:$0xf]
        %v1903 = vld [vmem:[%s270 + $0x12c] sm:$0xf]
        %v1904 = vld [vmem:[%s270 + $0x130] sm:$0xf]
        %v1905 = vld [vmem:[%s270 + $0x134] sm:$0xf]
        %v1906 = vld [vmem:[%s270 + $0x138] sm:$0xf]
        %v1907 = vld [vmem:[%s270 + $0x13c] sm:$0xf]
        %v1908 = vld [vmem:[%s270 + $0x140] sm:$0xf]
        %v1909 = vld [vmem:[%s270 + $0x144] sm:$0xf]
        %v1910 = vld [vmem:[%s270 + $0x148] sm:$0xf]
        %v1911 = vld [vmem:[%s270 + $0x14c] sm:$0xf]
        %v1912 = vld [vmem:[%s270 + $0x150] sm:$0xf]
        %v1913 = vld [vmem:[%s270 + $0x154] sm:$0xf]
        %v1914 = vld [vmem:[%s270 + $0x158] sm:$0xf]
        %v1915 = vld [vmem:[%s270 + $0x15c] sm:$0xf]
        %v1916 = vld [vmem:[%s270 + $0x160] sm:$0xf]
        %v1917 = vld [vmem:[%s270 + $0x164] sm:$0xf]
        %v1918 = vld [vmem:[%s270 + $0x168] sm:$0xf]
        %v1919 = vld [vmem:[%s270 + $0x16c] sm:$0xf]
        %v1920 = vld [vmem:[%s270 + $0x170] sm:$0xf]
        %v1921 = vld [vmem:[%s270 + $0x174] sm:$0xf]
        %v1922 = vld [vmem:[%s270 + $0x178] sm:$0xf]
        %v1923 = vld [vmem:[%s270 + $0x17c] sm:$0xf]
        %v1924 = vld [vmem:[%s270 + $0x180] sm:$0xf]
        %v1925 = vld [vmem:[%s270 + $0x184] sm:$0xf]
        %v1926 = vld [vmem:[%s270 + $0x188] sm:$0xf]
        %v1927 = vld [vmem:[%s270 + $0x18c] sm:$0xf]
        %v1928 = vld [vmem:[%s270 + $0x190] sm:$0xf]
        %v1929 = vld [vmem:[%s270 + $0x194] sm:$0xf]
        %v1930 = vld [vmem:[%s270 + $0x198] sm:$0xf]
        %v1931 = vld [vmem:[%s270 + $0x19c] sm:$0xf]
        %v1932 = vld [vmem:[%s270 + $0x1a0] sm:$0xf]
        %v1933 = vld [vmem:[%s270 + $0x1a4] sm:$0xf]
        %v1934 = vld [vmem:[%s270 + $0x1a8] sm:$0xf]
        %v1935 = vld [vmem:[%s270 + $0x1ac] sm:$0xf]
        %v1936 = vld [vmem:[%s270 + $0x1b0] sm:$0xf]
        %v1937 = vld [vmem:[%s270 + $0x1b4] sm:$0xf]
        %v1938 = vld [vmem:[%s270 + $0x1b8] sm:$0xf]
        %v1939 = vld [vmem:[%s270 + $0x1bc] sm:$0xf]
        %v1940 = vld [vmem:[%s270 + $0x1c0] sm:$0xf]
        %v1941 = vld [vmem:[%s270 + $0x1c4] sm:$0xf]
        %v1942 = vld [vmem:[%s270 + $0x1c8] sm:$0xf]
        %v1943 = vld [vmem:[%s270 + $0x1cc] sm:$0xf]
        %v1944 = vld [vmem:[%s270 + $0x1d0] sm:$0xf]
        %v1945 = vld [vmem:[%s270 + $0x1d4] sm:$0xf]
        %v1946 = vld [vmem:[%s270 + $0x1d8] sm:$0xf]
        %v1947 = vld [vmem:[%s270 + $0x1dc] sm:$0xf]
        %v1948 = vld [vmem:[%s270 + $0x1e0] sm:$0xf]
        %v1949 = vld [vmem:[%s270 + $0x1e4] sm:$0xf]
        %v1950 = vld [vmem:[%s270 + $0x1e8] sm:$0xf]
        %v1951 = vld [vmem:[%s270 + $0x1ec] sm:$0xf]
        %v1952 = vld [vmem:[%s270 + $0x1f0] sm:$0xf]
        %v1953 = vld [vmem:[%s270 + $0x1f4] sm:$0xf]
        %v1954 = vld [vmem:[%s270 + $0x1f8] sm:$0xf]
        %v1955 = vld [vmem:[%s270 + $0x1fc] sm:$0xf]
        %v1956 = vld [vmem:[%s270 + $0x200] sm:$0xf]
        %v1957 = vld [vmem:[%s270 + $0x204] sm:$0xf]
        %v1958 = vld [vmem:[%s270 + $0x208] sm:$0xf]
        %v1959 = vld [vmem:[%s270 + $0x20c] sm:$0xf]
        %v1960 = vld [vmem:[%s270 + $0x210] sm:$0xf]
        %v1961 = vld [vmem:[%s270 + $0x214] sm:$0xf]
        %v1962 = vld [vmem:[%s270 + $0x218] sm:$0xf]
        %v1963 = vld [vmem:[%s270 + $0x21c] sm:$0xf]
        %v1964 = vld [vmem:[%s270 + $0x220] sm:$0xf]
        %v1965 = vld [vmem:[%s270 + $0x224] sm:$0xf]
        %v1966 = vld [vmem:[%s270 + $0x228] sm:$0xf]
        %v1967 = vld [vmem:[%s270 + $0x22c] sm:$0xf]
        %v1968 = vld [vmem:[%s270 + $0x230] sm:$0xf]
        %v1969 = vld [vmem:[%s270 + $0x234] sm:$0xf]
        %v1970 = vld [vmem:[%s270 + $0x238] sm:$0xf]
        %v1971 = vld [vmem:[%s270 + $0x23c] sm:$0xf]
        %v1972 = vld [vmem:[%s270 + $0x240] sm:$0xf]
        %v1973 = vld [vmem:[%s270 + $0x244] sm:$0xf]
        %v1974 = vld [vmem:[%s270 + $0x248] sm:$0xf]
        %v1975 = vld [vmem:[%s270 + $0x24c] sm:$0xf]
        %v1976 = vld [vmem:[%s270 + $0x250] sm:$0xf]
        %v1977 = vld [vmem:[%s270 + $0x254] sm:$0xf]
        %v1978 = vld [vmem:[%s270 + $0x258] sm:$0xf]
        %v1979 = vld [vmem:[%s270 + $0x25c] sm:$0xf]
        %v1980 = vld [vmem:[%s270 + $0x260] sm:$0xf]
        %v1981 = vld [vmem:[%s270 + $0x264] sm:$0xf]
        %v1982 = vld [vmem:[%s270 + $0x268] sm:$0xf]
        %v1983 = vld [vmem:[%s270 + $0x26c] sm:$0xf]
        %v1984 = vld [vmem:[%s270 + $0x270] sm:$0xf]
        %v1985 = vld [vmem:[%s270 + $0x274] sm:$0xf]
        %v1986 = vld [vmem:[%s270 + $0x278] sm:$0xf]
        %v1987 = vld [vmem:[%s270 + $0x27c] sm:$0xf]
        %v1988 = vld [vmem:[%s270 + $0x280] sm:$0xf]
        %v1989 = vld [vmem:[%s270 + $0x284] sm:$0xf]
        %v1990 = vld [vmem:[%s270 + $0x288] sm:$0xf]
        %v1991 = vld [vmem:[%s270 + $0x28c] sm:$0xf]
        %v1992 = vld [vmem:[%s270 + $0x290] sm:$0xf]
        %v1993 = vld [vmem:[%s270 + $0x294] sm:$0xf]
        %v1994 = vld [vmem:[%s270 + $0x298] sm:$0xf]
        %v1995 = vld [vmem:[%s270 + $0x29c] sm:$0xf]
        %v1996 = vld [vmem:[%s270 + $0x2a0] sm:$0xf]
        %v1997 = vld [vmem:[%s270 + $0x2a4] sm:$0xf]
        %v1998 = vld [vmem:[%s270 + $0x2a8] sm:$0xf]
        %v1999 = vld [vmem:[%s270 + $0x2ac] sm:$0xf]
        %v2000 = vld [vmem:[%s270 + $0x2b0] sm:$0xf]
        %v2001 = vld [vmem:[%s270 + $0x2b4] sm:$0xf]
        %v2002 = vld [vmem:[%s270 + $0x2b8] sm:$0xf]
        %v2003 = vld [vmem:[%s270 + $0x2bc] sm:$0xf]
        %v2004 = vld [vmem:[%s270 + $0x2c0] sm:$0xf]
        %v2005 = vld [vmem:[%s270 + $0x2c4] sm:$0xf]
        %v2006 = vld [vmem:[%s270 + $0x2c8] sm:$0xf]
        %v2007 = vld [vmem:[%s270 + $0x2cc] sm:$0xf]
        %v2008 = vld [vmem:[%s270 + $0x2d0] sm:$0xf]
        %v2009 = vld [vmem:[%s270 + $0x2d4] sm:$0xf]
        %v2010 = vld [vmem:[%s270 + $0x2d8] sm:$0xf]
        %v2011 = vld [vmem:[%s270 + $0x2dc] sm:$0xf]
        %v2012 = vld [vmem:[%s270 + $0x2e0] sm:$0xf]
        %v2013 = vld [vmem:[%s270 + $0x2e4] sm:$0xf]
        %v2014 = vld [vmem:[%s270 + $0x2e8] sm:$0xf]
        %v2015 = vld [vmem:[%s270 + $0x2ec] sm:$0xf]
        %v2016 = vld [vmem:[%s270 + $0x2f0] sm:$0xf]
        %v2017 = vld [vmem:[%s270 + $0x2f4] sm:$0xf]
        %v2018 = vld [vmem:[%s270 + $0x2f8] sm:$0xf]
        %v2019 = vld [vmem:[%s270 + $0x2fc] sm:$0xf]
        %v2020 = vld [vmem:[%s270 + $0x300] sm:$0xf]
        %v2021 = vld [vmem:[%s270 + $0x304] sm:$0xf]
        %v2022 = vld [vmem:[%s270 + $0x308] sm:$0xf]
        %v2023 = vld [vmem:[%s270 + $0x30c] sm:$0xf]
        %v2024 = vld [vmem:[%s270 + $0x310] sm:$0xf]
        %v2025 = vld [vmem:[%s270 + $0x314] sm:$0xf]
        %v2026 = vld [vmem:[%s270 + $0x318] sm:$0xf]
        %v2027 = vld [vmem:[%s270 + $0x31c] sm:$0xf]
        %v2028 = vld [vmem:[%s270 + $0x320] sm:$0xf]
        %v2029 = vld [vmem:[%s270 + $0x324] sm:$0xf]
        %v2030 = vld [vmem:[%s270 + $0x328] sm:$0xf]
        %v2031 = vld [vmem:[%s270 + $0x32c] sm:$0xf]
        %v2032 = vld [vmem:[%s270 + $0x330] sm:$0xf]
        %v2033 = vld [vmem:[%s270 + $0x334] sm:$0xf]
        %v2034 = vld [vmem:[%s270 + $0x338] sm:$0xf]
        %v2035 = vld [vmem:[%s270 + $0x33c] sm:$0xf]
        %v2036 = vld [vmem:[%s270 + $0x340] sm:$0xf]
        %v2037 = vld [vmem:[%s270 + $0x344] sm:$0xf]
        %v2038 = vld [vmem:[%s270 + $0x348] sm:$0xf]
        %v2039 = vld [vmem:[%s270 + $0x34c] sm:$0xf]
        %v2040 = vld [vmem:[%s270 + $0x350] sm:$0xf]
        %v2041 = vld [vmem:[%s270 + $0x354] sm:$0xf]
        %v2042 = vld [vmem:[%s270 + $0x358] sm:$0xf]
        %v2043 = vld [vmem:[%s270 + $0x35c] sm:$0xf]
        %v2044 = vld [vmem:[%s270 + $0x360] sm:$0xf]
        %v2045 = vld [vmem:[%s270 + $0x364] sm:$0xf]
        %v2046 = vld [vmem:[%s270 + $0x368] sm:$0xf]
        %v2047 = vld [vmem:[%s270 + $0x36c] sm:$0xf]
        %v2048 = vld [vmem:[%s270 + $0x370] sm:$0xf]
        %v2049 = vld [vmem:[%s270 + $0x374] sm:$0xf]
        %v2050 = vld [vmem:[%s270 + $0x378] sm:$0xf]
        %v2051 = vld [vmem:[%s270 + $0x37c] sm:$0xf]
        %v2052 = vld [vmem:[%s270 + $0x380] sm:$0xf]
        %v2053 = vld [vmem:[%s270 + $0x384] sm:$0xf]
        %v2054 = vld [vmem:[%s270 + $0x388] sm:$0xf]
        %v2055 = vld [vmem:[%s270 + $0x38c] sm:$0xf]
        %v2056 = vld [vmem:[%s270 + $0x390] sm:$0xf]
        %v2057 = vld [vmem:[%s270 + $0x394] sm:$0xf]
        %v2058 = vld [vmem:[%s270 + $0x398] sm:$0xf]
        %v2059 = vld [vmem:[%s270 + $0x39c] sm:$0xf]
        %v2060 = vld [vmem:[%s270 + $0x3a0] sm:$0xf]
        %v2061 = vld [vmem:[%s270 + $0x3a4] sm:$0xf]
        %v2062 = vld [vmem:[%s270 + $0x3a8] sm:$0xf]
        %v2063 = vld [vmem:[%s270 + $0x3ac] sm:$0xf]
        %v2064 = vld [vmem:[%s270 + $0x3b0] sm:$0xf]
        %v2065 = vld [vmem:[%s270 + $0x3b4] sm:$0xf]
        %v2066 = vld [vmem:[%s270 + $0x3b8] sm:$0xf]
        %v2067 = vld [vmem:[%s270 + $0x3bc] sm:$0xf]
        %v2068 = vld [vmem:[%s270 + $0x3c0] sm:$0xf]
        %v2069 = vld [vmem:[%s270 + $0x3c4] sm:$0xf]
        %v2070 = vld [vmem:[%s270 + $0x3c8] sm:$0xf]
        %v2071 = vld [vmem:[%s270 + $0x3cc] sm:$0xf]
        %v2072 = vld [vmem:[%s270 + $0x3d0] sm:$0xf]
        %v2073 = vld [vmem:[%s270 + $0x3d4] sm:$0xf]
        %v2074 = vld [vmem:[%s270 + $0x3d8] sm:$0xf]
        %v2075 = vld [vmem:[%s270 + $0x3dc] sm:$0xf]
        %v2076 = vld [vmem:[%s270 + $0x3e0] sm:$0xf]
        %v2077 = vld [vmem:[%s270 + $0x3e4] sm:$0xf]
        %v2078 = vld [vmem:[%s270 + $0x3e8] sm:$0xf]
        %v2079 = vld [vmem:[%s270 + $0x3ec] sm:$0xf]
        %v2080 = vld [vmem:[%s270 + $0x3f0] sm:$0xf]
        %v2081 = vld [vmem:[%s270 + $0x3f4] sm:$0xf]
        %v2082 = vld [vmem:[%s270 + $0x3f8] sm:$0xf]
        %v2083 = vld [vmem:[%s270 + $0x3fc] sm:$0xf]
        %v2084 = vld [vmem:[%s274 + $0x3] sm:$0x1]
        %v2086 = vlaneseq
        %v2087 = vshrl.u32 %v2086, 7
        %v2088 = vsub.s32 0, %v2087
        %v2089 = vrot.slane %v2084, %v2088
        %v2347 = vunpack.c.l.b16 %v1828
        %v2348 = vunpack.c.l.b16 %v1829
        %v2349 = vunpack.c.l.b16 %v1830
        %v2350 = vunpack.c.l.b16 %v1831
        %v2351 = vunpack.c.l.b16 %v1832
        %v2352 = vunpack.c.l.b16 %v1833
        %v2353 = vunpack.c.l.b16 %v1834
        %v2354 = vunpack.c.l.b16 %v1835
        %v2355 = vunpack.c.l.b16 %v1836
        %v2356 = vunpack.c.l.b16 %v1837
        %v2357 = vunpack.c.l.b16 %v1838
        %v2358 = vunpack.c.l.b16 %v1839
        %v2359 = vunpack.c.l.b16 %v1840
        %v2360 = vunpack.c.l.b16 %v1841
        %v2361 = vunpack.c.l.b16 %v1842
        %v2362 = vunpack.c.l.b16 %v1843
        %v2363 = vunpack.c.l.b16 %v1844
        %v2364 = vunpack.c.l.b16 %v1845
        %v2365 = vunpack.c.l.b16 %v1846
        %v2366 = vunpack.c.l.b16 %v1847
        %v2367 = vunpack.c.l.b16 %v1848
        %v2368 = vunpack.c.l.b16 %v1849
        %v2369 = vunpack.c.l.b16 %v1850
        %v2370 = vunpack.c.l.b16 %v1851
        %v2371 = vunpack.c.l.b16 %v1852
        %v2372 = vunpack.c.l.b16 %v1853
        %v2373 = vunpack.c.l.b16 %v1854
        %v2374 = vunpack.c.l.b16 %v1855
        %v2375 = vunpack.c.l.b16 %v1856
        %v2376 = vunpack.c.l.b16 %v1857
        %v2377 = vunpack.c.l.b16 %v1858
        %v2378 = vunpack.c.l.b16 %v1859
        %v2379 = vunpack.c.l.b16 %v1860
        %v2380 = vunpack.c.l.b16 %v1861
        %v2381 = vunpack.c.l.b16 %v1862
        %v2382 = vunpack.c.l.b16 %v1863
        %v2383 = vunpack.c.l.b16 %v1864
        %v2384 = vunpack.c.l.b16 %v1865
        %v2385 = vunpack.c.l.b16 %v1866
        %v2386 = vunpack.c.l.b16 %v1867
        %v2387 = vunpack.c.l.b16 %v1868
        %v2388 = vunpack.c.l.b16 %v1869
        %v2389 = vunpack.c.l.b16 %v1870
        %v2390 = vunpack.c.l.b16 %v1871
        %v2391 = vunpack.c.l.b16 %v1872
        %v2392 = vunpack.c.l.b16 %v1873
        %v2393 = vunpack.c.l.b16 %v1874
        %v2394 = vunpack.c.l.b16 %v1875
        %v2395 = vunpack.c.l.b16 %v1876
        %v2396 = vunpack.c.l.b16 %v1877
        %v2397 = vunpack.c.l.b16 %v1878
        %v2398 = vunpack.c.l.b16 %v1879
        %v2399 = vunpack.c.l.b16 %v1880
        %v2400 = vunpack.c.l.b16 %v1881
        %v2401 = vunpack.c.l.b16 %v1882
        %v2402 = vunpack.c.l.b16 %v1883
        %v2403 = vunpack.c.l.b16 %v1884
        %v2404 = vunpack.c.l.b16 %v1885
        %v2405 = vunpack.c.l.b16 %v1886
        %v2406 = vunpack.c.l.b16 %v1887
        %v2407 = vunpack.c.l.b16 %v1888
        %v2408 = vunpack.c.l.b16 %v1889
        %v2409 = vunpack.c.l.b16 %v1890
        %v2410 = vunpack.c.l.b16 %v1891
        %v2411 = vunpack.c.l.b16 %v1892
        %v2412 = vunpack.c.l.b16 %v1893
        %v2413 = vunpack.c.l.b16 %v1894
        %v2414 = vunpack.c.l.b16 %v1895
        %v2415 = vunpack.c.l.b16 %v1896
        %v2416 = vunpack.c.l.b16 %v1897
        %v2417 = vunpack.c.l.b16 %v1898
        %v2418 = vunpack.c.l.b16 %v1899
        %v2419 = vunpack.c.l.b16 %v1900
        %v2420 = vunpack.c.l.b16 %v1901
        %v2421 = vunpack.c.l.b16 %v1902
        %v2422 = vunpack.c.l.b16 %v1903
        %v2423 = vunpack.c.l.b16 %v1904
        %v2424 = vunpack.c.l.b16 %v1905
        %v2425 = vunpack.c.l.b16 %v1906
        %v2426 = vunpack.c.l.b16 %v1907
        %v2427 = vunpack.c.l.b16 %v1908
        %v2428 = vunpack.c.l.b16 %v1909
        %v2429 = vunpack.c.l.b16 %v1910
        %v2430 = vunpack.c.l.b16 %v1911
        %v2431 = vunpack.c.l.b16 %v1912
        %v2432 = vunpack.c.l.b16 %v1913
        %v2433 = vunpack.c.l.b16 %v1914
        %v2434 = vunpack.c.l.b16 %v1915
        %v2435 = vunpack.c.l.b16 %v1916
        %v2436 = vunpack.c.l.b16 %v1917
        %v2437 = vunpack.c.l.b16 %v1918
        %v2438 = vunpack.c.l.b16 %v1919
        %v2439 = vunpack.c.l.b16 %v1920
        %v2440 = vunpack.c.l.b16 %v1921
        %v2441 = vunpack.c.l.b16 %v1922
        %v2442 = vunpack.c.l.b16 %v1923
        %v2443 = vunpack.c.l.b16 %v1924
        %v2444 = vunpack.c.l.b16 %v1925
        %v2445 = vunpack.c.l.b16 %v1926
        %v2446 = vunpack.c.l.b16 %v1927
        %v2447 = vunpack.c.l.b16 %v1928
        %v2448 = vunpack.c.l.b16 %v1929
        %v2449 = vunpack.c.l.b16 %v1930
        %v2450 = vunpack.c.l.b16 %v1931
        %v2451 = vunpack.c.l.b16 %v1932
        %v2452 = vunpack.c.l.b16 %v1933
        %v2453 = vunpack.c.l.b16 %v1934
        %v2454 = vunpack.c.l.b16 %v1935
        %v2455 = vunpack.c.l.b16 %v1936
        %v2456 = vunpack.c.l.b16 %v1937
        %v2457 = vunpack.c.l.b16 %v1938
        %v2458 = vunpack.c.l.b16 %v1939
        %v2459 = vunpack.c.l.b16 %v1940
        %v2460 = vunpack.c.l.b16 %v1941
        %v2461 = vunpack.c.l.b16 %v1942
        %v2462 = vunpack.c.l.b16 %v1943
        %v2463 = vunpack.c.l.b16 %v1944
        %v2464 = vunpack.c.l.b16 %v1945
        %v2465 = vunpack.c.l.b16 %v1946
        %v2466 = vunpack.c.l.b16 %v1947
        %v2467 = vunpack.c.l.b16 %v1948
        %v2468 = vunpack.c.l.b16 %v1949
        %v2469 = vunpack.c.l.b16 %v1950
        %v2470 = vunpack.c.l.b16 %v1951
        %v2471 = vunpack.c.l.b16 %v1952
        %v2472 = vunpack.c.l.b16 %v1953
        %v2473 = vunpack.c.l.b16 %v1954
        %v2474 = vunpack.c.l.b16 %v1955
        %v2475 = vunpack.c.l.b16 %v1956
        %v2476 = vunpack.c.l.b16 %v1957
        %v2477 = vunpack.c.l.b16 %v1958
        %v2478 = vunpack.c.l.b16 %v1959
        %v2479 = vunpack.c.l.b16 %v1960
        %v2480 = vunpack.c.l.b16 %v1961
        %v2481 = vunpack.c.l.b16 %v1962
        %v2482 = vunpack.c.l.b16 %v1963
        %v2483 = vunpack.c.l.b16 %v1964
        %v2484 = vunpack.c.l.b16 %v1965
        %v2485 = vunpack.c.l.b16 %v1966
        %v2486 = vunpack.c.l.b16 %v1967
        %v2487 = vunpack.c.l.b16 %v1968
        %v2488 = vunpack.c.l.b16 %v1969
        %v2489 = vunpack.c.l.b16 %v1970
        %v2490 = vunpack.c.l.b16 %v1971
        %v2491 = vunpack.c.l.b16 %v1972
        %v2492 = vunpack.c.l.b16 %v1973
        %v2493 = vunpack.c.l.b16 %v1974
        %v2494 = vunpack.c.l.b16 %v1975
        %v2495 = vunpack.c.l.b16 %v1976
        %v2496 = vunpack.c.l.b16 %v1977
        %v2497 = vunpack.c.l.b16 %v1978
        %v2498 = vunpack.c.l.b16 %v1979
        %v2499 = vunpack.c.l.b16 %v1980
        %v2500 = vunpack.c.l.b16 %v1981
        %v2501 = vunpack.c.l.b16 %v1982
        %v2502 = vunpack.c.l.b16 %v1983
        %v2503 = vunpack.c.l.b16 %v1984
        %v2504 = vunpack.c.l.b16 %v1985
        %v2505 = vunpack.c.l.b16 %v1986
        %v2506 = vunpack.c.l.b16 %v1987
        %v2507 = vunpack.c.l.b16 %v1988
        %v2508 = vunpack.c.l.b16 %v1989
        %v2509 = vunpack.c.l.b16 %v1990
        %v2510 = vunpack.c.l.b16 %v1991
        %v2511 = vunpack.c.l.b16 %v1992
        %v2512 = vunpack.c.l.b16 %v1993
        %v2513 = vunpack.c.l.b16 %v1994
        %v2514 = vunpack.c.l.b16 %v1995
        %v2515 = vunpack.c.l.b16 %v1996
        %v2516 = vunpack.c.l.b16 %v1997
        %v2517 = vunpack.c.l.b16 %v1998
        %v2518 = vunpack.c.l.b16 %v1999
        %v2519 = vunpack.c.l.b16 %v2000
        %v2520 = vunpack.c.l.b16 %v2001
        %v2521 = vunpack.c.l.b16 %v2002
        %v2522 = vunpack.c.l.b16 %v2003
        %v2523 = vunpack.c.l.b16 %v2004
        %v2524 = vunpack.c.l.b16 %v2005
        %v2525 = vunpack.c.l.b16 %v2006
        %v2526 = vunpack.c.l.b16 %v2007
        %v2527 = vunpack.c.l.b16 %v2008
        %v2528 = vunpack.c.l.b16 %v2009
        %v2529 = vunpack.c.l.b16 %v2010
        %v2530 = vunpack.c.l.b16 %v2011
        %v2531 = vunpack.c.l.b16 %v2012
        %v2532 = vunpack.c.l.b16 %v2013
        %v2533 = vunpack.c.l.b16 %v2014
        %v2534 = vunpack.c.l.b16 %v2015
        %v2535 = vunpack.c.l.b16 %v2016
        %v2536 = vunpack.c.l.b16 %v2017
        %v2537 = vunpack.c.l.b16 %v2018
        %v2538 = vunpack.c.l.b16 %v2019
        %v2539 = vunpack.c.l.b16 %v2020
        %v2540 = vunpack.c.l.b16 %v2021
        %v2541 = vunpack.c.l.b16 %v2022
        %v2542 = vunpack.c.l.b16 %v2023
        %v2543 = vunpack.c.l.b16 %v2024
        %v2544 = vunpack.c.l.b16 %v2025
        %v2545 = vunpack.c.l.b16 %v2026
        %v2546 = vunpack.c.l.b16 %v2027
        %v2547 = vunpack.c.l.b16 %v2028
        %v2548 = vunpack.c.l.b16 %v2029
        %v2549 = vunpack.c.l.b16 %v2030
        %v2550 = vunpack.c.l.b16 %v2031
        %v2551 = vunpack.c.l.b16 %v2032
        %v2552 = vunpack.c.l.b16 %v2033
        %v2553 = vunpack.c.l.b16 %v2034
        %v2554 = vunpack.c.l.b16 %v2035
        %v2555 = vunpack.c.l.b16 %v2036
        %v2556 = vunpack.c.l.b16 %v2037
        %v2557 = vunpack.c.l.b16 %v2038
        %v2558 = vunpack.c.l.b16 %v2039
        %v2559 = vunpack.c.l.b16 %v2040
        %v2560 = vunpack.c.l.b16 %v2041
        %v2561 = vunpack.c.l.b16 %v2042
        %v2562 = vunpack.c.l.b16 %v2043
        %v2563 = vunpack.c.l.b16 %v2044
        %v2564 = vunpack.c.l.b16 %v2045
        %v2565 = vunpack.c.l.b16 %v2046
        %v2566 = vunpack.c.l.b16 %v2047
        %v2567 = vunpack.c.l.b16 %v2048
        %v2568 = vunpack.c.l.b16 %v2049
        %v2569 = vunpack.c.l.b16 %v2050
        %v2570 = vunpack.c.l.b16 %v2051
        %v2571 = vunpack.c.l.b16 %v2052
        %v2572 = vunpack.c.l.b16 %v2053
        %v2573 = vunpack.c.l.b16 %v2054
        %v2574 = vunpack.c.l.b16 %v2055
        %v2575 = vunpack.c.l.b16 %v2056
        %v2576 = vunpack.c.l.b16 %v2057
        %v2577 = vunpack.c.l.b16 %v2058
        %v2578 = vunpack.c.l.b16 %v2059
        %v2579 = vunpack.c.l.b16 %v2060
        %v2580 = vunpack.c.l.b16 %v2061
        %v2581 = vunpack.c.l.b16 %v2062
        %v2582 = vunpack.c.l.b16 %v2063
        %v2583 = vunpack.c.l.b16 %v2064
        %v2584 = vunpack.c.l.b16 %v2065
        %v2585 = vunpack.c.l.b16 %v2066
        %v2586 = vunpack.c.l.b16 %v2067
        %v2587 = vunpack.c.l.b16 %v2068
        %v2588 = vunpack.c.l.b16 %v2069
        %v2589 = vunpack.c.l.b16 %v2070
        %v2590 = vunpack.c.l.b16 %v2071
        %v2591 = vunpack.c.l.b16 %v2072
        %v2592 = vunpack.c.l.b16 %v2073
        %v2593 = vunpack.c.l.b16 %v2074
        %v2594 = vunpack.c.l.b16 %v2075
        %v2595 = vunpack.c.l.b16 %v2076
        %v2596 = vunpack.c.l.b16 %v2077
        %v2597 = vunpack.c.l.b16 %v2078
        %v2598 = vunpack.c.l.b16 %v2079
        %v2599 = vunpack.c.l.b16 %v2080
        %v2600 = vunpack.c.l.b16 %v2081
        %v2601 = vunpack.c.l.b16 %v2082
        %v2602 = vunpack.c.l.b16 %v2083
        %v2603 = vpack.c.b16 %v2348, %v2347
        %v2604 = vpack.c.b16 %v2350, %v2349
        %v2605 = vpack.c.b16 %v2352, %v2351
        %v2606 = vpack.c.b16 %v2354, %v2353
        %v2607 = vpack.c.b16 %v2356, %v2355
        %v2608 = vpack.c.b16 %v2358, %v2357
        %v2609 = vpack.c.b16 %v2360, %v2359
        %v2610 = vpack.c.b16 %v2362, %v2361
        %v2611 = vpack.c.b16 %v2364, %v2363
        %v2612 = vpack.c.b16 %v2366, %v2365
        %v2613 = vpack.c.b16 %v2368, %v2367
        %v2614 = vpack.c.b16 %v2370, %v2369
        %v2615 = vpack.c.b16 %v2372, %v2371
        %v2616 = vpack.c.b16 %v2374, %v2373
        %v2617 = vpack.c.b16 %v2376, %v2375
        %v2618 = vpack.c.b16 %v2378, %v2377
        %v2619 = vpack.c.b16 %v2380, %v2379
        %v2620 = vpack.c.b16 %v2382, %v2381
        %v2621 = vpack.c.b16 %v2384, %v2383
        %v2622 = vpack.c.b16 %v2386, %v2385
        %v2623 = vpack.c.b16 %v2388, %v2387
        %v2624 = vpack.c.b16 %v2390, %v2389
        %v2625 = vpack.c.b16 %v2392, %v2391
        %v2626 = vpack.c.b16 %v2394, %v2393
        %v2627 = vpack.c.b16 %v2396, %v2395
        %v2628 = vpack.c.b16 %v2398, %v2397
        %v2629 = vpack.c.b16 %v2400, %v2399
        %v2630 = vpack.c.b16 %v2402, %v2401
        %v2631 = vpack.c.b16 %v2404, %v2403
        %v2632 = vpack.c.b16 %v2406, %v2405
        %v2633 = vpack.c.b16 %v2408, %v2407
        %v2634 = vpack.c.b16 %v2410, %v2409
        %v2635 = vpack.c.b16 %v2412, %v2411
        %v2636 = vpack.c.b16 %v2414, %v2413
        %v2637 = vpack.c.b16 %v2416, %v2415
        %v2638 = vpack.c.b16 %v2418, %v2417
        %v2639 = vpack.c.b16 %v2420, %v2419
        %v2640 = vpack.c.b16 %v2422, %v2421
        %v2641 = vpack.c.b16 %v2424, %v2423
        %v2642 = vpack.c.b16 %v2426, %v2425
        %v2643 = vpack.c.b16 %v2428, %v2427
        %v2644 = vpack.c.b16 %v2430, %v2429
        %v2645 = vpack.c.b16 %v2432, %v2431
        %v2646 = vpack.c.b16 %v2434, %v2433
        %v2647 = vpack.c.b16 %v2436, %v2435
        %v2648 = vpack.c.b16 %v2438, %v2437
        %v2649 = vpack.c.b16 %v2440, %v2439
        %v2650 = vpack.c.b16 %v2442, %v2441
        %v2651 = vpack.c.b16 %v2444, %v2443
        %v2652 = vpack.c.b16 %v2446, %v2445
        %v2653 = vpack.c.b16 %v2448, %v2447
        %v2654 = vpack.c.b16 %v2450, %v2449
        %v2655 = vpack.c.b16 %v2452, %v2451
        %v2656 = vpack.c.b16 %v2454, %v2453
        %v2657 = vpack.c.b16 %v2456, %v2455
        %v2658 = vpack.c.b16 %v2458, %v2457
        %v2659 = vpack.c.b16 %v2460, %v2459
        %v2660 = vpack.c.b16 %v2462, %v2461
        %v2661 = vpack.c.b16 %v2464, %v2463
        %v2662 = vpack.c.b16 %v2466, %v2465
        %v2663 = vpack.c.b16 %v2468, %v2467
        %v2664 = vpack.c.b16 %v2470, %v2469
        %v2665 = vpack.c.b16 %v2472, %v2471
        %v2666 = vpack.c.b16 %v2474, %v2473
        %v2667 = vpack.c.b16 %v2476, %v2475
        %v2668 = vpack.c.b16 %v2478, %v2477
        %v2669 = vpack.c.b16 %v2480, %v2479
        %v2670 = vpack.c.b16 %v2482, %v2481
        %v2671 = vpack.c.b16 %v2484, %v2483
        %v2672 = vpack.c.b16 %v2486, %v2485
        %v2673 = vpack.c.b16 %v2488, %v2487
        %v2674 = vpack.c.b16 %v2490, %v2489
        %v2675 = vpack.c.b16 %v2492, %v2491
        %v2676 = vpack.c.b16 %v2494, %v2493
        %v2677 = vpack.c.b16 %v2496, %v2495
        %v2678 = vpack.c.b16 %v2498, %v2497
        %v2679 = vpack.c.b16 %v2500, %v2499
        %v2680 = vpack.c.b16 %v2502, %v2501
        %v2681 = vpack.c.b16 %v2504, %v2503
        %v2682 = vpack.c.b16 %v2506, %v2505
        %v2683 = vpack.c.b16 %v2508, %v2507
        %v2684 = vpack.c.b16 %v2510, %v2509
        %v2685 = vpack.c.b16 %v2512, %v2511
        %v2686 = vpack.c.b16 %v2514, %v2513
        %v2687 = vpack.c.b16 %v2516, %v2515
        %v2688 = vpack.c.b16 %v2518, %v2517
        %v2689 = vpack.c.b16 %v2520, %v2519
        %v2690 = vpack.c.b16 %v2522, %v2521
        %v2691 = vpack.c.b16 %v2524, %v2523
        %v2692 = vpack.c.b16 %v2526, %v2525
        %v2693 = vpack.c.b16 %v2528, %v2527
        %v2694 = vpack.c.b16 %v2530, %v2529
        %v2695 = vpack.c.b16 %v2532, %v2531
        %v2696 = vpack.c.b16 %v2534, %v2533
        %v2697 = vpack.c.b16 %v2536, %v2535
        %v2698 = vpack.c.b16 %v2538, %v2537
        %v2699 = vpack.c.b16 %v2540, %v2539
        %v2700 = vpack.c.b16 %v2542, %v2541
        %v2701 = vpack.c.b16 %v2544, %v2543
        %v2702 = vpack.c.b16 %v2546, %v2545
        %v2703 = vpack.c.b16 %v2548, %v2547
        %v2704 = vpack.c.b16 %v2550, %v2549
        %v2705 = vpack.c.b16 %v2552, %v2551
        %v2706 = vpack.c.b16 %v2554, %v2553
        %v2707 = vpack.c.b16 %v2556, %v2555
        %v2708 = vpack.c.b16 %v2558, %v2557
        %v2709 = vpack.c.b16 %v2560, %v2559
        %v2710 = vpack.c.b16 %v2562, %v2561
        %v2711 = vpack.c.b16 %v2564, %v2563
        %v2712 = vpack.c.b16 %v2566, %v2565
        %v2713 = vpack.c.b16 %v2568, %v2567
        %v2714 = vpack.c.b16 %v2570, %v2569
        %v2715 = vpack.c.b16 %v2572, %v2571
        %v2716 = vpack.c.b16 %v2574, %v2573
        %v2717 = vpack.c.b16 %v2576, %v2575
        %v2718 = vpack.c.b16 %v2578, %v2577
        %v2719 = vpack.c.b16 %v2580, %v2579
        %v2720 = vpack.c.b16 %v2582, %v2581
        %v2721 = vpack.c.b16 %v2584, %v2583
        %v2722 = vpack.c.b16 %v2586, %v2585
        %v2723 = vpack.c.b16 %v2588, %v2587
        %v2724 = vpack.c.b16 %v2590, %v2589
        %v2725 = vpack.c.b16 %v2592, %v2591
        %v2726 = vpack.c.b16 %v2594, %v2593
        %v2727 = vpack.c.b16 %v2596, %v2595
        %v2728 = vpack.c.b16 %v2598, %v2597
        %v2729 = vpack.c.b16 %v2600, %v2599
        %v2730 = vpack.c.b16 %v2602, %v2601
        %2859 = vmatprep.subr.bf16.mxu0 0
        %2860 = vmatpush1.bf16.msra.mxu0 %v2603
        %2861 = vmatprep.subr.bf16.mxu0 0
        %2862 = vmatpush1.bf16.msra.mxu0 %v2604
        %2863 = vmatprep.subr.bf16.mxu0 0
        %2864 = vmatpush1.bf16.msra.mxu0 %v2605
        %2865 = vmatprep.subr.bf16.mxu0 0
        %2866 = vmatpush1.bf16.msra.mxu0 %v2606
        %2867 = vmatprep.subr.bf16.mxu0 0
        %2868 = vmatpush1.bf16.msra.mxu0 %v2607
        %2869 = vmatprep.subr.bf16.mxu0 0
        %2870 = vmatpush1.bf16.msra.mxu0 %v2608
        %2871 = vmatprep.subr.bf16.mxu0 0
        %2872 = vmatpush1.bf16.msra.mxu0 %v2609
        %2873 = vmatprep.subr.bf16.mxu0 0
        %2874 = vmatpush1.bf16.msra.mxu0 %v2610
        %2875 = vmatprep.subr.bf16.mxu0 0
        %2876 = vmatpush1.bf16.msra.mxu0 %v2611
        %2877 = vmatprep.subr.bf16.mxu0 0
        %2878 = vmatpush1.bf16.msra.mxu0 %v2612
        %2879 = vmatprep.subr.bf16.mxu0 0
        %2880 = vmatpush1.bf16.msra.mxu0 %v2613
        %2881 = vmatprep.subr.bf16.mxu0 0
        %2882 = vmatpush1.bf16.msra.mxu0 %v2614
        %2883 = vmatprep.subr.bf16.mxu0 0
        %2884 = vmatpush1.bf16.msra.mxu0 %v2615
        %2885 = vmatprep.subr.bf16.mxu0 0
        %2886 = vmatpush1.bf16.msra.mxu0 %v2616
        %2887 = vmatprep.subr.bf16.mxu0 0
        %2888 = vmatpush1.bf16.msra.mxu0 %v2617
        %2889 = vmatprep.subr.bf16.mxu0 0
        %2890 = vmatpush1.bf16.msra.mxu0 %v2618
        %2891 = vmatprep.mubr.bf16.mxu0 %v1813
        %2892 = vmatmul.mubr.bf16.gmra.mrb[0].mxu0 %v1812
        %v2893 = vpop.f32.mrb[0].mxu0
        %v2894 = vadd.f32 %v2089, %v2893
        %v2895 = vpop.f32.mrb[0].mxu0
        %v2896 = vpop.f32.mrb[0].mxu0
        %v2897 = vadd.f32 %v2089, %v2896
        %v2898 = vpop.f32.mrb[0].mxu0
        %2899 = vdwg.mxu0
        %2900 = vmatprep.subr.bf16.mxu0 0
        %2901 = vmatpush1.bf16.msra.mxu0 %v2619
        %2902 = vmatprep.subr.bf16.mxu0 0
        %2903 = vmatpush1.bf16.msra.mxu0 %v2620
        %2904 = vmatprep.subr.bf16.mxu0 0
        %2905 = vmatpush1.bf16.msra.mxu0 %v2621
        %2906 = vmatprep.subr.bf16.mxu0 0
        %2907 = vmatpush1.bf16.msra.mxu0 %v2622
        %2908 = vmatprep.subr.bf16.mxu0 0
        %2909 = vmatpush1.bf16.msra.mxu0 %v2623
        %2910 = vmatprep.subr.bf16.mxu0 0
        %2911 = vmatpush1.bf16.msra.mxu0 %v2624
        %2912 = vmatprep.subr.bf16.mxu0 0
        %2913 = vmatpush1.bf16.msra.mxu0 %v2625
        %2914 = vmatprep.subr.bf16.mxu0 0
        %2915 = vmatpush1.bf16.msra.mxu0 %v2626
        %2916 = vmatprep.subr.bf16.mxu0 0
        %2917 = vmatpush1.bf16.msra.mxu0 %v2627
        %2918 = vmatprep.subr.bf16.mxu0 0
        %2919 = vmatpush1.bf16.msra.mxu0 %v2628
        %2920 = vmatprep.subr.bf16.mxu0 0
        %2921 = vmatpush1.bf16.msra.mxu0 %v2629
        %2922 = vmatprep.subr.bf16.mxu0 0
        %2923 = vmatpush1.bf16.msra.mxu0 %v2630
        %2924 = vmatprep.subr.bf16.mxu0 0
        %2925 = vmatpush1.bf16.msra.mxu0 %v2631
        %2926 = vmatprep.subr.bf16.mxu0 0
        %2927 = vmatpush1.bf16.msra.mxu0 %v2632
        %2928 = vmatprep.subr.bf16.mxu0 0
        %2929 = vmatpush1.bf16.msra.mxu0 %v2633
        %2930 = vmatprep.subr.bf16.mxu0 0
        %2931 = vmatpush1.bf16.msra.mxu0 %v2634
        %2932 = vmatprep.mubr.bf16.mxu0 %v1815
        %2933 = vmatmul.mubr.bf16.gmra.mrb[0].mxu0 %v1814
        %v2934 = vpop.f32.mrb[0].mxu0
        %v2935 = vadd.f32 %v2894, %v2934
        %v2936 = vpop.f32.mrb[0].mxu0
        %v2937 = vpop.f32.mrb[0].mxu0
        %v2938 = vadd.f32 %v2897, %v2937
        %v2939 = vpop.f32.mrb[0].mxu0
        %2940 = vdwg.mxu0
        %2941 = vmatprep.subr.bf16.mxu0 0
        %2942 = vmatpush1.bf16.msra.mxu0 %v2635
        %2943 = vmatprep.subr.bf16.mxu0 0
        %2944 = vmatpush1.bf16.msra.mxu0 %v2636
        %2945 = vmatprep.subr.bf16.mxu0 0
        %2946 = vmatpush1.bf16.msra.mxu0 %v2637
        %2947 = vmatprep.subr.bf16.mxu0 0
        %2948 = vmatpush1.bf16.msra.mxu0 %v2638
        %2949 = vmatprep.subr.bf16.mxu0 0
        %2950 = vmatpush1.bf16.msra.mxu0 %v2639
        %2951 = vmatprep.subr.bf16.mxu0 0
        %2952 = vmatpush1.bf16.msra.mxu0 %v2640
        %2953 = vmatprep.subr.bf16.mxu0 0
        %2954 = vmatpush1.bf16.msra.mxu0 %v2641
        %2955 = vmatprep.subr.bf16.mxu0 0
        %2956 = vmatpush1.bf16.msra.mxu0 %v2642
        %2957 = vmatprep.subr.bf16.mxu0 0
        %2958 = vmatpush1.bf16.msra.mxu0 %v2643
        %2959 = vmatprep.subr.bf16.mxu0 0
        %2960 = vmatpush1.bf16.msra.mxu0 %v2644
        %2961 = vmatprep.subr.bf16.mxu0 0
        %2962 = vmatpush1.bf16.msra.mxu0 %v2645
        %2963 = vmatprep.subr.bf16.mxu0 0
        %2964 = vmatpush1.bf16.msra.mxu0 %v2646
        %2965 = vmatprep.subr.bf16.mxu0 0
        %2966 = vmatpush1.bf16.msra.mxu0 %v2647
        %2967 = vmatprep.subr.bf16.mxu0 0
        %2968 = vmatpush1.bf16.msra.mxu0 %v2648
        %2969 = vmatprep.subr.bf16.mxu0 0
        %2970 = vmatpush1.bf16.msra.mxu0 %v2649
        %2971 = vmatprep.subr.bf16.mxu0 0
        %2972 = vmatpush1.bf16.msra.mxu0 %v2650
        %2973 = vmatprep.mubr.bf16.mxu0 %v1817
        %2974 = vmatmul.mubr.bf16.gmra.mrb[0].mxu0 %v1816
        %v2975 = vpop.f32.mrb[0].mxu0
        %v2976 = vadd.f32 %v2935, %v2975
        %v2977 = vpop.f32.mrb[0].mxu0
        %v2978 = vpop.f32.mrb[0].mxu0
        %v2979 = vadd.f32 %v2938, %v2978
        %v2980 = vpop.f32.mrb[0].mxu0
        %2981 = vdwg.mxu0
        %2982 = vmatprep.subr.bf16.mxu0 0
        %2983 = vmatpush1.bf16.msra.mxu0 %v2651
        %2984 = vmatprep.subr.bf16.mxu0 0
        %2985 = vmatpush1.bf16.msra.mxu0 %v2652
        %2986 = vmatprep.subr.bf16.mxu0 0
        %2987 = vmatpush1.bf16.msra.mxu0 %v2653
        %2988 = vmatprep.subr.bf16.mxu0 0
        %2989 = vmatpush1.bf16.msra.mxu0 %v2654
        %2990 = vmatprep.subr.bf16.mxu0 0
        %2991 = vmatpush1.bf16.msra.mxu0 %v2655
        %2992 = vmatprep.subr.bf16.mxu0 0
        %2993 = vmatpush1.bf16.msra.mxu0 %v2656
        %2994 = vmatprep.subr.bf16.mxu0 0
        %2995 = vmatpush1.bf16.msra.mxu0 %v2657
        %2996 = vmatprep.subr.bf16.mxu0 0
        %2997 = vmatpush1.bf16.msra.mxu0 %v2658
        %2998 = vmatprep.subr.bf16.mxu0 0
        %2999 = vmatpush1.bf16.msra.mxu0 %v2659
        %3000 = vmatprep.subr.bf16.mxu0 0
        %3001 = vmatpush1.bf16.msra.mxu0 %v2660
        %3002 = vmatprep.subr.bf16.mxu0 0
        %3003 = vmatpush1.bf16.msra.mxu0 %v2661
        %3004 = vmatprep.subr.bf16.mxu0 0
        %3005 = vmatpush1.bf16.msra.mxu0 %v2662
        %3006 = vmatprep.subr.bf16.mxu0 0
        %3007 = vmatpush1.bf16.msra.mxu0 %v2663
        %3008 = vmatprep.subr.bf16.mxu0 0
        %3009 = vmatpush1.bf16.msra.mxu0 %v2664
        %3010 = vmatprep.subr.bf16.mxu0 0
        %3011 = vmatpush1.bf16.msra.mxu0 %v2665
        %3012 = vmatprep.subr.bf16.mxu0 0
        %3013 = vmatpush1.bf16.msra.mxu0 %v2666
        %3014 = vmatprep.mubr.bf16.mxu0 %v1819
        %3015 = vmatmul.mubr.bf16.gmra.mrb[0].mxu0 %v1818
        %v3016 = vpop.f32.mrb[0].mxu0
        %v3017 = vadd.f32 %v2976, %v3016
        %v3018 = vpop.f32.mrb[0].mxu0
        %v3019 = vpop.f32.mrb[0].mxu0
        %v3020 = vadd.f32 %v2979, %v3019
        %v3021 = vpop.f32.mrb[0].mxu0
        %3022 = vdwg.mxu0
        %3023 = vmatprep.subr.bf16.mxu0 0
        %3024 = vmatpush1.bf16.msra.mxu0 %v2667
        %3025 = vmatprep.subr.bf16.mxu0 0
        %3026 = vmatpush1.bf16.msra.mxu0 %v2668
        %3027 = vmatprep.subr.bf16.mxu0 0
        %3028 = vmatpush1.bf16.msra.mxu0 %v2669
        %3029 = vmatprep.subr.bf16.mxu0 0
        %3030 = vmatpush1.bf16.msra.mxu0 %v2670
        %3031 = vmatprep.subr.bf16.mxu0 0
        %3032 = vmatpush1.bf16.msra.mxu0 %v2671
        %3033 = vmatprep.subr.bf16.mxu0 0
        %3034 = vmatpush1.bf16.msra.mxu0 %v2672
        %3035 = vmatprep.subr.bf16.mxu0 0
        %3036 = vmatpush1.bf16.msra.mxu0 %v2673
        %3037 = vmatprep.subr.bf16.mxu0 0
        %3038 = vmatpush1.bf16.msra.mxu0 %v2674
        %3039 = vmatprep.subr.bf16.mxu0 0
        %3040 = vmatpush1.bf16.msra.mxu0 %v2675
        %3041 = vmatprep.subr.bf16.mxu0 0
        %3042 = vmatpush1.bf16.msra.mxu0 %v2676
        %3043 = vmatprep.subr.bf16.mxu0 0
        %3044 = vmatpush1.bf16.msra.mxu0 %v2677
        %3045 = vmatprep.subr.bf16.mxu0 0
        %3046 = vmatpush1.bf16.msra.mxu0 %v2678
        %3047 = vmatprep.subr.bf16.mxu0 0
        %3048 = vmatpush1.bf16.msra.mxu0 %v2679
        %3049 = vmatprep.subr.bf16.mxu0 0
        %3050 = vmatpush1.bf16.msra.mxu0 %v2680
        %3051 = vmatprep.subr.bf16.mxu0 0
        %3052 = vmatpush1.bf16.msra.mxu0 %v2681
        %3053 = vmatprep.subr.bf16.mxu0 0
        %3054 = vmatpush1.bf16.msra.mxu0 %v2682
        %3055 = vmatprep.mubr.bf16.mxu0 %v1821
        %3056 = vmatmul.mubr.bf16.gmra.mrb[0].mxu0 %v1820
        %v3057 = vpop.f32.mrb[0].mxu0
        %v3058 = vadd.f32 %v3017, %v3057
        %v3059 = vpop.f32.mrb[0].mxu0
        %v3060 = vpop.f32.mrb[0].mxu0
        %v3061 = vadd.f32 %v3020, %v3060
        %v3062 = vpop.f32.mrb[0].mxu0
        %3063 = vdwg.mxu0
        %3064 = vmatprep.subr.bf16.mxu0 0
        %3065 = vmatpush1.bf16.msra.mxu0 %v2683
        %3066 = vmatprep.subr.bf16.mxu0 0
        %3067 = vmatpush1.bf16.msra.mxu0 %v2684
        %3068 = vmatprep.subr.bf16.mxu0 0
        %3069 = vmatpush1.bf16.msra.mxu0 %v2685
        %3070 = vmatprep.subr.bf16.mxu0 0
        %3071 = vmatpush1.bf16.msra.mxu0 %v2686
        %3072 = vmatprep.subr.bf16.mxu0 0
        %3073 = vmatpush1.bf16.msra.mxu0 %v2687
        %3074 = vmatprep.subr.bf16.mxu0 0
        %3075 = vmatpush1.bf16.msra.mxu0 %v2688
        %3076 = vmatprep.subr.bf16.mxu0 0
        %3077 = vmatpush1.bf16.msra.mxu0 %v2689
        %3078 = vmatprep.subr.bf16.mxu0 0
        %3079 = vmatpush1.bf16.msra.mxu0 %v2690
        %3080 = vmatprep.subr.bf16.mxu0 0
        %3081 = vmatpush1.bf16.msra.mxu0 %v2691
        %3082 = vmatprep.subr.bf16.mxu0 0
        %3083 = vmatpush1.bf16.msra.mxu0 %v2692
        %3084 = vmatprep.subr.bf16.mxu0 0
        %3085 = vmatpush1.bf16.msra.mxu0 %v2693
        %3086 = vmatprep.subr.bf16.mxu0 0
        %3087 = vmatpush1.bf16.msra.mxu0 %v2694
        %3088 = vmatprep.subr.bf16.mxu0 0
        %3089 = vmatpush1.bf16.msra.mxu0 %v2695
        %3090 = vmatprep.subr.bf16.mxu0 0
        %3091 = vmatpush1.bf16.msra.mxu0 %v2696
        %3092 = vmatprep.subr.bf16.mxu0 0
        %3093 = vmatpush1.bf16.msra.mxu0 %v2697
        %3094 = vmatprep.subr.bf16.mxu0 0
        %3095 = vmatpush1.bf16.msra.mxu0 %v2698
        %3096 = vmatprep.mubr.bf16.mxu0 %v1823
        %3097 = vmatmul.mubr.bf16.gmra.mrb[0].mxu0 %v1822
        %v3098 = vpop.f32.mrb[0].mxu0
        %v3099 = vadd.f32 %v3058, %v3098
        %v3100 = vpop.f32.mrb[0].mxu0
        %v3101 = vpop.f32.mrb[0].mxu0
        %v3102 = vadd.f32 %v3061, %v3101
        %v3103 = vpop.f32.mrb[0].mxu0
        %3104 = vdwg.mxu0
        %3105 = vmatprep.subr.bf16.mxu0 0
        %3106 = vmatpush1.bf16.msra.mxu0 %v2699
        %3107 = vmatprep.subr.bf16.mxu0 0
        %3108 = vmatpush1.bf16.msra.mxu0 %v2700
        %3109 = vmatprep.subr.bf16.mxu0 0
        %3110 = vmatpush1.bf16.msra.mxu0 %v2701
        %3111 = vmatprep.subr.bf16.mxu0 0
        %3112 = vmatpush1.bf16.msra.mxu0 %v2702
        %3113 = vmatprep.subr.bf16.mxu0 0
        %3114 = vmatpush1.bf16.msra.mxu0 %v2703
        %3115 = vmatprep.subr.bf16.mxu0 0
        %3116 = vmatpush1.bf16.msra.mxu0 %v2704
        %3117 = vmatprep.subr.bf16.mxu0 0
        %3118 = vmatpush1.bf16.msra.mxu0 %v2705
        %3119 = vmatprep.subr.bf16.mxu0 0
        %3120 = vmatpush1.bf16.msra.mxu0 %v2706
        %3121 = vmatprep.subr.bf16.mxu0 0
        %3122 = vmatpush1.bf16.msra.mxu0 %v2707
        %3123 = vmatprep.subr.bf16.mxu0 0
        %3124 = vmatpush1.bf16.msra.mxu0 %v2708
        %3125 = vmatprep.subr.bf16.mxu0 0
        %3126 = vmatpush1.bf16.msra.mxu0 %v2709
        %3127 = vmatprep.subr.bf16.mxu0 0
        %3128 = vmatpush1.bf16.msra.mxu0 %v2710
        %3129 = vmatprep.subr.bf16.mxu0 0
        %3130 = vmatpush1.bf16.msra.mxu0 %v2711
        %3131 = vmatprep.subr.bf16.mxu0 0
        %3132 = vmatpush1.bf16.msra.mxu0 %v2712
        %3133 = vmatprep.subr.bf16.mxu0 0
        %3134 = vmatpush1.bf16.msra.mxu0 %v2713
        %3135 = vmatprep.subr.bf16.mxu0 0
        %3136 = vmatpush1.bf16.msra.mxu0 %v2714
        %3137 = vmatprep.mubr.bf16.mxu0 %v1825
        %3138 = vmatmul.mubr.bf16.gmra.mrb[0].mxu0 %v1824
        %v3139 = vpop.f32.mrb[0].mxu0
        %v3140 = vadd.f32 %v3099, %v3139
        %v3141 = vpop.f32.mrb[0].mxu0
        %v3142 = vpop.f32.mrb[0].mxu0
        %v3143 = vadd.f32 %v3102, %v3142
        %v3144 = vpop.f32.mrb[0].mxu0
        %3145 = vdwg.mxu0
        %3146 = vmatprep.subr.bf16.mxu0 0
        %3147 = vmatpush1.bf16.msra.mxu0 %v2715
        %3148 = vmatprep.subr.bf16.mxu0 0
        %3149 = vmatpush1.bf16.msra.mxu0 %v2716
        %3150 = vmatprep.subr.bf16.mxu0 0
        %3151 = vmatpush1.bf16.msra.mxu0 %v2717
        %3152 = vmatprep.subr.bf16.mxu0 0
        %3153 = vmatpush1.bf16.msra.mxu0 %v2718
        %3154 = vmatprep.subr.bf16.mxu0 0
        %3155 = vmatpush1.bf16.msra.mxu0 %v2719
        %3156 = vmatprep.subr.bf16.mxu0 0
        %3157 = vmatpush1.bf16.msra.mxu0 %v2720
        %3158 = vmatprep.subr.bf16.mxu0 0
        %3159 = vmatpush1.bf16.msra.mxu0 %v2721
        %3160 = vmatprep.subr.bf16.mxu0 0
        %3161 = vmatpush1.bf16.msra.mxu0 %v2722
        %3162 = vmatprep.subr.bf16.mxu0 0
        %3163 = vmatpush1.bf16.msra.mxu0 %v2723
        %3164 = vmatprep.subr.bf16.mxu0 0
        %3165 = vmatpush1.bf16.msra.mxu0 %v2724
        %3166 = vmatprep.subr.bf16.mxu0 0
        %3167 = vmatpush1.bf16.msra.mxu0 %v2725
        %3168 = vmatprep.subr.bf16.mxu0 0
        %3169 = vmatpush1.bf16.msra.mxu0 %v2726
        %3170 = vmatprep.subr.bf16.mxu0 0
        %3171 = vmatpush1.bf16.msra.mxu0 %v2727
        %3172 = vmatprep.subr.bf16.mxu0 0
        %3173 = vmatpush1.bf16.msra.mxu0 %v2728
        %3174 = vmatprep.subr.bf16.mxu0 0
        %3175 = vmatpush1.bf16.msra.mxu0 %v2729
        %3176 = vmatprep.subr.bf16.mxu0 0
        %3177 = vmatpush1.bf16.msra.mxu0 %v2730
        %3178 = vmatprep.mubr.bf16.mxu0 %v1827
        %3179 = vmatmul.mubr.bf16.gmra.mrb[0].mxu0 %v1826
        %v3180 = vpop.f32.mrb[0].mxu0
        %v3181 = vadd.f32 %v3140, %v3180
        %v3182 = vpop.f32.mrb[0].mxu0
        %v3183 = vpop.f32.mrb[0].mxu0
        %v3184 = vadd.f32 %v3143, %v3183
        %v3185 = vpop.f32.mrb[0].mxu0
        %3186 = vdwg.mxu0
        %v3187 = vadd.f32 %v1154, %v3181
        %v3188 = vadd.f32 %v1155, %v3184
        %v3189 = vld [vmem:[%s274 + $0x8] sm:$0x1]
        %v3190 = vld [vmem:[%s274 + $0x9] sm:$0x1]
        %v3191 = vsel %vm408, %v3187, 0.0
        %3192 = vadd.xlane.f32.xlu0 %v3191
        %v3193 = vpop.xlane.xlu0 %3192
        %v3194 = vsel %vm408, %v3188, 0.0
        %3195 = vadd.xlane.f32.xlu0 %v3194
        %v3196 = vpop.xlane.xlu0 %3195
        %v3197 = vmul.f32 %v3193, %v1066
        %v3198 = vmul.f32 %v3196, %v1066
        %v3199 = vsub.f32 %v3187, %v3197
        %v3200 = vsub.f32 %v3188, %v3198
        %v3201 = vmul.f32 %v3199, %v3199
        %v3202 = vmul.f32 %v3200, %v3200
        %v3203 = vsel %vm408, %v3201, 0.0
        %3204 = vadd.xlane.f32.xlu0 %v3203
        %v3205 = vpop.xlane.xlu0 %3204
        %v3206 = vsel %vm408, %v3202, 0.0
        %3207 = vadd.xlane.f32.xlu0 %v3206
        %v3208 = vpop.xlane.xlu0 %3207
        %v3209 = vmul.f32 %v3205, %v1066
        %v3210 = vmul.f32 %v3208, %v1066
        %v3211 = vadd.f32 %v3209, 1e-05
        %v3212 = vadd.f32 %v3210, 1e-05
        %v3213 = vrsqrt.pop %v3211
        %v3214 = vrsqrt.pop %v3212
        %v3215 = vmul.f32 %v3199, %v3213
        %v3216 = vmul.f32 %v3200, %v3214
        %v3218 = vlaneseq
        %v3219 = vshrl.u32 %v3218, 7
        %v3220 = vsub.s32 0, %v3219
        %v3221 = vrot.slane %v3189, %v3220
        %v3223 = vmul.f32 %v3215, %v3221
        %v3224 = vmul.f32 %v3216, %v3221
        %v3226 = vlaneseq
        %v3227 = vshrl.u32 %v3226, 7
        %v3228 = vsub.s32 0, %v3227
        %v3229 = vrot.slane %v3190, %v3228
        %v3231 = vadd.f32 %v3223, %v3229
        %v3232 = vadd.f32 %v3224, %v3229
        %3233 = vst.msk [vmem:[#allocation2] sm:$0xff] %vm408, %v3231
        %3234 = vst.msk [vmem:[#allocation2 + $0x8] sm:$0xff] %vm408, %v3232
        %p3235 = scmp.eq.s32.totalorder %s18, 5
        // Predicated region
        $region49: #{tpu_custom_call.1} parent=43 // pred_check
          %p3236 = pneg %p3235
        $region50: #{tpu_custom_call.1} parent=43 // pred_check_branch
          %3238 = sbr.rel (%p3236) target = $region52
        $region51: #{tpu_custom_call.1} parent=43 // pred_region
          %v3239 = vpack.c.bf16 %v3232, %v3231
          %v3240 = vld [vmem:[%s4] sm:$0xf]
          %v3241 = vld [vmem:[%s4 + $0x4] sm:$0xf]
          %v3242 = vld [vmem:[%s4 + $0x8] sm:$0xf]
          %v3243 = vld [vmem:[%s4 + $0xc] sm:$0xf]
          %v3244 = vld [vmem:[%s5] sm:$0x1]
          %v3246 = vlaneseq
          %v3247 = vshrl.u32 %v3246, 7
          %v3248 = vsub.s32 0, %v3247
          %v3249 = vrot.slane %v3244, %v3248
          %v3255 = vunpack.c.l.b16 %v3240
          %v3256 = vunpack.c.l.b16 %v3241
          %v3257 = vunpack.c.l.b16 %v3242
          %v3258 = vunpack.c.l.b16 %v3243
          %v3259 = vpack.c.b16 %v3256, %v3255
          %v3260 = vpack.c.b16 %v3258, %v3257
          %v3264 = vsel %vm408, %v3239, 0
          %3266 = vmatprep.subr.bf16.mxu0 0
          %3267 = vmatpush1.bf16.msra.mxu0 %v3259
          %3268 = vmatprep.subr.bf16.mxu0 0
          %3269 = vmatpush1.bf16.msra.mxu0 %v3260
          %3270 = vmatprep.subr.bf16.mxu0 0
          %3271 = vmatpush1.bf16.msra.mxu0 0
          %3272 = vmatprep.subr.bf16.mxu0 0
          %3273 = vmatpush1.bf16.msra.mxu0 0
          %3274 = vmatprep.subr.bf16.mxu0 0
          %3275 = vmatpush1.bf16.msra.mxu0 0
          %3276 = vmatprep.subr.bf16.mxu0 0
          %3277 = vmatpush1.bf16.msra.mxu0 0
          %3278 = vmatprep.subr.bf16.mxu0 0
          %3279 = vmatpush1.bf16.msra.mxu0 0
          %3280 = vmatprep.subr.bf16.mxu0 0
          %3281 = vmatpush1.bf16.msra.mxu0 0
          %3282 = vmatprep.subr.bf16.mxu0 0
          %3283 = vmatpush1.bf16.msra.mxu0 0
          %3284 = vmatprep.subr.bf16.mxu0 0
          %3285 = vmatpush1.bf16.msra.mxu0 0
          %3286 = vmatprep.subr.bf16.mxu0 0
          %3287 = vmatpush1.bf16.msra.mxu0 0
          %3288 = vmatprep.subr.bf16.mxu0 0
          %3289 = vmatpush1.bf16.msra.mxu0 0
          %3290 = vmatprep.subr.bf16.mxu0 0
          %3291 = vmatpush1.bf16.msra.mxu0 0
          %3292 = vmatprep.subr.bf16.mxu0 0
          %3293 = vmatpush1.bf16.msra.mxu0 0
          %3294 = vmatprep.subr.bf16.mxu0 0
          %3295 = vmatpush1.bf16.msra.mxu0 0
          %3296 = vmatprep.subr.bf16.mxu0 0
          %3297 = vmatpush1.bf16.msra.mxu0 0
          %3298 = vmatprep.mubr.bf16.mxu0 0
          %3299 = vmatmul.mubr.bf16.gmra.mrb[0].mxu0 %v3264
          %v3300 = vpop.f32.mrb[0].mxu0
          %v3301 = vadd.f32 %v3249, %v3300
          %v3302 = vpop.f32.mrb[0].mxu0
          %v3303 = vpop.f32.mrb[0].mxu0
          %v3304 = vadd.f32 %v3249, %v3303
          %v3305 = vpop.f32.mrb[0].mxu0
          %3306 = vdwg.mxu0
          %3307 = vst [vmem:[#allocation3] sm:$0xff] %v3301
          %3308 = vst [vmem:[#allocation3 + $0x8] sm:$0xff] %v3304
        $region52: #{tpu_custom_call.1} parent=43 // pred_fallthru
          _
        // Predicated region
        $region53: #{tpu_custom_call.1} parent=43 // pred_check
          %p3309 = pneg %p172
        $region54: #{tpu_custom_call.1} parent=43 // pred_check_branch
          %3311 = sbr.rel (%p3309) target = $region56
        $region55: #{tpu_custom_call.1} parent=43 // pred_region
          %s3313 = ssub.s32 256, 256
          %3314 = vsyncadd [#allocation4], %s3313
          %s3315 = sshll.u32 [#allocation3], 4
          %s3316 = int_to_ptr.vmem [resolvable:$true] %s3315
          %3321 = dma.vmem_to_hbm [thread:$0]  %s3316, 256, %s6, [#allocation4], 128, 128, 8
        $region56: #{tpu_custom_call.1} parent=43 // pred_fallthru
          _
        // Predicated region
        $region57: #{tpu_custom_call.1} parent=43 // pred_check
          %p3322 = pneg %p172
        $region58: #{tpu_custom_call.1} parent=43 // pred_check_branch
          %3324 = sbr.rel (%p3322) target = $region60
        $region59: #{tpu_custom_call.1} parent=43 // pred_region
          %3325 = dma.done [#allocation4], 256
        $region60: #{tpu_custom_call.1} parent=43 // pred_fallthru
          _
      $region44: #{tpu_custom_call.1} parent=5 // pred_fallthru
        _
      %p3326 = scmp.le.s32.totalorder 2, %s13
      // Predicated region
      $region61: #{tpu_custom_call.1} parent=5 // pred_check
        %p3327 = pneg %p3326
      $region62: #{tpu_custom_call.1} parent=5 // pred_check_branch
        %3329 = sbr.rel (%p3327) target = $region64
      $region63: #{tpu_custom_call.1} parent=5 // pred_region
        %s3330 = ssub.s32 %s13, 2
      $region64: #{tpu_custom_call.1} parent=5 // pred_fallthru
        _
    $region6: #{tpu_custom_call.1} parent=1 // loop_footer
      %s17 = sadd.s32 1, %s13
    $region7: #{tpu_custom_call.1} parent=1 // loop_footer_branch
      %12 = sbr.rel target = $region3
    $region8: #{tpu_custom_call.1} parent=1 // loop_exit
      _
    %3331 = vsyncpa [#allocation4], 1
    %s3332 = scalar_lea.sflag [#allocation4], 1
    %3333 = vsyncpa %s3332, 1

</llo_original>
